<compile_context>
chip_gen: v5e
topology: v5e:2x2
jax: 0.10.0
libtpu: 0.0.40
codegen_flags: <defaults>
</compile_context>

<pallas_src>
import functools

import jax
import jax.numpy as jnp
from jax.experimental import pallas as pl
from jax.experimental.pallas import tpu as pltpu


def _round_up(x, m):
    return (x + m - 1) // m * m


def _choose_tm(m, tm_max=4096):
    # >= 8 grid steps so v7x's two TensorCores each get >= 4 steps of real
    # pipelining (a 2-step grid exposes the whole A-tile DMA).  tm is the
    # lane axis of every block, so it must be a multiple of 128.
    t = _round_up(max(pl.cdiv(m, 8), 1), 128)
    return max(128, min(tm_max, t, _round_up(m, 128)))


# ----------------------------- Pallas kernel -------------------------------

def _conv_kernel(*refs, prologue, emit_stats, act):
    """Transposed conv-as-matmul tile: (Cout, K) x (K, tm) -> (Cout, tm).

    Optional prologue applies the *previous* BN layer's per-channel affine +
    LeakyReLU(0.2) to the patch tile; scale/shift arrive as (K, 1) vectors
    (K rows are (ki, kj, cin)-ordered, so the per-cin values are tiled 16x).
    With emit_stats the raw pre-BN tile is written (bf16) plus per-tile
    channel sum / sum-of-squares rows (f32) for the tiny cross-tile BN
    reduction done in XLA.
    """
    if prologue:
        scale_ref, shift_ref, a_ref, b_ref, *out_refs = refs
    else:
        a_ref, b_ref, *out_refs = refs
    o_ref = out_refs[0]

    a = a_ref[...]
    if prologue:
        af = a.astype(jnp.float32) * scale_ref[...] + shift_ref[...]
        af = jnp.where(af >= 0.0, af, 0.2 * af)          # LeakyReLU(0.2)
        a = af.astype(jnp.bfloat16)

    y = jnp.dot(b_ref[...], a, preferred_element_type=jnp.float32)  # (Cout, tm)

    if emit_stats:
        stats_ref = out_refs[1]
        o_ref[...] = y.astype(o_ref.dtype)               # raw pre-BN activations
        cout = y.shape[0]
        s = jnp.sum(y, axis=1)                           # (Cout,)
        ss = jnp.sum(y * y, axis=1)
        rows = jax.lax.broadcasted_iota(jnp.int32, (8, cout), 0)
        stats_ref[...] = jnp.where(rows == 0, s[None, :],
                                   jnp.where(rows == 1, ss[None, :], 0.0))
    else:
        if act == "leaky":
            y = jnp.where(y >= 0.0, y, 0.2 * y)
        elif act == "sigmoid":
            y = jax.nn.sigmoid(y)
        o_ref[...] = y.astype(o_ref.dtype)


def pallas_conv_matmul(a, b, *, act=None, emit_stats=False, prologue=None,
                       tm_max=4096):
    """a: (K, M) transposed im2col patches, b: (Cout, K) transposed weights.

    Returns y (Cout, M) bf16, plus (channel_sum, channel_sumsq) f32 when
    emit_stats=True.  K and Cout are full-dim blocks; only M (lane axis) is
    padded, with values neutral to both the matmul and the BN sums.
    """
    k, m = a.shape
    cout = b.shape[0]
    tm = _choose_tm(m, tm_max)
    mp = _round_up(m, tm)
    nt = mp // tm

    a = a.astype(jnp.bfloat16)           # bf16 MXU operands, f32 accumulation
    b = b.astype(jnp.bfloat16)
    if mp != m:
        if prologue is not None:
            # pad columns with the value the prologue affine maps to 0, so the
            # padded columns contribute nothing to the matmul or the BN sums.
            s_k, sh_k = prologue
            pad_col = (-sh_k / s_k).astype(jnp.bfloat16)
            a = jnp.concatenate(
                [a, jnp.broadcast_to(pad_col, (k, mp - m))], axis=1)
        else:
            a = jnp.pad(a, ((0, 0), (0, mp - m)))

    in_specs = []
    args = []
    if prologue is not None:
        s_k, sh_k = prologue
        in_specs += [pl.BlockSpec((k, 1), lambda i: (0, 0)),
                     pl.BlockSpec((k, 1), lambda i: (0, 0))]
        args += [s_k.astype(jnp.float32), sh_k.astype(jnp.float32)]
    in_specs += [pl.BlockSpec((k, tm), lambda i: (0, i)),     # lane-dense A
                 pl.BlockSpec((cout, k), lambda i: (0, 0))]   # resident weights
    args += [a, b]

    o_spec = pl.BlockSpec((cout, tm), lambda i: (0, i))       # lane-dense out
    cparams = pltpu.CompilerParams(
        dimension_semantics=("parallel",),
        vmem_limit_bytes=32 * 1024 * 1024)   # explicit; footprint ~1 MiB

    kern = functools.partial(_conv_kernel, prologue=prologue is not None,
                             emit_stats=emit_stats, act=act)

    if emit_stats:
        y, stats = pl.pallas_call(
            kern,
            out_shape=(jax.ShapeDtypeStruct((cout, mp), jnp.bfloat16),
                       jax.ShapeDtypeStruct((nt * 8, cout), jnp.float32)),
            grid=(nt,),
            in_specs=in_specs,
            out_specs=(o_spec, pl.BlockSpec((8, cout), lambda i: (i, 0))),
            compiler_params=cparams,
        )(*args)
        stats = stats.reshape(nt, 8, cout)
        ch_sum = jnp.sum(stats[:, 0, :], axis=0)
        ch_sumsq = jnp.sum(stats[:, 1, :], axis=0)
        if mp != m:
            y = y[:, :m]
        return y, ch_sum, ch_sumsq

    y = pl.pallas_call(
        kern,
        out_shape=jax.ShapeDtypeStruct((cout, mp), jnp.bfloat16),
        grid=(nt,),
        in_specs=in_specs,
        out_specs=o_spec,
        compiler_params=cparams,
    )(*args)
    if mp != m:
        y = y[:, :m]
    return y


# ------------------------------- JAX glue ----------------------------------

def im2col_cf(x_cf, k, stride, pad, dtype, pad_value=None):
    """Channel-first im2col.  x_cf: (C, N, H, W) -> patches (k*k*C, N*Ho*Wo)
    with K rows in (ki, kj, cin) order and M = N*Ho*Wo on the last axis.

    pad_value (C,) lets the caller pad the *raw* map with the per-channel
    value that the downstream BN-affine maps to zero, so zero-padding
    semantics survive the fused prologue.
    """
    c, n, h, w = x_cf.shape
    ho = (h + 2 * pad - k) // stride + 1
    wo = (w + 2 * pad - k) // stride + 1
    if pad > 0:
        if pad_value is None:
            xp = jnp.pad(x_cf, ((0, 0), (0, 0), (pad, pad), (pad, pad)))
        else:
            pv = pad_value.reshape(c, 1, 1, 1)           # f32; fuses into gather
            xp = jnp.pad(x_cf - pv, ((0, 0), (0, 0), (pad, pad), (pad, pad))) + pv
    else:
        xp = x_cf
    cols = []
    for ki in range(k):
        for kj in range(k):
            cols.append(xp[:, :, ki:ki + stride * ho:stride,
                           kj:kj + stride * wo:stride])
    patches = jnp.stack(cols, axis=0)                    # (k*k, C, N, Ho, Wo)
    patches = patches.reshape(k * k * c, n * ho * wo).astype(dtype)
    return patches, ho, wo


def spectral_normalize(w, key, n_iter=1, eps=1e-12):
    """nn.utils.spectral_norm semantics: w / sigma_max(w.reshape(Cout, -1))."""
    # TODO(synk): PyTorch keeps a persistent `u` buffer updated every forward;
    # here one deterministic power iteration is applied at init time only.
    w_mat = w.reshape(w.shape[0], -1)
    u = jax.random.normal(key, (w.shape[0],), jnp.float32)
    u = u / (jnp.linalg.norm(u) + eps)
    v = None
    for _ in range(n_iter):
        v = w_mat.T @ u
        v = v / (jnp.linalg.norm(v) + eps)
        u = w_mat @ v
        u = u / (jnp.linalg.norm(u) + eps)
    sigma = u @ (w_mat @ v)
    return w / sigma


# (stride, pad, has_bn, activation)
LAYER_CFG = [
    (2, 1, False, "leaky"),
    (2, 1, True,  "leaky"),
    (2, 1, True,  "leaky"),
    (2, 1, True,  "leaky"),
    (2, 1, True,  "leaky"),
    (2, 1, True,  "leaky"),
    (1, 0, False, "sigmoid"),
]

# below this a pallas_call launch costs more than the math (per v7x review)
MIN_PALLAS_ROWS = 2048


def init_params(key, nc, ndf):
    chans = [nc, ndf, ndf * 2, ndf * 4, ndf * 8, ndf * 16, ndf * 32, 1]
    params = []
    for i, (_, _, has_bn, _) in enumerate(LAYER_CFG):
        key, wkey, ukey = jax.random.split(key, 3)
        cin, cout = chans[i], chans[i + 1]
        w = 0.02 * jax.random.normal(wkey, (cout, cin, 4, 4), jnp.float32)
        w = spectral_normalize(w, ukey)
        gamma = jnp.ones((cout,), jnp.float32) if has_bn else None
        beta = jnp.zeros((cout,), jnp.float32) if has_bn else None
        params.append((w, gamma, beta))
    return params


def _apply_act(y, act):
    if act == "leaky":
        return jnp.where(y >= 0.0, y, 0.2 * y)
    return jax.nn.sigmoid(y)


def discriminator_forward(params, x_nchw):
    # NCHW input -> channel-first (C, N, H, W) internal layout -> NCHW output.
    x_cf = jnp.transpose(x_nchw, (1, 0, 2, 3)).astype(jnp.float32)
    n = x_nchw.shape[0]
    # (scale, shift) of the previous BN layer still to be applied (deferred so
    # the consumer Pallas kernel can fuse affine+LeakyReLU into its prologue).
    pending = None
    for (w, gamma, beta), (stride, pad, has_bn, act) in zip(params, LAYER_CFG):
        cout = w.shape[0]
        h, wd = x_cf.shape[2], x_cf.shape[3]
        ho = (h + 2 * pad - 4) // stride + 1
        wo = (wd + 2 * pad - 4) // stride + 1
        m = n * ho * wo
        # weight (Cout, Cin, kh, kw) -> (Cout, kh*kw*Cin), matching patch order
        wmat_t = jnp.transpose(w, (0, 2, 3, 1)).reshape(cout, -1)

        if m >= MIN_PALLAS_ROWS:
            if pending is not None:
                scale_p, shift_p = pending
                pad_value = -shift_p / scale_p       # -> 0 after in-kernel affine
                patches, _, _ = im2col_cf(x_cf, 4, stride, pad, jnp.bfloat16,
                                          pad_value=pad_value)
                k = patches.shape[0]
                prologue = (jnp.tile(scale_p, 16).reshape(k, 1),
                            jnp.tile(shift_p, 16).reshape(k, 1))
            else:
                patches, _, _ = im2col_cf(x_cf, 4, stride, pad, jnp.bfloat16)
                prologue = None

            if has_bn:
                y, ch_sum, ch_sumsq = pallas_conv_matmul(
                    patches, wmat_t, emit_stats=True, prologue=prologue)
                # BatchNorm2d (training mode): biased batch statistics.
                mean = ch_sum / m
                var = jnp.maximum(ch_sumsq / m - mean * mean, 0.0)
                scale = gamma * jax.lax.rsqrt(var + 1e-5)
                shift = beta - mean * scale
                pending = (scale, shift)   # applied in the consumer's prologue
            else:
                y = pallas_conv_matmul(patches, wmat_t, act=act,
                                       prologue=prologue)
                pending = None
            x_cf = y.reshape(cout, n, ho, wo)
        else:
            # tail layers: tiny matmuls, plain XLA beats a Pallas launch.
            xf = x_cf.astype(jnp.float32)
            if pending is not None:
                scale_p, shift_p = pending
                xf = xf * scale_p[:, None, None, None] + shift_p[:, None, None, None]
                xf = _apply_act(xf, "leaky")
                pending = None
            patches, _, _ = im2col_cf(xf, 4, stride, pad, jnp.float32)
            y = jnp.dot(wmat_t.astype(jnp.float32), patches,
                        preferred_element_type=jnp.float32)       # (Cout, M)
            if has_bn:
                mean = jnp.mean(y, axis=1, keepdims=True)
                var = jnp.mean(jnp.square(y - mean), axis=1, keepdims=True)
                scale = gamma[:, None] * jax.lax.rsqrt(var + 1e-5)
                shift = beta[:, None] - mean * scale
                y = y * scale + shift
            y = _apply_act(y, act)
            x_cf = y.reshape(cout, n, ho, wo)

    return jnp.transpose(x_cf, (1, 0, 2, 3))   # (N, 1, 1, 1)


# --------------------------------- main -------------------------------------

if __name__ == "__main__":
    key = jax.random.PRNGKey(0)
    key, pkey, xkey = jax.random.split(key, 3)

    # architecture requires 256x256 spatial input (6 stride-2 convs + 4x4 valid)
    batch, nc, ndf, spatial = 2, 3, 4, 256
    params = init_params(pkey, nc, ndf)
    x = jax.random.normal(xkey, (batch, nc, spatial, spatial), jnp.float32)

    fwd = jax.jit(discriminator_forward)
    out = jax.block_until_ready(fwd(params, x))

    assert out.shape == (batch, 1, 1, 1), out.shape
    assert bool(jnp.all(jnp.isfinite(out)))
    assert bool(jnp.all((out >= 0.0) & (out <= 1.0)))
    print("KERNEL_OK")
</pallas_src>

<mosaic_0001>
module attributes {stable_mosaic.version = 11 : i64} {
  func.func @_conv_kernel(%arg0: i32, %arg1: memref<48x4096xbf16, #tpu.memory_space<vmem>>, %arg2: memref<4x48xbf16, #tpu.memory_space<vmem>>, %arg3: memref<4x4096xbf16, #tpu.memory_space<vmem>>) attributes {dimension_semantics = [#tpu.dimension_semantics<parallel>], iteration_bounds = array<i64: 8>, scalar_prefetch = 0 : i64, scratch_operands = 0 : i64, tpu.core_type = #tpu.core_type<tc>, window_params = [{transform_indices = @transform_0, window_bounds = array<i64: 48, 4096>}, {pipeline_mode = #tpu.pipeline_mode<synchronous>, transform_indices = @transform_1, window_bounds = array<i64: 4, 48>}, {transform_indices = @transform_2, window_bounds = array<i64: 4, 4096>}]} {
    %c0 = arith.constant 0 : index
    %c0_0 = arith.constant 0 : index
    %0 = vector.load %arg1[%c0, %c0_0] : memref<48x4096xbf16, #tpu.memory_space<vmem>>, vector<48x4096xbf16>
    %c0_1 = arith.constant 0 : index
    %c0_2 = arith.constant 0 : index
    %1 = vector.load %arg2[%c0_1, %c0_2] : memref<4x48xbf16, #tpu.memory_space<vmem>>, vector<4x48xbf16>
    %cst = arith.constant dense<0.000000e+00> : vector<4x4096xf32>
    %2 = tpu.matmul %1, %0, %cst {dimension_numbers = #tpu.dot_dimension_numbers<[1], [0], [0], [1], [0, 0, 1, 1], [], []>} : vector<4x48xbf16>, vector<48x4096xbf16>, vector<4x4096xf32> -> vector<4x4096xf32>
    %cst_3 = arith.constant 0.000000e+00 : f32
    %3 = vector.broadcast %cst_3 : f32 to vector<4x4096xf32>
    %4 = arith.cmpf oge, %2, %3 : vector<4x4096xf32>
    %cst_4 = arith.constant 2.000000e-01 : f32
    %5 = vector.broadcast %cst_4 : f32 to vector<4x4096xf32>
    %6 = arith.mulf %5, %2 : vector<4x4096xf32>
    %7 = arith.select %4, %2, %6 : vector<4x4096xi1>, vector<4x4096xf32>
    %8 = arith.truncf %7 : vector<4x4096xf32> to vector<4x4096xbf16>
    %c0_5 = arith.constant 0 : index
    %c0_6 = arith.constant 0 : index
    %9 = vector.load %arg3[%c0_5, %c0_6] : memref<4x4096xbf16, #tpu.memory_space<vmem>>, vector<4x4096xbf16>
    tpu.vector_store %arg3[%c0_5, %c0_6], %8 {strides = array<i32>} : memref<4x4096xbf16, #tpu.memory_space<vmem>>, vector<4x4096xbf16>,
    return
  }
  func.func @transform_0(%arg0: i32) -> (i32, i32) {
    %c0_i32 = arith.constant 0 : i32
    %c0_i32_0 = arith.constant 0 : i32
    return %c0_i32, %arg0 : i32, i32
  }
  func.func @transform_1(%arg0: i32) -> (i32, i32) {
    %c0_i32 = arith.constant 0 : i32
    %c0_i32_0 = arith.constant 0 : i32
    %c0_i32_1 = arith.constant 0 : i32
    return %c0_i32, %c0_i32_0 : i32, i32
  }
  func.func @transform_2(%arg0: i32) -> (i32, i32) {
    %c0_i32 = arith.constant 0 : i32
    %c0_i32_0 = arith.constant 0 : i32
    return %c0_i32, %arg0 : i32, i32
  }
}

module attributes {stable_mosaic.version = 11 : i64} {
  func.func @_conv_kernel(%arg0: i32, %arg1: memref<64x1024xbf16, #tpu.memory_space<vmem>>, %arg2: memref<8x64xbf16, #tpu.memory_space<vmem>>, %arg3: memref<8x1024xbf16, #tpu.memory_space<vmem>>, %arg4: memref<8x8xf32, #tpu.memory_space<vmem>>) attributes {dimension_semantics = [#tpu.dimension_semantics<parallel>], iteration_bounds = array<i64: 8>, scalar_prefetch = 0 : i64, scratch_operands = 0 : i64, tpu.core_type = #tpu.core_type<tc>, window_params = [{transform_indices = @transform_0, window_bounds = array<i64: 64, 1024>}, {pipeline_mode = #tpu.pipeline_mode<synchronous>, transform_indices = @transform_1, window_bounds = array<i64: 8, 64>}, {transform_indices = @transform_2, window_bounds = array<i64: 8, 1024>}, {transform_indices = @transform_3, window_bounds = array<i64: 8, 8>}]} {
    %c0 = arith.constant 0 : index
    %c0_0 = arith.constant 0 : index
    %0 = vector.load %arg1[%c0, %c0_0] : memref<64x1024xbf16, #tpu.memory_space<vmem>>, vector<64x1024xbf16>
    %c0_1 = arith.constant 0 : index
    %c0_2 = arith.constant 0 : index
    %1 = vector.load %arg2[%c0_1, %c0_2] : memref<8x64xbf16, #tpu.memory_space<vmem>>, vector<8x64xbf16>
    %cst = arith.constant dense<0.000000e+00> : vector<8x1024xf32>
    %2 = tpu.matmul %1, %0, %cst {dimension_numbers = #tpu.dot_dimension_numbers<[1], [0], [0], [1], [0, 0, 1, 1], [], []>} : vector<8x64xbf16>, vector<64x1024xbf16>, vector<8x1024xf32> -> vector<8x1024xf32>
    %3 = arith.truncf %2 : vector<8x1024xf32> to vector<8x1024xbf16>
    %c0_3 = arith.constant 0 : index
    %c0_4 = arith.constant 0 : index
    %4 = vector.load %arg3[%c0_3, %c0_4] : memref<8x1024xbf16, #tpu.memory_space<vmem>>, vector<8x1024xbf16>
    tpu.vector_store %arg3[%c0_3, %c0_4], %3 {strides = array<i32>} : memref<8x1024xbf16, #tpu.memory_space<vmem>>, vector<8x1024xbf16>,
    %cst_5 = arith.constant dense<0.000000e+00> : vector<8xf32>
    %5 = vector.multi_reduction <add>, %2, %cst_5 [1] : vector<8x1024xf32> to vector<8xf32>
    %6 = arith.mulf %2, %2 : vector<8x1024xf32>
    %cst_6 = arith.constant dense<0.000000e+00> : vector<8xf32>
    %7 = vector.multi_reduction <add>, %6, %cst_6 [1] : vector<8x1024xf32> to vector<8xf32>
    %8 = tpu.iota {dimensions = array<i32: 0>} : vector<8x8xi32>
    %c0_i32 = arith.constant 0 : i32
    %9 = vector.broadcast %c0_i32 : i32 to vector<8x8xi32>
    %10 = arith.cmpi eq, %8, %9 : vector<8x8xi32>
    %11 = vector.shape_cast %5 : vector<8xf32> to vector<1x8xf32>
    %c1_i32 = arith.constant 1 : i32
    %12 = vector.broadcast %c1_i32 : i32 to vector<8x8xi32>
    %13 = arith.cmpi eq, %8, %12 : vector<8x8xi32>
    %14 = vector.shape_cast %7 : vector<8xf32> to vector<1x8xf32>
    %cst_7 = arith.constant 0.000000e+00 : f32
    %15 = vector.shape_cast %14 : vector<1x8xf32> to vector<1x8xf32>
    %16 = vector.broadcast %15 : vector<1x8xf32> to vector<8x8xf32>
    %17 = vector.broadcast %cst_7 : f32 to vector<8x8xf32>
    %18 = arith.select %13, %16, %17 : vector<8x8xi1>, vector<8x8xf32>
    %19 = vector.shape_cast %11 : vector<1x8xf32> to vector<1x8xf32>
    %20 = vector.broadcast %19 : vector<1x8xf32> to vector<8x8xf32>
    %21 = arith.select %10, %20, %18 : vector<8x8xi1>, vector<8x8xf32>
    %c0_8 = arith.constant 0 : index
    %c0_9 = arith.constant 0 : index
    %22 = vector.load %arg4[%c0_8, %c0_9] : memref<8x8xf32, #tpu.memory_space<vmem>>, vector<8x8xf32>
    tpu.vector_store %arg4[%c0_8, %c0_9], %21 {strides = array<i32>} : memref<8x8xf32, #tpu.memory_space<vmem>>, vector<8x8xf32>,
    return
  }
  func.func @transform_0(%arg0: i32) -> (i32, i32) {
    %c0_i32 = arith.constant 0 : i32
    %c0_i32_0 = arith.constant 0 : i32
    return %c0_i32, %arg0 : i32, i32
  }
  func.func @transform_1(%arg0: i32) -> (i32, i32) {
    %c0_i32 = arith.constant 0 : i32
    %c0_i32_0 = arith.constant 0 : i32
    %c0_i32_1 = arith.constant 0 : i32
    return %c0_i32, %c0_i32_0 : i32, i32
  }
  func.func @transform_2(%arg0: i32) -> (i32, i32) {
    %c0_i32 = arith.constant 0 : i32
    %c0_i32_0 = arith.constant 0 : i32
    return %c0_i32, %arg0 : i32, i32
  }
  func.func @transform_3(%arg0: i32) -> (i32, i32) {
    %c0_i32 = arith.constant 0 : i32
    %c0_i32_0 = arith.constant 0 : i32
    return %arg0, %c0_i32 : i32, i32
  }
}

module attributes {stable_mosaic.version = 11 : i64} {
  func.func @_conv_kernel(%arg0: i32, %arg1: memref<128x1xf32, #tpu.memory_space<vmem>>, %arg2: memref<128x1xf32, #tpu.memory_space<vmem>>, %arg3: memref<128x256xbf16, #tpu.memory_space<vmem>>, %arg4: memref<16x128xbf16, #tpu.memory_space<vmem>>, %arg5: memref<16x256xbf16, #tpu.memory_space<vmem>>, %arg6: memref<8x16xf32, #tpu.memory_space<vmem>>) attributes {dimension_semantics = [#tpu.dimension_semantics<parallel>], iteration_bounds = array<i64: 8>, scalar_prefetch = 0 : i64, scratch_operands = 0 : i64, tpu.core_type = #tpu.core_type<tc>, window_params = [{pipeline_mode = #tpu.pipeline_mode<synchronous>, transform_indices = @transform_0, window_bounds = array<i64: 128, 1>}, {pipeline_mode = #tpu.pipeline_mode<synchronous>, transform_indices = @transform_1, window_bounds = array<i64: 128, 1>}, {transform_indices = @transform_2, window_bounds = array<i64: 128, 256>}, {pipeline_mode = #tpu.pipeline_mode<synchronous>, transform_indices = @transform_3, window_bounds = array<i64: 16, 128>}, {transform_indices = @transform_4, window_bounds = array<i64: 16, 256>}, {transform_indices = @transform_5, window_bounds = array<i64: 8, 16>}]} {
    %c0 = arith.constant 0 : index
    %c0_0 = arith.constant 0 : index
    %0 = vector.load %arg3[%c0, %c0_0] : memref<128x256xbf16, #tpu.memory_space<vmem>>, vector<128x256xbf16>
    %1 = arith.extf %0 : vector<128x256xbf16> to vector<128x256xf32>
    %c0_1 = arith.constant 0 : index
    %c0_2 = arith.constant 0 : index
    %2 = vector.load %arg1[%c0_1, %c0_2] : memref<128x1xf32, #tpu.memory_space<vmem>>, vector<128x1xf32>
    %3 = vector.broadcast %2 : vector<128x1xf32> to vector<128x256xf32>
    %4 = arith.mulf %1, %3 : vector<128x256xf32>
    %c0_3 = arith.constant 0 : index
    %c0_4 = arith.constant 0 : index
    %5 = vector.load %arg2[%c0_3, %c0_4] : memref<128x1xf32, #tpu.memory_space<vmem>>, vector<128x1xf32>
    %6 = vector.broadcast %5 : vector<128x1xf32> to vector<128x256xf32>
    %7 = arith.addf %4, %6 : vector<128x256xf32>
    %cst = arith.constant 0.000000e+00 : f32
    %8 = vector.broadcast %cst : f32 to vector<128x256xf32>
    %9 = arith.cmpf oge, %7, %8 : vector<128x256xf32>
    %cst_5 = arith.constant 2.000000e-01 : f32
    %10 = vector.broadcast %cst_5 : f32 to vector<128x256xf32>
    %11 = arith.mulf %10, %7 : vector<128x256xf32>
    %12 = arith.select %9, %7, %11 : vector<128x256xi1>, vector<128x256xf32>
    %13 = arith.truncf %12 : vector<128x256xf32> to vector<128x256xbf16>
    %c0_6 = arith.constant 0 : index
    %c0_7 = arith.constant 0 : index
    %14 = vector.load %arg4[%c0_6, %c0_7] : memref<16x128xbf16, #tpu.memory_space<vmem>>, vector<16x128xbf16>
    %cst_8 = arith.constant dense<0.000000e+00> : vector<16x256xf32>
    %15 = tpu.matmul %14, %13, %cst_8 {dimension_numbers = #tpu.dot_dimension_numbers<[1], [0], [0], [1], [0, 0, 1, 1], [], []>} : vector<16x128xbf16>, vector<128x256xbf16>, vector<16x256xf32> -> vector<16x256xf32>
    %16 = arith.truncf %15 : vector<16x256xf32> to vector<16x256xbf16>
    %c0_9 = arith.constant 0 : index
    %c0_10 = arith.constant 0 : index
    %17 = vector.load %arg5[%c0_9, %c0_10] : memref<16x256xbf16, #tpu.memory_space<vmem>>, vector<16x256xbf16>
    tpu.vector_store %arg5[%c0_9, %c0_10], %16 {strides = array<i32>} : memref<16x256xbf16, #tpu.memory_space<vmem>>, vector<16x256xbf16>,
    %cst_11 = arith.constant dense<0.000000e+00> : vector<16xf32>
    %18 = vector.multi_reduction <add>, %15, %cst_11 [1] : vector<16x256xf32> to vector<16xf32>
    %19 = arith.mulf %15, %15 : vector<16x256xf32>
    %cst_12 = arith.constant dense<0.000000e+00> : vector<16xf32>
    %20 = vector.multi_reduction <add>, %19, %cst_12 [1] : vector<16x256xf32> to vector<16xf32>
    %21 = tpu.iota {dimensions = array<i32: 0>} : vector<8x16xi32>
    %c0_i32 = arith.constant 0 : i32
    %22 = vector.broadcast %c0_i32 : i32 to vector<8x16xi32>
    %23 = arith.cmpi eq, %21, %22 : vector<8x16xi32>
    %24 = vector.shape_cast %18 : vector<16xf32> to vector<1x16xf32>
    %c1_i32 = arith.constant 1 : i32
    %25 = vector.broadcast %c1_i32 : i32 to vector<8x16xi32>
    %26 = arith.cmpi eq, %21, %25 : vector<8x16xi32>
    %27 = vector.shape_cast %20 : vector<16xf32> to vector<1x16xf32>
    %cst_13 = arith.constant 0.000000e+00 : f32
    %28 = vector.shape_cast %27 : vector<1x16xf32> to vector<1x16xf32>
    %29 = vector.broadcast %28 : vector<1x16xf32> to vector<8x16xf32>
    %30 = vector.broadcast %cst_13 : f32 to vector<8x16xf32>
    %31 = arith.select %26, %29, %30 : vector<8x16xi1>, vector<8x16xf32>
    %32 = vector.shape_cast %24 : vector<1x16xf32> to vector<1x16xf32>
    %33 = vector.broadcast %32 : vector<1x16xf32> to vector<8x16xf32>
    %34 = arith.select %23, %33, %31 : vector<8x16xi1>, vector<8x16xf32>
    %c0_14 = arith.constant 0 : index
    %c0_15 = arith.constant 0 : index
    %35 = vector.load %arg6[%c0_14, %c0_15] : memref<8x16xf32, #tpu.memory_space<vmem>>, vector<8x16xf32>
    tpu.vector_store %arg6[%c0_14, %c0_15], %34 {strides = array<i32>} : memref<8x16xf32, #tpu.memory_space<vmem>>, vector<8x16xf32>,
    return
  }
  func.func @transform_0(%arg0: i32) -> (i32, i32) {
    %c0_i32 = arith.constant 0 : i32
    %c0_i32_0 = arith.constant 0 : i32
    %c0_i32_1 = arith.constant 0 : i32
    return %c0_i32, %c0_i32_0 : i32, i32
  }
  func.func @transform_1(%arg0: i32) -> (i32, i32) {
    %c0_i32 = arith.constant 0 : i32
    %c0_i32_0 = arith.constant 0 : i32
    %c0_i32_1 = arith.constant 0 : i32
    return %c0_i32, %c0_i32_0 : i32, i32
  }
  func.func @transform_2(%arg0: i32) -> (i32, i32) {
    %c0_i32 = arith.constant 0 : i32
    %c0_i32_0 = arith.constant 0 : i32
    return %c0_i32, %arg0 : i32, i32
  }
  func.func @transform_3(%arg0: i32) -> (i32, i32) {
    %c0_i32 = arith.constant 0 : i32
    %c0_i32_0 = arith.constant 0 : i32
    %c0_i32_1 = arith.constant 0 : i32
    return %c0_i32, %c0_i32_0 : i32, i32
  }
  func.func @transform_4(%arg0: i32) -> (i32, i32) {
    %c0_i32 = arith.constant 0 : i32
    %c0_i32_0 = arith.constant 0 : i32
    return %c0_i32, %arg0 : i32, i32
  }
  func.func @transform_5(%arg0: i32) -> (i32, i32) {
    %c0_i32 = arith.constant 0 : i32
    %c0_i32_0 = arith.constant 0 : i32
    return %arg0, %c0_i32 : i32, i32
  }
}

</mosaic_0001>

<llo_original>
// kernel: discriminator_forward.3
$region0: #{discriminator_forward.3}
  #allocation0 [shape = 'u32[]', space=smem, size = 0x4, offset = 0x4, fixed_abs, tag = 'smem constant byte address 0x4 - core index']
  #allocation1 [shape = 'u32[72,128]{1,0:T(1,128)}', space=vmem, size = 0x9000, scoped, tag = 'internal scratch']
  %s0 = inlined_call_operand.vmem [shape: bf16[48,32768], index: 0, kind: input, shape index: {}]
  %s1 = inlined_call_operand.vmem [shape: bf16[4,48], index: 1, kind: input, shape index: {}]
  %s2 = inlined_call_operand.vmem [shape: bf16[4,32768], index: 2, kind: output, shape index: {}]
  %s3 = sld [smem:[#allocation0]]
  $region64: #{discriminator_forward.3} parent=0
    _
  %s5 = ssub.s32 1, %s3
  %s6 = scalar_select 0, %s5, %s3
  $region1: #{discriminator_forward.3} parent=0
    #allocation2 [shape = 'u8[786432]{0}', space=vmem, size = 0xc0000, scoped, tag = 'input window, operand 0']
    loop: start=0, step=1, limit=10
    $region2: #{discriminator_forward.3} parent=1 // loop_pre_header
      _
    $region3: #{discriminator_forward.3} parent=1 // loop_header
      %s8 = sphi 0, %s12
      %p9 = scmp.ge.s32.totalorder %s8, 10
      %s18 = sphi 0, %s20
      %s21 = sphi 0, %s18
      %s22 = sphi 0, %s21
      %s38 = sphi 0, %s22
      %s42 = sphi 0, %s42
      %s44 = sphi 0, %s42
      %s45 = sphi 0, %s44
      %s59 = sphi 0, %s45
      %s65 = sphi 0, %s67
      %s68 = sphi 0, %s65
      %s69 = sphi 0, %s68
      %s85 = sphi 0, %s69
    $region4: #{discriminator_forward.3} parent=1 // loop_header_branch
      %11 = sbr.rel (%p9) target = $region8
    $region5: #{discriminator_forward.3} parent=1 // loop_body
      %s13 = ssub.s32 %s8, 1
      %s14 = ssub.s32 %s8, 2
      %s15 = sadd.s32 %s8, 1
      %s16 = ssub.s32 %s8, %s15
      %p17 = scmp.eq.s32.totalorder %s16, 0
      %s19 = sadd.s32 %s18, 1
      %s20 = scalar_select %p17, %s18, %s19
      %p23 = pneg %p17
      %p24 = scmp.eq.s32.totalorder %s8, 7
      %p25 = por %p23, %p24
      %p26 = scmp.ne.s32.totalorder %s18, %s21
      %p27 = scmp.eq.s32.totalorder %s8, 0
      %p28 = por %p26, %p27
      %p29 = scmp.ne.s32.totalorder %s18, %s21
      %p30 = scmp.eq.s32.totalorder %s13, 7
      %p31 = por %p29, %p30
      %p32 = scmp.ne.s32.totalorder %s21, %s22
      %p33 = scmp.eq.s32.totalorder %s13, 0
      %p34 = por %p32, %p33
      %p35 = scmp.ne.s32.totalorder %s21, %s22
      %p36 = scmp.eq.s32.totalorder %s14, 7
      %p37 = por %p35, %p36
      %p39 = scmp.ne.s32.totalorder %s22, %s38
      %p40 = scmp.eq.s32.totalorder %s14, 0
      %p41 = por %p39, %p40
      %s43 = sadd.s32 %s42, 1
      %p46 = scmp.eq.s32.totalorder %s8, 7
      %p47 = scmp.ne.s32.totalorder %s42, %s44
      %p48 = scmp.eq.s32.totalorder %s8, 0
      %p49 = por %p47, %p48
      %p50 = scmp.ne.s32.totalorder %s42, %s44
      %p51 = scmp.eq.s32.totalorder %s13, 7
      %p52 = por %p50, %p51
      %p53 = scmp.ne.s32.totalorder %s44, %s45
      %p54 = scmp.eq.s32.totalorder %s13, 0
      %p55 = por %p53, %p54
      %p56 = scmp.ne.s32.totalorder %s44, %s45
      %p57 = scmp.eq.s32.totalorder %s14, 7
      %p58 = por %p56, %p57
      %p60 = scmp.ne.s32.totalorder %s45, %s59
      %p61 = scmp.eq.s32.totalorder %s14, 0
      %p62 = por %p60, %p61
      %s63 = ssub.s32 %s8, %s15
      %p64 = scmp.eq.s32.totalorder %s63, 0
      %s66 = sadd.s32 %s65, 1
      %s67 = scalar_select %p64, %s65, %s66
      %p70 = pneg %p64
      %p71 = scmp.eq.s32.totalorder %s8, 7
      %p72 = por %p70, %p71
      %p73 = scmp.ne.s32.totalorder %s65, %s68
      %p74 = scmp.eq.s32.totalorder %s8, 0
      %p75 = por %p73, %p74
      %p76 = scmp.ne.s32.totalorder %s65, %s68
      %p77 = scmp.eq.s32.totalorder %s13, 7
      %p78 = por %p76, %p77
      %p79 = scmp.ne.s32.totalorder %s68, %s69
      %p80 = scmp.eq.s32.totalorder %s13, 0
      %p81 = por %p79, %p80
      %p82 = scmp.ne.s32.totalorder %s68, %s69
      %p83 = scmp.eq.s32.totalorder %s14, 7
      %p84 = por %p82, %p83
      %p86 = scmp.ne.s32.totalorder %s69, %s85
      %p87 = scmp.eq.s32.totalorder %s14, 0
      %p88 = por %p86, %p87
      %p89 = scmp.le.s32.totalorder 1, %s8
      %p90 = scmp.lt.s32.totalorder %s8, 9
      %p91 = pnand %p89, %p90
      %p92 = pneg %p91
      // Predicated region
      $region9: #{discriminator_forward.3} parent=5 // pred_check
        _
      $region10: #{discriminator_forward.3} parent=5 // pred_check_branch
        %94 = sbr.rel (%p91) target = $region12
      $region11: #{discriminator_forward.3} parent=5 // pred_region
        %s95 = ssub.s32 %s8, 1
        // Predicated region
        $region13: #{discriminator_forward.3} parent=11 // pred_check
          %p96 = pneg %p55
        $region14: #{discriminator_forward.3} parent=11 // pred_check_branch
          %98 = sbr.rel (%p96) target = $region16
        $region15: #{discriminator_forward.3} parent=11 // pred_region
          _
        $region16: #{discriminator_forward.3} parent=11 // pred_fallthru
          _
      $region12: #{discriminator_forward.3} parent=5 // pred_fallthru
        _
      %p99 = scmp.lt.s32.totalorder %s8, 8
      // Predicated region
      $region17: #{discriminator_forward.3} parent=5 // pred_check
        %p100 = pneg %p99
      $region18: #{discriminator_forward.3} parent=5 // pred_check_branch
        %102 = sbr.rel (%p100) target = $region20
      $region19: #{discriminator_forward.3} parent=5 // pred_region
        // Predicated region
        $region21: #{discriminator_forward.3} parent=19 // pred_check
          %p103 = pneg %p28
        $region22: #{discriminator_forward.3} parent=19 // pred_check_branch
          %105 = sbr.rel (%p103) target = $region24
        $region23: #{discriminator_forward.3} parent=19 // pred_region
          %s106 = sand.u32 %s18, 1
          %s107 = sand.u32 %s18, 1
          %s108 = smul.addr %s107, 768
          %s109 = scalar_lea.vmem [#allocation2], %s108
          %s110 = smul.u32 32, %s8
          %s111 = smul.addr %s110, 4
          %s112 = scalar_lea.vmem %s0, %s111
          // Predicated region
          $region25: #{discriminator_forward.3} parent=23 // pred_check
            _
          $region26: #{discriminator_forward.3} parent=23 // pred_check_branch
            %114 = sbr.rel (0) target = $region28
          $region27: #{discriminator_forward.3} parent=23 // pred_region
            // Predicated region
            $region29: #{discriminator_forward.3} parent=27 // pred_check
              _
            $region30: #{discriminator_forward.3} parent=27 // pred_check_branch
              %116 = sbr.rel (0) target = $region32
            $region31: #{discriminator_forward.3} parent=27 // pred_region
              loop: start=0, step=1, limit=1
              $region33: #{discriminator_forward.3} parent=31 // loop_pre_header
                _
              $region34: #{discriminator_forward.3} parent=31 // loop_header
                %s118 = sphi 0, %s122
                %p119 = scmp.ge.s32.totalorder %s118, 1
                %s123 = sphi %s112, %s112
                %s124 = sphi %s109, %s109
              $region35: #{discriminator_forward.3} parent=31 // loop_header_branch
                %121 = sbr.rel (%p119) target = $region39
              $region36: #{discriminator_forward.3} parent=31 // loop_body
                %v125 = vld [vmem:[%s123] sm:$0xff]
                %126 = vst [vmem:[%s124] sm:$0xff] %v125
                %v127 = vld [vmem:[%s123 + $0x8] sm:$0xff]
                %128 = vst [vmem:[%s124 + $0x8] sm:$0xff] %v127
                %v129 = vld [vmem:[%s123 + $0x10] sm:$0xff]
                %130 = vst [vmem:[%s124 + $0x10] sm:$0xff] %v129
                %v131 = vld [vmem:[%s123 + $0x18] sm:$0xff]
                %132 = vst [vmem:[%s124 + $0x18] sm:$0xff] %v131
                %v133 = vld [vmem:[%s123 + $0x20] sm:$0xff]
                %134 = vst [vmem:[%s124 + $0x20] sm:$0xff] %v133
                %v135 = vld [vmem:[%s123 + $0x28] sm:$0xff]
                %136 = vst [vmem:[%s124 + $0x28] sm:$0xff] %v135
                %v137 = vld [vmem:[%s123 + $0x30] sm:$0xff]
                %138 = vst [vmem:[%s124 + $0x30] sm:$0xff] %v137
                %v139 = vld [vmem:[%s123 + $0x38] sm:$0xff]
                %140 = vst [vmem:[%s124 + $0x38] sm:$0xff] %v139
                %v141 = vld [vmem:[%s123 + $0x40] sm:$0xff]
                %142 = vst [vmem:[%s124 + $0x40] sm:$0xff] %v141
                %v143 = vld [vmem:[%s123 + $0x48] sm:$0xff]
                %144 = vst [vmem:[%s124 + $0x48] sm:$0xff] %v143
                %v145 = vld [vmem:[%s123 + $0x50] sm:$0xff]
                %146 = vst [vmem:[%s124 + $0x50] sm:$0xff] %v145
                %v147 = vld [vmem:[%s123 + $0x58] sm:$0xff]
                %148 = vst [vmem:[%s124 + $0x58] sm:$0xff] %v147
                %v149 = vld [vmem:[%s123 + $0x60] sm:$0xff]
                %150 = vst [vmem:[%s124 + $0x60] sm:$0xff] %v149
                %v151 = vld [vmem:[%s123 + $0x68] sm:$0xff]
                %152 = vst [vmem:[%s124 + $0x68] sm:$0xff] %v151
                %v153 = vld [vmem:[%s123 + $0x70] sm:$0xff]
                %154 = vst [vmem:[%s124 + $0x70] sm:$0xff] %v153
                %v155 = vld [vmem:[%s123 + $0x78] sm:$0xff]
                %156 = vst [vmem:[%s124 + $0x78] sm:$0xff] %v155
                %v157 = vld [vmem:[%s123 + $0x400] sm:$0xff]
                %158 = vst [vmem:[%s124 + $0x80] sm:$0xff] %v157
                %v159 = vld [vmem:[%s123 + $0x408] sm:$0xff]
                %160 = vst [vmem:[%s124 + $0x88] sm:$0xff] %v159
                %v161 = vld [vmem:[%s123 + $0x410] sm:$0xff]
                %162 = vst [vmem:[%s124 + $0x90] sm:$0xff] %v161
                %v163 = vld [vmem:[%s123 + $0x418] sm:$0xff]
                %164 = vst [vmem:[%s124 + $0x98] sm:$0xff] %v163
                %v165 = vld [vmem:[%s123 + $0x420] sm:$0xff]
                %166 = vst [vmem:[%s124 + $0xa0] sm:$0xff] %v165
                %v167 = vld [vmem:[%s123 + $0x428] sm:$0xff]
                %168 = vst [vmem:[%s124 + $0xa8] sm:$0xff] %v167
                %v169 = vld [vmem:[%s123 + $0x430] sm:$0xff]
                %170 = vst [vmem:[%s124 + $0xb0] sm:$0xff] %v169
                %v171 = vld [vmem:[%s123 + $0x438] sm:$0xff]
                %172 = vst [vmem:[%s124 + $0xb8] sm:$0xff] %v171
                %v173 = vld [vmem:[%s123 + $0x440] sm:$0xff]
                %174 = vst [vmem:[%s124 + $0xc0] sm:$0xff] %v173
                %v175 = vld [vmem:[%s123 + $0x448] sm:$0xff]
                %176 = vst [vmem:[%s124 + $0xc8] sm:$0xff] %v175
                %v177 = vld [vmem:[%s123 + $0x450] sm:$0xff]
                %178 = vst [vmem:[%s124 + $0xd0] sm:$0xff] %v177
                %v179 = vld [vmem:[%s123 + $0x458] sm:$0xff]
                %180 = vst [vmem:[%s124 + $0xd8] sm:$0xff] %v179
                %v181 = vld [vmem:[%s123 + $0x460] sm:$0xff]
                %182 = vst [vmem:[%s124 + $0xe0] sm:$0xff] %v181
                %v183 = vld [vmem:[%s123 + $0x468] sm:$0xff]
                %184 = vst [vmem:[%s124 + $0xe8] sm:$0xff] %v183
                %v185 = vld [vmem:[%s123 + $0x470] sm:$0xff]
                %186 = vst [vmem:[%s124 + $0xf0] sm:$0xff] %v185
                %v187 = vld [vmem:[%s123 + $0x478] sm:$0xff]
                %188 = vst [vmem:[%s124 + $0xf8] sm:$0xff] %v187
                %v189 = vld [vmem:[%s123 + $0x800] sm:$0xff]
                %190 = vst [vmem:[%s124 + $0x100] sm:$0xff] %v189
                %v191 = vld [vmem:[%s123 + $0x808] sm:$0xff]
                %192 = vst [vmem:[%s124 + $0x108] sm:$0xff] %v191
                %v193 = vld [vmem:[%s123 + $0x810] sm:$0xff]
                %194 = vst [vmem:[%s124 + $0x110] sm:$0xff] %v193
                %v195 = vld [vmem:[%s123 + $0x818] sm:$0xff]
                %196 = vst [vmem:[%s124 + $0x118] sm:$0xff] %v195
                %v197 = vld [vmem:[%s123 + $0x820] sm:$0xff]
                %198 = vst [vmem:[%s124 + $0x120] sm:$0xff] %v197
                %v199 = vld [vmem:[%s123 + $0x828] sm:$0xff]
                %200 = vst [vmem:[%s124 + $0x128] sm:$0xff] %v199
                %v201 = vld [vmem:[%s123 + $0x830] sm:$0xff]
                %202 = vst [vmem:[%s124 + $0x130] sm:$0xff] %v201
                %v203 = vld [vmem:[%s123 + $0x838] sm:$0xff]
                %204 = vst [vmem:[%s124 + $0x138] sm:$0xff] %v203
                %v205 = vld [vmem:[%s123 + $0x840] sm:$0xff]
                %206 = vst [vmem:[%s124 + $0x140] sm:$0xff] %v205
                %v207 = vld [vmem:[%s123 + $0x848] sm:$0xff]
                %208 = vst [vmem:[%s124 + $0x148] sm:$0xff] %v207
                %v209 = vld [vmem:[%s123 + $0x850] sm:$0xff]
                %210 = vst [vmem:[%s124 + $0x150] sm:$0xff] %v209
                %v211 = vld [vmem:[%s123 + $0x858] sm:$0xff]
                %212 = vst [vmem:[%s124 + $0x158] sm:$0xff] %v211
                %v213 = vld [vmem:[%s123 + $0x860] sm:$0xff]
                %214 = vst [vmem:[%s124 + $0x160] sm:$0xff] %v213
                %v215 = vld [vmem:[%s123 + $0x868] sm:$0xff]
                %216 = vst [vmem:[%s124 + $0x168] sm:$0xff] %v215
                %v217 = vld [vmem:[%s123 + $0x870] sm:$0xff]
                %218 = vst [vmem:[%s124 + $0x170] sm:$0xff] %v217
                %v219 = vld [vmem:[%s123 + $0x878] sm:$0xff]
                %220 = vst [vmem:[%s124 + $0x178] sm:$0xff] %v219
                %v221 = vld [vmem:[%s123 + $0xc00] sm:$0xff]
                %222 = vst [vmem:[%s124 + $0x180] sm:$0xff] %v221
                %v223 = vld [vmem:[%s123 + $0xc08] sm:$0xff]
                %224 = vst [vmem:[%s124 + $0x188] sm:$0xff] %v223
                %v225 = vld [vmem:[%s123 + $0xc10] sm:$0xff]
                %226 = vst [vmem:[%s124 + $0x190] sm:$0xff] %v225
                %v227 = vld [vmem:[%s123 + $0xc18] sm:$0xff]
                %228 = vst [vmem:[%s124 + $0x198] sm:$0xff] %v227
                %v229 = vld [vmem:[%s123 + $0xc20] sm:$0xff]
                %230 = vst [vmem:[%s124 + $0x1a0] sm:$0xff] %v229
                %v231 = vld [vmem:[%s123 + $0xc28] sm:$0xff]
                %232 = vst [vmem:[%s124 + $0x1a8] sm:$0xff] %v231
                %v233 = vld [vmem:[%s123 + $0xc30] sm:$0xff]
                %234 = vst [vmem:[%s124 + $0x1b0] sm:$0xff] %v233
                %v235 = vld [vmem:[%s123 + $0xc38] sm:$0xff]
                %236 = vst [vmem:[%s124 + $0x1b8] sm:$0xff] %v235
                %v237 = vld [vmem:[%s123 + $0xc40] sm:$0xff]
                %238 = vst [vmem:[%s124 + $0x1c0] sm:$0xff] %v237
                %v239 = vld [vmem:[%s123 + $0xc48] sm:$0xff]
                %240 = vst [vmem:[%s124 + $0x1c8] sm:$0xff] %v239
                %v241 = vld [vmem:[%s123 + $0xc50] sm:$0xff]
                %242 = vst [vmem:[%s124 + $0x1d0] sm:$0xff] %v241
                %v243 = vld [vmem:[%s123 + $0xc58] sm:$0xff]
                %244 = vst [vmem:[%s124 + $0x1d8] sm:$0xff] %v243
                %v245 = vld [vmem:[%s123 + $0xc60] sm:$0xff]
                %246 = vst [vmem:[%s124 + $0x1e0] sm:$0xff] %v245
                %v247 = vld [vmem:[%s123 + $0xc68] sm:$0xff]
                %248 = vst [vmem:[%s124 + $0x1e8] sm:$0xff] %v247
                %v249 = vld [vmem:[%s123 + $0xc70] sm:$0xff]
                %250 = vst [vmem:[%s124 + $0x1f0] sm:$0xff] %v249
                %v251 = vld [vmem:[%s123 + $0xc78] sm:$0xff]
                %252 = vst [vmem:[%s124 + $0x1f8] sm:$0xff] %v251
                %v253 = vld [vmem:[%s123 + $0x1000] sm:$0xff]
                %254 = vst [vmem:[%s124 + $0x200] sm:$0xff] %v253
                %v255 = vld [vmem:[%s123 + $0x1008] sm:$0xff]
                %256 = vst [vmem:[%s124 + $0x208] sm:$0xff] %v255
                %v257 = vld [vmem:[%s123 + $0x1010] sm:$0xff]
                %258 = vst [vmem:[%s124 + $0x210] sm:$0xff] %v257
                %v259 = vld [vmem:[%s123 + $0x1018] sm:$0xff]
                %260 = vst [vmem:[%s124 + $0x218] sm:$0xff] %v259
                %v261 = vld [vmem:[%s123 + $0x1020] sm:$0xff]
                %262 = vst [vmem:[%s124 + $0x220] sm:$0xff] %v261
                %v263 = vld [vmem:[%s123 + $0x1028] sm:$0xff]
                %264 = vst [vmem:[%s124 + $0x228] sm:$0xff] %v263
                %v265 = vld [vmem:[%s123 + $0x1030] sm:$0xff]
                %266 = vst [vmem:[%s124 + $0x230] sm:$0xff] %v265
                %v267 = vld [vmem:[%s123 + $0x1038] sm:$0xff]
                %268 = vst [vmem:[%s124 + $0x238] sm:$0xff] %v267
                %v269 = vld [vmem:[%s123 + $0x1040] sm:$0xff]
                %270 = vst [vmem:[%s124 + $0x240] sm:$0xff] %v269
                %v271 = vld [vmem:[%s123 + $0x1048] sm:$0xff]
                %272 = vst [vmem:[%s124 + $0x248] sm:$0xff] %v271
                %v273 = vld [vmem:[%s123 + $0x1050] sm:$0xff]
                %274 = vst [vmem:[%s124 + $0x250] sm:$0xff] %v273
                %v275 = vld [vmem:[%s123 + $0x1058] sm:$0xff]
                %276 = vst [vmem:[%s124 + $0x258] sm:$0xff] %v275
                %v277 = vld [vmem:[%s123 + $0x1060] sm:$0xff]
                %278 = vst [vmem:[%s124 + $0x260] sm:$0xff] %v277
                %v279 = vld [vmem:[%s123 + $0x1068] sm:$0xff]
                %280 = vst [vmem:[%s124 + $0x268] sm:$0xff] %v279
                %v281 = vld [vmem:[%s123 + $0x1070] sm:$0xff]
                %282 = vst [vmem:[%s124 + $0x270] sm:$0xff] %v281
                %v283 = vld [vmem:[%s123 + $0x1078] sm:$0xff]
                %284 = vst [vmem:[%s124 + $0x278] sm:$0xff] %v283
                %v285 = vld [vmem:[%s123 + $0x1400] sm:$0xff]
                %286 = vst [vmem:[%s124 + $0x280] sm:$0xff] %v285
                %v287 = vld [vmem:[%s123 + $0x1408] sm:$0xff]
                %288 = vst [vmem:[%s124 + $0x288] sm:$0xff] %v287
                %v289 = vld [vmem:[%s123 + $0x1410] sm:$0xff]
                %290 = vst [vmem:[%s124 + $0x290] sm:$0xff] %v289
                %v291 = vld [vmem:[%s123 + $0x1418] sm:$0xff]
                %292 = vst [vmem:[%s124 + $0x298] sm:$0xff] %v291
                %v293 = vld [vmem:[%s123 + $0x1420] sm:$0xff]
                %294 = vst [vmem:[%s124 + $0x2a0] sm:$0xff] %v293
                %v295 = vld [vmem:[%s123 + $0x1428] sm:$0xff]
                %296 = vst [vmem:[%s124 + $0x2a8] sm:$0xff] %v295
                %v297 = vld [vmem:[%s123 + $0x1430] sm:$0xff]
                %298 = vst [vmem:[%s124 + $0x2b0] sm:$0xff] %v297
                %v299 = vld [vmem:[%s123 + $0x1438] sm:$0xff]
                %300 = vst [vmem:[%s124 + $0x2b8] sm:$0xff] %v299
                %v301 = vld [vmem:[%s123 + $0x1440] sm:$0xff]
                %302 = vst [vmem:[%s124 + $0x2c0] sm:$0xff] %v301
                %v303 = vld [vmem:[%s123 + $0x1448] sm:$0xff]
                %304 = vst [vmem:[%s124 + $0x2c8] sm:$0xff] %v303
                %v305 = vld [vmem:[%s123 + $0x1450] sm:$0xff]
                %306 = vst [vmem:[%s124 + $0x2d0] sm:$0xff] %v305
                %v307 = vld [vmem:[%s123 + $0x1458] sm:$0xff]
                %308 = vst [vmem:[%s124 + $0x2d8] sm:$0xff] %v307
                %v309 = vld [vmem:[%s123 + $0x1460] sm:$0xff]
                %310 = vst [vmem:[%s124 + $0x2e0] sm:$0xff] %v309
                %v311 = vld [vmem:[%s123 + $0x1468] sm:$0xff]
                %312 = vst [vmem:[%s124 + $0x2e8] sm:$0xff] %v311
                %v313 = vld [vmem:[%s123 + $0x1470] sm:$0xff]
                %314 = vst [vmem:[%s124 + $0x2f0] sm:$0xff] %v313
                %v315 = vld [vmem:[%s123 + $0x1478] sm:$0xff]
                %316 = vst [vmem:[%s124 + $0x2f8] sm:$0xff] %v315
              $region37: #{discriminator_forward.3} parent=31 // loop_footer
                %s122 = sadd.s32 1, %s118
              $region38: #{discriminator_forward.3} parent=31 // loop_footer_branch
                %117 = sbr.rel target = $region34
              $region39: #{discriminator_forward.3} parent=31 // loop_exit
                _
            $region32: #{discriminator_forward.3} parent=27 // pred_fallthru
              _
            // Predicated region
            $region40: #{discriminator_forward.3} parent=27 // pred_check
              _
            $region41: #{discriminator_forward.3} parent=27 // pred_check_branch
              %318 = sbr.rel target = $region43
            $region42: #{discriminator_forward.3} parent=27 // pred_region
              _
            $region43: #{discriminator_forward.3} parent=27 // pred_fallthru
              _
          $region28: #{discriminator_forward.3} parent=23 // pred_fallthru
            _
          %319 = vnop
        $region24: #{discriminator_forward.3} parent=19 // pred_fallthru
          _
      $region20: #{discriminator_forward.3} parent=5 // pred_fallthru
        _
      %p320 = scmp.le.s32.totalorder 1, %s8
      %p321 = scmp.lt.s32.totalorder %s8, 9
      %p322 = pnand %p320, %p321
      %p323 = pneg %p322
      // Predicated region
      $region44: #{discriminator_forward.3} parent=5 // pred_check
        _
      $region45: #{discriminator_forward.3} parent=5 // pred_check_branch
        %325 = sbr.rel (%p322) target = $region47
      $region46: #{discriminator_forward.3} parent=5 // pred_region
        %s326 = ssub.s32 %s8, 1
        %s327 = sand.u32 %s21, 1
        %s328 = sand.u32 %s21, 1
        %s329 = smul.addr %s328, 768
        %s330 = scalar_lea.vmem [#allocation2], %s329
        // Predicated region
        $region48: #{discriminator_forward.3} parent=46 // pred_check
          %p331 = pneg %p34
        $region49: #{discriminator_forward.3} parent=46 // pred_check_branch
          %333 = sbr.rel (%p331) target = $region51
        $region50: #{discriminator_forward.3} parent=46 // pred_region
          _
        $region51: #{discriminator_forward.3} parent=46 // pred_fallthru
          _
        %s334 = sand.u32 %s21, 1
        %s335 = sand.u32 %s21, 1
        %s336 = smul.addr %s335, 768
        %s337 = scalar_lea.vmem [#allocation2], %s336
        %p338 = pneg %p34
        %p339 = pneg %p31
        %p340 = pneg %p55
        %p341 = pneg %p52
        %p342 = pneg %p81
        %p343 = pneg %p78
        %s344 = smul.u32 32, %s13
        %p345 = scmp.lt.s32.totalorder %s344, 255
        %s346 = scalar_select %p345, %s344, 255
        %s347 = smul.addr %s346, 2
        %s348 = scalar_lea.vmem %s2, %s347
        %s349 = smul.u32 32, %s13
        %s350 = smul.u32 32, %s13
        %p351 = scmp.lt.s32.totalorder %s350, 255
        %s352 = scalar_select %p351, %s350, 255
        %s353 = smul.addr %s352, 2
        %s354 = scalar_lea.vmem %s2, %s353
        %s355 = smul.u32 32, %s13
        %v357 = vld [vmem:[%s330] sm:$0xff]
        %v358 = vld [vmem:[%s330 + $0x8] sm:$0xff]
        %v359 = vld [vmem:[%s330 + $0x10] sm:$0xff]
        %v360 = vld [vmem:[%s330 + $0x18] sm:$0xff]
        %v361 = vld [vmem:[%s330 + $0x20] sm:$0xff]
        %v362 = vld [vmem:[%s330 + $0x28] sm:$0xff]
        %v363 = vld [vmem:[%s330 + $0x30] sm:$0xff]
        %v364 = vld [vmem:[%s330 + $0x38] sm:$0xff]
        %v365 = vld [vmem:[%s330 + $0x40] sm:$0xff]
        %v366 = vld [vmem:[%s330 + $0x48] sm:$0xff]
        %v367 = vld [vmem:[%s330 + $0x50] sm:$0xff]
        %v368 = vld [vmem:[%s330 + $0x58] sm:$0xff]
        %v369 = vld [vmem:[%s330 + $0x60] sm:$0xff]
        %v370 = vld [vmem:[%s330 + $0x68] sm:$0xff]
        %v371 = vld [vmem:[%s330 + $0x70] sm:$0xff]
        %v372 = vld [vmem:[%s330 + $0x78] sm:$0xff]
        %v373 = vld [vmem:[%s330 + $0x80] sm:$0xff]
        %v374 = vld [vmem:[%s330 + $0x88] sm:$0xff]
        %v375 = vld [vmem:[%s330 + $0x90] sm:$0xff]
        %v376 = vld [vmem:[%s330 + $0x98] sm:$0xff]
        %v377 = vld [vmem:[%s330 + $0xa0] sm:$0xff]
        %v378 = vld [vmem:[%s330 + $0xa8] sm:$0xff]
        %v379 = vld [vmem:[%s330 + $0xb0] sm:$0xff]
        %v380 = vld [vmem:[%s330 + $0xb8] sm:$0xff]
        %v381 = vld [vmem:[%s330 + $0xc0] sm:$0xff]
        %v382 = vld [vmem:[%s330 + $0xc8] sm:$0xff]
        %v383 = vld [vmem:[%s330 + $0xd0] sm:$0xff]
        %v384 = vld [vmem:[%s330 + $0xd8] sm:$0xff]
        %v385 = vld [vmem:[%s330 + $0xe0] sm:$0xff]
        %v386 = vld [vmem:[%s330 + $0xe8] sm:$0xff]
        %v387 = vld [vmem:[%s330 + $0xf0] sm:$0xff]
        %v388 = vld [vmem:[%s330 + $0xf8] sm:$0xff]
        %v389 = vld [vmem:[%s330 + $0x100] sm:$0xff]
        %v390 = vld [vmem:[%s330 + $0x108] sm:$0xff]
        %v391 = vld [vmem:[%s330 + $0x110] sm:$0xff]
        %v392 = vld [vmem:[%s330 + $0x118] sm:$0xff]
        %v393 = vld [vmem:[%s330 + $0x120] sm:$0xff]
        %v394 = vld [vmem:[%s330 + $0x128] sm:$0xff]
        %v395 = vld [vmem:[%s330 + $0x130] sm:$0xff]
        %v396 = vld [vmem:[%s330 + $0x138] sm:$0xff]
        %v397 = vld [vmem:[%s330 + $0x140] sm:$0xff]
        %v398 = vld [vmem:[%s330 + $0x148] sm:$0xff]
        %v399 = vld [vmem:[%s330 + $0x150] sm:$0xff]
        %v400 = vld [vmem:[%s330 + $0x158] sm:$0xff]
        %v401 = vld [vmem:[%s330 + $0x160] sm:$0xff]
        %v402 = vld [vmem:[%s330 + $0x168] sm:$0xff]
        %v403 = vld [vmem:[%s330 + $0x170] sm:$0xff]
        %v404 = vld [vmem:[%s330 + $0x178] sm:$0xff]
        %v405 = vld [vmem:[%s330 + $0x180] sm:$0xff]
        %v406 = vld [vmem:[%s330 + $0x188] sm:$0xff]
        %v407 = vld [vmem:[%s330 + $0x190] sm:$0xff]
        %v408 = vld [vmem:[%s330 + $0x198] sm:$0xff]
        %v409 = vld [vmem:[%s330 + $0x1a0] sm:$0xff]
        %v410 = vld [vmem:[%s330 + $0x1a8] sm:$0xff]
        %v411 = vld [vmem:[%s330 + $0x1b0] sm:$0xff]
        %v412 = vld [vmem:[%s330 + $0x1b8] sm:$0xff]
        %v413 = vld [vmem:[%s330 + $0x1c0] sm:$0xff]
        %v414 = vld [vmem:[%s330 + $0x1c8] sm:$0xff]
        %v415 = vld [vmem:[%s330 + $0x1d0] sm:$0xff]
        %v416 = vld [vmem:[%s330 + $0x1d8] sm:$0xff]
        %v417 = vld [vmem:[%s330 + $0x1e0] sm:$0xff]
        %v418 = vld [vmem:[%s330 + $0x1e8] sm:$0xff]
        %v419 = vld [vmem:[%s330 + $0x1f0] sm:$0xff]
        %v420 = vld [vmem:[%s330 + $0x1f8] sm:$0xff]
        %v421 = vld [vmem:[%s330 + $0x200] sm:$0xff]
        %v422 = vld [vmem:[%s330 + $0x208] sm:$0xff]
        %v423 = vld [vmem:[%s330 + $0x210] sm:$0xff]
        %v424 = vld [vmem:[%s330 + $0x218] sm:$0xff]
        %v425 = vld [vmem:[%s330 + $0x220] sm:$0xff]
        %v426 = vld [vmem:[%s330 + $0x228] sm:$0xff]
        %v427 = vld [vmem:[%s330 + $0x230] sm:$0xff]
        %v428 = vld [vmem:[%s330 + $0x238] sm:$0xff]
        %v429 = vld [vmem:[%s330 + $0x240] sm:$0xff]
        %v430 = vld [vmem:[%s330 + $0x248] sm:$0xff]
        %v431 = vld [vmem:[%s330 + $0x250] sm:$0xff]
        %v432 = vld [vmem:[%s330 + $0x258] sm:$0xff]
        %v433 = vld [vmem:[%s330 + $0x260] sm:$0xff]
        %v434 = vld [vmem:[%s330 + $0x268] sm:$0xff]
        %v435 = vld [vmem:[%s330 + $0x270] sm:$0xff]
        %v436 = vld [vmem:[%s330 + $0x278] sm:$0xff]
        %v437 = vld [vmem:[%s330 + $0x280] sm:$0xff]
        %v438 = vld [vmem:[%s330 + $0x288] sm:$0xff]
        %v439 = vld [vmem:[%s330 + $0x290] sm:$0xff]
        %v440 = vld [vmem:[%s330 + $0x298] sm:$0xff]
        %v441 = vld [vmem:[%s330 + $0x2a0] sm:$0xff]
        %v442 = vld [vmem:[%s330 + $0x2a8] sm:$0xff]
        %v443 = vld [vmem:[%s330 + $0x2b0] sm:$0xff]
        %v444 = vld [vmem:[%s330 + $0x2b8] sm:$0xff]
        %v445 = vld [vmem:[%s330 + $0x2c0] sm:$0xff]
        %v446 = vld [vmem:[%s330 + $0x2c8] sm:$0xff]
        %v447 = vld [vmem:[%s330 + $0x2d0] sm:$0xff]
        %v448 = vld [vmem:[%s330 + $0x2d8] sm:$0xff]
        %v449 = vld [vmem:[%s330 + $0x2e0] sm:$0xff]
        %v450 = vld [vmem:[%s330 + $0x2e8] sm:$0xff]
        %v451 = vld [vmem:[%s330 + $0x2f0] sm:$0xff]
        %v452 = vld [vmem:[%s330 + $0x2f8] sm:$0xff]
        %v453 = vld [vmem:[%s1] sm:$0x3]
        %v550 = vunpack.c.l.b16 %v357
        %v551 = vunpack.c.h.b16 %v357
        %v552 = vunpack.c.l.b16 %v358
        %v553 = vunpack.c.h.b16 %v358
        %v554 = vunpack.c.l.b16 %v359
        %v555 = vunpack.c.h.b16 %v359
        %v556 = vunpack.c.l.b16 %v360
        %v557 = vunpack.c.h.b16 %v360
        %v558 = vunpack.c.l.b16 %v361
        %v559 = vunpack.c.h.b16 %v361
        %v560 = vunpack.c.l.b16 %v362
        %v561 = vunpack.c.h.b16 %v362
        %v562 = vunpack.c.l.b16 %v363
        %v563 = vunpack.c.h.b16 %v363
        %v564 = vunpack.c.l.b16 %v364
        %v565 = vunpack.c.h.b16 %v364
        %v566 = vunpack.c.l.b16 %v365
        %v567 = vunpack.c.h.b16 %v365
        %v568 = vunpack.c.l.b16 %v366
        %v569 = vunpack.c.h.b16 %v366
        %v570 = vunpack.c.l.b16 %v367
        %v571 = vunpack.c.h.b16 %v367
        %v572 = vunpack.c.l.b16 %v368
        %v573 = vunpack.c.h.b16 %v368
        %v574 = vunpack.c.l.b16 %v369
        %v575 = vunpack.c.h.b16 %v369
        %v576 = vunpack.c.l.b16 %v370
        %v577 = vunpack.c.h.b16 %v370
        %v578 = vunpack.c.l.b16 %v371
        %v579 = vunpack.c.h.b16 %v371
        %v580 = vunpack.c.l.b16 %v372
        %v581 = vunpack.c.h.b16 %v372
        %v582 = vunpack.c.l.b16 %v373
        %v583 = vunpack.c.h.b16 %v373
        %v584 = vunpack.c.l.b16 %v374
        %v585 = vunpack.c.h.b16 %v374
        %v586 = vunpack.c.l.b16 %v375
        %v587 = vunpack.c.h.b16 %v375
        %v588 = vunpack.c.l.b16 %v376
        %v589 = vunpack.c.h.b16 %v376
        %v590 = vunpack.c.l.b16 %v377
        %v591 = vunpack.c.h.b16 %v377
        %v592 = vunpack.c.l.b16 %v378
        %v593 = vunpack.c.h.b16 %v378
        %v594 = vunpack.c.l.b16 %v379
        %v595 = vunpack.c.h.b16 %v379
        %v596 = vunpack.c.l.b16 %v380
        %v597 = vunpack.c.h.b16 %v380
        %v598 = vunpack.c.l.b16 %v381
        %v599 = vunpack.c.h.b16 %v381
        %v600 = vunpack.c.l.b16 %v382
        %v601 = vunpack.c.h.b16 %v382
        %v602 = vunpack.c.l.b16 %v383
        %v603 = vunpack.c.h.b16 %v383
        %v604 = vunpack.c.l.b16 %v384
        %v605 = vunpack.c.h.b16 %v384
        %v606 = vunpack.c.l.b16 %v385
        %v607 = vunpack.c.h.b16 %v385
        %v608 = vunpack.c.l.b16 %v386
        %v609 = vunpack.c.h.b16 %v386
        %v610 = vunpack.c.l.b16 %v387
        %v611 = vunpack.c.h.b16 %v387
        %v612 = vunpack.c.l.b16 %v388
        %v613 = vunpack.c.h.b16 %v388
        %v614 = vunpack.c.l.b16 %v389
        %v615 = vunpack.c.h.b16 %v389
        %v616 = vunpack.c.l.b16 %v390
        %v617 = vunpack.c.h.b16 %v390
        %v618 = vunpack.c.l.b16 %v391
        %v619 = vunpack.c.h.b16 %v391
        %v620 = vunpack.c.l.b16 %v392
        %v621 = vunpack.c.h.b16 %v392
        %v622 = vunpack.c.l.b16 %v393
        %v623 = vunpack.c.h.b16 %v393
        %v624 = vunpack.c.l.b16 %v394
        %v625 = vunpack.c.h.b16 %v394
        %v626 = vunpack.c.l.b16 %v395
        %v627 = vunpack.c.h.b16 %v395
        %v628 = vunpack.c.l.b16 %v396
        %v629 = vunpack.c.h.b16 %v396
        %v630 = vunpack.c.l.b16 %v397
        %v631 = vunpack.c.h.b16 %v397
        %v632 = vunpack.c.l.b16 %v398
        %v633 = vunpack.c.h.b16 %v398
        %v634 = vunpack.c.l.b16 %v399
        %v635 = vunpack.c.h.b16 %v399
        %v636 = vunpack.c.l.b16 %v400
        %v637 = vunpack.c.h.b16 %v400
        %v638 = vunpack.c.l.b16 %v401
        %v639 = vunpack.c.h.b16 %v401
        %v640 = vunpack.c.l.b16 %v402
        %v641 = vunpack.c.h.b16 %v402
        %v642 = vunpack.c.l.b16 %v403
        %v643 = vunpack.c.h.b16 %v403
        %v644 = vunpack.c.l.b16 %v404
        %v645 = vunpack.c.h.b16 %v404
        %v646 = vunpack.c.l.b16 %v405
        %v647 = vunpack.c.h.b16 %v405
        %v648 = vunpack.c.l.b16 %v406
        %v649 = vunpack.c.h.b16 %v406
        %v650 = vunpack.c.l.b16 %v407
        %v651 = vunpack.c.h.b16 %v407
        %v652 = vunpack.c.l.b16 %v408
        %v653 = vunpack.c.h.b16 %v408
        %v654 = vunpack.c.l.b16 %v409
        %v655 = vunpack.c.h.b16 %v409
        %v656 = vunpack.c.l.b16 %v410
        %v657 = vunpack.c.h.b16 %v410
        %v658 = vunpack.c.l.b16 %v411
        %v659 = vunpack.c.h.b16 %v411
        %v660 = vunpack.c.l.b16 %v412
        %v661 = vunpack.c.h.b16 %v412
        %v662 = vunpack.c.l.b16 %v413
        %v663 = vunpack.c.h.b16 %v413
        %v664 = vunpack.c.l.b16 %v414
        %v665 = vunpack.c.h.b16 %v414
        %v666 = vunpack.c.l.b16 %v415
        %v667 = vunpack.c.h.b16 %v415
        %v668 = vunpack.c.l.b16 %v416
        %v669 = vunpack.c.h.b16 %v416
        %v670 = vunpack.c.l.b16 %v417
        %v671 = vunpack.c.h.b16 %v417
        %v672 = vunpack.c.l.b16 %v418
        %v673 = vunpack.c.h.b16 %v418
        %v674 = vunpack.c.l.b16 %v419
        %v675 = vunpack.c.h.b16 %v419
        %v676 = vunpack.c.l.b16 %v420
        %v677 = vunpack.c.h.b16 %v420
        %v678 = vunpack.c.l.b16 %v421
        %v679 = vunpack.c.h.b16 %v421
        %v680 = vunpack.c.l.b16 %v422
        %v681 = vunpack.c.h.b16 %v422
        %v682 = vunpack.c.l.b16 %v423
        %v683 = vunpack.c.h.b16 %v423
        %v684 = vunpack.c.l.b16 %v424
        %v685 = vunpack.c.h.b16 %v424
        %v686 = vunpack.c.l.b16 %v425
        %v687 = vunpack.c.h.b16 %v425
        %v688 = vunpack.c.l.b16 %v426
        %v689 = vunpack.c.h.b16 %v426
        %v690 = vunpack.c.l.b16 %v427
        %v691 = vunpack.c.h.b16 %v427
        %v692 = vunpack.c.l.b16 %v428
        %v693 = vunpack.c.h.b16 %v428
        %v694 = vunpack.c.l.b16 %v429
        %v695 = vunpack.c.h.b16 %v429
        %v696 = vunpack.c.l.b16 %v430
        %v697 = vunpack.c.h.b16 %v430
        %v698 = vunpack.c.l.b16 %v431
        %v699 = vunpack.c.h.b16 %v431
        %v700 = vunpack.c.l.b16 %v432
        %v701 = vunpack.c.h.b16 %v432
        %v702 = vunpack.c.l.b16 %v433
        %v703 = vunpack.c.h.b16 %v433
        %v704 = vunpack.c.l.b16 %v434
        %v705 = vunpack.c.h.b16 %v434
        %v706 = vunpack.c.l.b16 %v435
        %v707 = vunpack.c.h.b16 %v435
        %v708 = vunpack.c.l.b16 %v436
        %v709 = vunpack.c.h.b16 %v436
        %v710 = vunpack.c.l.b16 %v437
        %v711 = vunpack.c.h.b16 %v437
        %v712 = vunpack.c.l.b16 %v438
        %v713 = vunpack.c.h.b16 %v438
        %v714 = vunpack.c.l.b16 %v439
        %v715 = vunpack.c.h.b16 %v439
        %v716 = vunpack.c.l.b16 %v440
        %v717 = vunpack.c.h.b16 %v440
        %v718 = vunpack.c.l.b16 %v441
        %v719 = vunpack.c.h.b16 %v441
        %v720 = vunpack.c.l.b16 %v442
        %v721 = vunpack.c.h.b16 %v442
        %v722 = vunpack.c.l.b16 %v443
        %v723 = vunpack.c.h.b16 %v443
        %v724 = vunpack.c.l.b16 %v444
        %v725 = vunpack.c.h.b16 %v444
        %v726 = vunpack.c.l.b16 %v445
        %v727 = vunpack.c.h.b16 %v445
        %v728 = vunpack.c.l.b16 %v446
        %v729 = vunpack.c.h.b16 %v446
        %v730 = vunpack.c.l.b16 %v447
        %v731 = vunpack.c.h.b16 %v447
        %v732 = vunpack.c.l.b16 %v448
        %v733 = vunpack.c.h.b16 %v448
        %v734 = vunpack.c.l.b16 %v449
        %v735 = vunpack.c.h.b16 %v449
        %v736 = vunpack.c.l.b16 %v450
        %v737 = vunpack.c.h.b16 %v450
        %v738 = vunpack.c.l.b16 %v451
        %v739 = vunpack.c.h.b16 %v451
        %v740 = vunpack.c.l.b16 %v452
        %v741 = vunpack.c.h.b16 %v452
        %v742 = vpack.c.b16 %v582, %v550
        %v743 = vpack.c.b16 %v583, %v551
        %v744 = vpack.c.b16 %v584, %v552
        %v745 = vpack.c.b16 %v585, %v553
        %v746 = vpack.c.b16 %v586, %v554
        %v747 = vpack.c.b16 %v587, %v555
        %v748 = vpack.c.b16 %v588, %v556
        %v749 = vpack.c.b16 %v589, %v557
        %v750 = vpack.c.b16 %v590, %v558
        %v751 = vpack.c.b16 %v591, %v559
        %v752 = vpack.c.b16 %v592, %v560
        %v753 = vpack.c.b16 %v593, %v561
        %v754 = vpack.c.b16 %v594, %v562
        %v755 = vpack.c.b16 %v595, %v563
        %v756 = vpack.c.b16 %v596, %v564
        %v757 = vpack.c.b16 %v597, %v565
        %v758 = vpack.c.b16 %v598, %v566
        %v759 = vpack.c.b16 %v599, %v567
        %v760 = vpack.c.b16 %v600, %v568
        %v761 = vpack.c.b16 %v601, %v569
        %v762 = vpack.c.b16 %v602, %v570
        %v763 = vpack.c.b16 %v603, %v571
        %v764 = vpack.c.b16 %v604, %v572
        %v765 = vpack.c.b16 %v605, %v573
        %v766 = vpack.c.b16 %v606, %v574
        %v767 = vpack.c.b16 %v607, %v575
        %v768 = vpack.c.b16 %v608, %v576
        %v769 = vpack.c.b16 %v609, %v577
        %v770 = vpack.c.b16 %v610, %v578
        %v771 = vpack.c.b16 %v611, %v579
        %v772 = vpack.c.b16 %v612, %v580
        %v773 = vpack.c.b16 %v613, %v581
        %v774 = vpack.c.b16 %v646, %v614
        %v775 = vpack.c.b16 %v647, %v615
        %v776 = vpack.c.b16 %v648, %v616
        %v777 = vpack.c.b16 %v649, %v617
        %v778 = vpack.c.b16 %v650, %v618
        %v779 = vpack.c.b16 %v651, %v619
        %v780 = vpack.c.b16 %v652, %v620
        %v781 = vpack.c.b16 %v653, %v621
        %v782 = vpack.c.b16 %v654, %v622
        %v783 = vpack.c.b16 %v655, %v623
        %v784 = vpack.c.b16 %v656, %v624
        %v785 = vpack.c.b16 %v657, %v625
        %v786 = vpack.c.b16 %v658, %v626
        %v787 = vpack.c.b16 %v659, %v627
        %v788 = vpack.c.b16 %v660, %v628
        %v789 = vpack.c.b16 %v661, %v629
        %v790 = vpack.c.b16 %v662, %v630
        %v791 = vpack.c.b16 %v663, %v631
        %v792 = vpack.c.b16 %v664, %v632
        %v793 = vpack.c.b16 %v665, %v633
        %v794 = vpack.c.b16 %v666, %v634
        %v795 = vpack.c.b16 %v667, %v635
        %v796 = vpack.c.b16 %v668, %v636
        %v797 = vpack.c.b16 %v669, %v637
        %v798 = vpack.c.b16 %v670, %v638
        %v799 = vpack.c.b16 %v671, %v639
        %v800 = vpack.c.b16 %v672, %v640
        %v801 = vpack.c.b16 %v673, %v641
        %v802 = vpack.c.b16 %v674, %v642
        %v803 = vpack.c.b16 %v675, %v643
        %v804 = vpack.c.b16 %v676, %v644
        %v805 = vpack.c.b16 %v677, %v645
        %v806 = vpack.c.b16 %v710, %v678
        %v807 = vpack.c.b16 %v711, %v679
        %v808 = vpack.c.b16 %v712, %v680
        %v809 = vpack.c.b16 %v713, %v681
        %v810 = vpack.c.b16 %v714, %v682
        %v811 = vpack.c.b16 %v715, %v683
        %v812 = vpack.c.b16 %v716, %v684
        %v813 = vpack.c.b16 %v717, %v685
        %v814 = vpack.c.b16 %v718, %v686
        %v815 = vpack.c.b16 %v719, %v687
        %v816 = vpack.c.b16 %v720, %v688
        %v817 = vpack.c.b16 %v721, %v689
        %v818 = vpack.c.b16 %v722, %v690
        %v819 = vpack.c.b16 %v723, %v691
        %v820 = vpack.c.b16 %v724, %v692
        %v821 = vpack.c.b16 %v725, %v693
        %v822 = vpack.c.b16 %v726, %v694
        %v823 = vpack.c.b16 %v727, %v695
        %v824 = vpack.c.b16 %v728, %v696
        %v825 = vpack.c.b16 %v729, %v697
        %v826 = vpack.c.b16 %v730, %v698
        %v827 = vpack.c.b16 %v731, %v699
        %v828 = vpack.c.b16 %v732, %v700
        %v829 = vpack.c.b16 %v733, %v701
        %v830 = vpack.c.b16 %v734, %v702
        %v831 = vpack.c.b16 %v735, %v703
        %v832 = vpack.c.b16 %v736, %v704
        %v833 = vpack.c.b16 %v737, %v705
        %v834 = vpack.c.b16 %v738, %v706
        %v835 = vpack.c.b16 %v739, %v707
        %v836 = vpack.c.b16 %v740, %v708
        %v837 = vpack.c.b16 %v741, %v709
        %vm934 = vcmask 392192
        %v936 = vsel %vm934, %v453, 0
        %938 = vmatpush.bf16.msra.mxu0 0
        %939 = vmatpush.bf16.msra.mxu0 0
        %940 = vmatpush.bf16.msra.mxu0 0
        %941 = vmatpush.bf16.msra.mxu0 0
        %942 = vmatpush.bf16.msra.mxu0 0
        %943 = vmatpush.bf16.msra.mxu0 %v806
        %944 = vmatpush.bf16.msra.mxu0 %v774
        %945 = vmatpush.bf16.msra.mxu0 %v742
        %946 = vmatmul.bf16.gmra.mxu0 %v936
        %v947 = vpop.f32.mrf.mxu0
        %v948 = vadd.f32 0.0, %v947
        %v949 = vpop.f32.mrf.mxu0
        %950 = vdwg.mxu0
        %951 = vmatpush.bf16.msra.mxu0 0
        %952 = vmatpush.bf16.msra.mxu0 0
        %953 = vmatpush.bf16.msra.mxu0 0
        %954 = vmatpush.bf16.msra.mxu0 0
        %955 = vmatpush.bf16.msra.mxu0 0
        %956 = vmatpush.bf16.msra.mxu0 %v807
        %957 = vmatpush.bf16.msra.mxu0 %v775
        %958 = vmatpush.bf16.msra.mxu0 %v743
        %959 = vmatmul.bf16.gmra.mxu0 %v936
        %v960 = vpop.f32.mrf.mxu0
        %v961 = vadd.f32 0.0, %v960
        %v962 = vpop.f32.mrf.mxu0
        %963 = vdwg.mxu0
        %964 = vmatpush.bf16.msra.mxu0 0
        %965 = vmatpush.bf16.msra.mxu0 0
        %966 = vmatpush.bf16.msra.mxu0 0
        %967 = vmatpush.bf16.msra.mxu0 0
        %968 = vmatpush.bf16.msra.mxu0 0
        %969 = vmatpush.bf16.msra.mxu0 %v808
        %970 = vmatpush.bf16.msra.mxu0 %v776
        %971 = vmatpush.bf16.msra.mxu0 %v744
        %972 = vmatmul.bf16.gmra.mxu0 %v936
        %v973 = vpop.f32.mrf.mxu0
        %v974 = vadd.f32 0.0, %v973
        %v975 = vpop.f32.mrf.mxu0
        %976 = vdwg.mxu0
        %977 = vmatpush.bf16.msra.mxu0 0
        %978 = vmatpush.bf16.msra.mxu0 0
        %979 = vmatpush.bf16.msra.mxu0 0
        %980 = vmatpush.bf16.msra.mxu0 0
        %981 = vmatpush.bf16.msra.mxu0 0
        %982 = vmatpush.bf16.msra.mxu0 %v809
        %983 = vmatpush.bf16.msra.mxu0 %v777
        %984 = vmatpush.bf16.msra.mxu0 %v745
        %985 = vmatmul.bf16.gmra.mxu0 %v936
        %v986 = vpop.f32.mrf.mxu0
        %v987 = vadd.f32 0.0, %v986
        %v988 = vpop.f32.mrf.mxu0
        %989 = vdwg.mxu0
        %990 = vmatpush.bf16.msra.mxu0 0
        %991 = vmatpush.bf16.msra.mxu0 0
        %992 = vmatpush.bf16.msra.mxu0 0
        %993 = vmatpush.bf16.msra.mxu0 0
        %994 = vmatpush.bf16.msra.mxu0 0
        %995 = vmatpush.bf16.msra.mxu0 %v810
        %996 = vmatpush.bf16.msra.mxu0 %v778
        %997 = vmatpush.bf16.msra.mxu0 %v746
        %998 = vmatmul.bf16.gmra.mxu0 %v936
        %v999 = vpop.f32.mrf.mxu0
        %v1000 = vadd.f32 0.0, %v999
        %v1001 = vpop.f32.mrf.mxu0
        %1002 = vdwg.mxu0
        %1003 = vmatpush.bf16.msra.mxu0 0
        %1004 = vmatpush.bf16.msra.mxu0 0
        %1005 = vmatpush.bf16.msra.mxu0 0
        %1006 = vmatpush.bf16.msra.mxu0 0
        %1007 = vmatpush.bf16.msra.mxu0 0
        %1008 = vmatpush.bf16.msra.mxu0 %v811
        %1009 = vmatpush.bf16.msra.mxu0 %v779
        %1010 = vmatpush.bf16.msra.mxu0 %v747
        %1011 = vmatmul.bf16.gmra.mxu0 %v936
        %v1012 = vpop.f32.mrf.mxu0
        %v1013 = vadd.f32 0.0, %v1012
        %v1014 = vpop.f32.mrf.mxu0
        %1015 = vdwg.mxu0
        %1016 = vmatpush.bf16.msra.mxu0 0
        %1017 = vmatpush.bf16.msra.mxu0 0
        %1018 = vmatpush.bf16.msra.mxu0 0
        %1019 = vmatpush.bf16.msra.mxu0 0
        %1020 = vmatpush.bf16.msra.mxu0 0
        %1021 = vmatpush.bf16.msra.mxu0 %v812
        %1022 = vmatpush.bf16.msra.mxu0 %v780
        %1023 = vmatpush.bf16.msra.mxu0 %v748
        %1024 = vmatmul.bf16.gmra.mxu0 %v936
        %v1025 = vpop.f32.mrf.mxu0
        %v1026 = vadd.f32 0.0, %v1025
        %v1027 = vpop.f32.mrf.mxu0
        %1028 = vdwg.mxu0
        %1029 = vmatpush.bf16.msra.mxu0 0
        %1030 = vmatpush.bf16.msra.mxu0 0
        %1031 = vmatpush.bf16.msra.mxu0 0
        %1032 = vmatpush.bf16.msra.mxu0 0
        %1033 = vmatpush.bf16.msra.mxu0 0
        %1034 = vmatpush.bf16.msra.mxu0 %v813
        %1035 = vmatpush.bf16.msra.mxu0 %v781
        %1036 = vmatpush.bf16.msra.mxu0 %v749
        %1037 = vmatmul.bf16.gmra.mxu0 %v936
        %v1038 = vpop.f32.mrf.mxu0
        %v1039 = vadd.f32 0.0, %v1038
        %v1040 = vpop.f32.mrf.mxu0
        %1041 = vdwg.mxu0
        %1042 = vmatpush.bf16.msra.mxu0 0
        %1043 = vmatpush.bf16.msra.mxu0 0
        %1044 = vmatpush.bf16.msra.mxu0 0
        %1045 = vmatpush.bf16.msra.mxu0 0
        %1046 = vmatpush.bf16.msra.mxu0 0
        %1047 = vmatpush.bf16.msra.mxu0 %v814
        %1048 = vmatpush.bf16.msra.mxu0 %v782
        %1049 = vmatpush.bf16.msra.mxu0 %v750
        %1050 = vmatmul.bf16.gmra.mxu0 %v936
        %v1051 = vpop.f32.mrf.mxu0
        %v1052 = vadd.f32 0.0, %v1051
        %v1053 = vpop.f32.mrf.mxu0
        %1054 = vdwg.mxu0
        %1055 = vmatpush.bf16.msra.mxu0 0
        %1056 = vmatpush.bf16.msra.mxu0 0
        %1057 = vmatpush.bf16.msra.mxu0 0
        %1058 = vmatpush.bf16.msra.mxu0 0
        %1059 = vmatpush.bf16.msra.mxu0 0
        %1060 = vmatpush.bf16.msra.mxu0 %v815
        %1061 = vmatpush.bf16.msra.mxu0 %v783
        %1062 = vmatpush.bf16.msra.mxu0 %v751
        %1063 = vmatmul.bf16.gmra.mxu0 %v936
        %v1064 = vpop.f32.mrf.mxu0
        %v1065 = vadd.f32 0.0, %v1064
        %v1066 = vpop.f32.mrf.mxu0
        %1067 = vdwg.mxu0
        %1068 = vmatpush.bf16.msra.mxu0 0
        %1069 = vmatpush.bf16.msra.mxu0 0
        %1070 = vmatpush.bf16.msra.mxu0 0
        %1071 = vmatpush.bf16.msra.mxu0 0
        %1072 = vmatpush.bf16.msra.mxu0 0
        %1073 = vmatpush.bf16.msra.mxu0 %v816
        %1074 = vmatpush.bf16.msra.mxu0 %v784
        %1075 = vmatpush.bf16.msra.mxu0 %v752
        %1076 = vmatmul.bf16.gmra.mxu0 %v936
        %v1077 = vpop.f32.mrf.mxu0
        %v1078 = vadd.f32 0.0, %v1077
        %v1079 = vpop.f32.mrf.mxu0
        %1080 = vdwg.mxu0
        %1081 = vmatpush.bf16.msra.mxu0 0
        %1082 = vmatpush.bf16.msra.mxu0 0
        %1083 = vmatpush.bf16.msra.mxu0 0
        %1084 = vmatpush.bf16.msra.mxu0 0
        %1085 = vmatpush.bf16.msra.mxu0 0
        %1086 = vmatpush.bf16.msra.mxu0 %v817
        %1087 = vmatpush.bf16.msra.mxu0 %v785
        %1088 = vmatpush.bf16.msra.mxu0 %v753
        %1089 = vmatmul.bf16.gmra.mxu0 %v936
        %v1090 = vpop.f32.mrf.mxu0
        %v1091 = vadd.f32 0.0, %v1090
        %v1092 = vpop.f32.mrf.mxu0
        %1093 = vdwg.mxu0
        %1094 = vmatpush.bf16.msra.mxu0 0
        %1095 = vmatpush.bf16.msra.mxu0 0
        %1096 = vmatpush.bf16.msra.mxu0 0
        %1097 = vmatpush.bf16.msra.mxu0 0
        %1098 = vmatpush.bf16.msra.mxu0 0
        %1099 = vmatpush.bf16.msra.mxu0 %v818
        %1100 = vmatpush.bf16.msra.mxu0 %v786
        %1101 = vmatpush.bf16.msra.mxu0 %v754
        %1102 = vmatmul.bf16.gmra.mxu0 %v936
        %v1103 = vpop.f32.mrf.mxu0
        %v1104 = vadd.f32 0.0, %v1103
        %v1105 = vpop.f32.mrf.mxu0
        %1106 = vdwg.mxu0
        %1107 = vmatpush.bf16.msra.mxu0 0
        %1108 = vmatpush.bf16.msra.mxu0 0
        %1109 = vmatpush.bf16.msra.mxu0 0
        %1110 = vmatpush.bf16.msra.mxu0 0
        %1111 = vmatpush.bf16.msra.mxu0 0
        %1112 = vmatpush.bf16.msra.mxu0 %v819
        %1113 = vmatpush.bf16.msra.mxu0 %v787
        %1114 = vmatpush.bf16.msra.mxu0 %v755
        %1115 = vmatmul.bf16.gmra.mxu0 %v936
        %v1116 = vpop.f32.mrf.mxu0
        %v1117 = vadd.f32 0.0, %v1116
        %v1118 = vpop.f32.mrf.mxu0
        %1119 = vdwg.mxu0
        %1120 = vmatpush.bf16.msra.mxu0 0
        %1121 = vmatpush.bf16.msra.mxu0 0
        %1122 = vmatpush.bf16.msra.mxu0 0
        %1123 = vmatpush.bf16.msra.mxu0 0
        %1124 = vmatpush.bf16.msra.mxu0 0
        %1125 = vmatpush.bf16.msra.mxu0 %v820
        %1126 = vmatpush.bf16.msra.mxu0 %v788
        %1127 = vmatpush.bf16.msra.mxu0 %v756
        %1128 = vmatmul.bf16.gmra.mxu0 %v936
        %v1129 = vpop.f32.mrf.mxu0
        %v1130 = vadd.f32 0.0, %v1129
        %v1131 = vpop.f32.mrf.mxu0
        %1132 = vdwg.mxu0
        %1133 = vmatpush.bf16.msra.mxu0 0
        %1134 = vmatpush.bf16.msra.mxu0 0
        %1135 = vmatpush.bf16.msra.mxu0 0
        %1136 = vmatpush.bf16.msra.mxu0 0
        %1137 = vmatpush.bf16.msra.mxu0 0
        %1138 = vmatpush.bf16.msra.mxu0 %v821
        %1139 = vmatpush.bf16.msra.mxu0 %v789
        %1140 = vmatpush.bf16.msra.mxu0 %v757
        %1141 = vmatmul.bf16.gmra.mxu0 %v936
        %v1142 = vpop.f32.mrf.mxu0
        %v1143 = vadd.f32 0.0, %v1142
        %v1144 = vpop.f32.mrf.mxu0
        %1145 = vdwg.mxu0
        %1146 = vmatpush.bf16.msra.mxu0 0
        %1147 = vmatpush.bf16.msra.mxu0 0
        %1148 = vmatpush.bf16.msra.mxu0 0
        %1149 = vmatpush.bf16.msra.mxu0 0
        %1150 = vmatpush.bf16.msra.mxu0 0
        %1151 = vmatpush.bf16.msra.mxu0 %v822
        %1152 = vmatpush.bf16.msra.mxu0 %v790
        %1153 = vmatpush.bf16.msra.mxu0 %v758
        %1154 = vmatmul.bf16.gmra.mxu0 %v936
        %v1155 = vpop.f32.mrf.mxu0
        %v1156 = vadd.f32 0.0, %v1155
        %v1157 = vpop.f32.mrf.mxu0
        %1158 = vdwg.mxu0
        %1159 = vmatpush.bf16.msra.mxu0 0
        %1160 = vmatpush.bf16.msra.mxu0 0
        %1161 = vmatpush.bf16.msra.mxu0 0
        %1162 = vmatpush.bf16.msra.mxu0 0
        %1163 = vmatpush.bf16.msra.mxu0 0
        %1164 = vmatpush.bf16.msra.mxu0 %v823
        %1165 = vmatpush.bf16.msra.mxu0 %v791
        %1166 = vmatpush.bf16.msra.mxu0 %v759
        %1167 = vmatmul.bf16.gmra.mxu0 %v936
        %v1168 = vpop.f32.mrf.mxu0
        %v1169 = vadd.f32 0.0, %v1168
        %v1170 = vpop.f32.mrf.mxu0
        %1171 = vdwg.mxu0
        %1172 = vmatpush.bf16.msra.mxu0 0
        %1173 = vmatpush.bf16.msra.mxu0 0
        %1174 = vmatpush.bf16.msra.mxu0 0
        %1175 = vmatpush.bf16.msra.mxu0 0
        %1176 = vmatpush.bf16.msra.mxu0 0
        %1177 = vmatpush.bf16.msra.mxu0 %v824
        %1178 = vmatpush.bf16.msra.mxu0 %v792
        %1179 = vmatpush.bf16.msra.mxu0 %v760
        %1180 = vmatmul.bf16.gmra.mxu0 %v936
        %v1181 = vpop.f32.mrf.mxu0
        %v1182 = vadd.f32 0.0, %v1181
        %v1183 = vpop.f32.mrf.mxu0
        %1184 = vdwg.mxu0
        %1185 = vmatpush.bf16.msra.mxu0 0
        %1186 = vmatpush.bf16.msra.mxu0 0
        %1187 = vmatpush.bf16.msra.mxu0 0
        %1188 = vmatpush.bf16.msra.mxu0 0
        %1189 = vmatpush.bf16.msra.mxu0 0
        %1190 = vmatpush.bf16.msra.mxu0 %v825
        %1191 = vmatpush.bf16.msra.mxu0 %v793
        %1192 = vmatpush.bf16.msra.mxu0 %v761
        %1193 = vmatmul.bf16.gmra.mxu0 %v936
        %v1194 = vpop.f32.mrf.mxu0
        %v1195 = vadd.f32 0.0, %v1194
        %v1196 = vpop.f32.mrf.mxu0
        %1197 = vdwg.mxu0
        %1198 = vmatpush.bf16.msra.mxu0 0
        %1199 = vmatpush.bf16.msra.mxu0 0
        %1200 = vmatpush.bf16.msra.mxu0 0
        %1201 = vmatpush.bf16.msra.mxu0 0
        %1202 = vmatpush.bf16.msra.mxu0 0
        %1203 = vmatpush.bf16.msra.mxu0 %v826
        %1204 = vmatpush.bf16.msra.mxu0 %v794
        %1205 = vmatpush.bf16.msra.mxu0 %v762
        %1206 = vmatmul.bf16.gmra.mxu0 %v936
        %v1207 = vpop.f32.mrf.mxu0
        %v1208 = vadd.f32 0.0, %v1207
        %v1209 = vpop.f32.mrf.mxu0
        %1210 = vdwg.mxu0
        %1211 = vmatpush.bf16.msra.mxu0 0
        %1212 = vmatpush.bf16.msra.mxu0 0
        %1213 = vmatpush.bf16.msra.mxu0 0
        %1214 = vmatpush.bf16.msra.mxu0 0
        %1215 = vmatpush.bf16.msra.mxu0 0
        %1216 = vmatpush.bf16.msra.mxu0 %v827
        %1217 = vmatpush.bf16.msra.mxu0 %v795
        %1218 = vmatpush.bf16.msra.mxu0 %v763
        %1219 = vmatmul.bf16.gmra.mxu0 %v936
        %v1220 = vpop.f32.mrf.mxu0
        %v1221 = vadd.f32 0.0, %v1220
        %v1222 = vpop.f32.mrf.mxu0
        %1223 = vdwg.mxu0
        %1224 = vmatpush.bf16.msra.mxu0 0
        %1225 = vmatpush.bf16.msra.mxu0 0
        %1226 = vmatpush.bf16.msra.mxu0 0
        %1227 = vmatpush.bf16.msra.mxu0 0
        %1228 = vmatpush.bf16.msra.mxu0 0
        %1229 = vmatpush.bf16.msra.mxu0 %v828
        %1230 = vmatpush.bf16.msra.mxu0 %v796
        %1231 = vmatpush.bf16.msra.mxu0 %v764
        %1232 = vmatmul.bf16.gmra.mxu0 %v936
        %v1233 = vpop.f32.mrf.mxu0
        %v1234 = vadd.f32 0.0, %v1233
        %v1235 = vpop.f32.mrf.mxu0
        %1236 = vdwg.mxu0
        %1237 = vmatpush.bf16.msra.mxu0 0
        %1238 = vmatpush.bf16.msra.mxu0 0
        %1239 = vmatpush.bf16.msra.mxu0 0
        %1240 = vmatpush.bf16.msra.mxu0 0
        %1241 = vmatpush.bf16.msra.mxu0 0
        %1242 = vmatpush.bf16.msra.mxu0 %v829
        %1243 = vmatpush.bf16.msra.mxu0 %v797
        %1244 = vmatpush.bf16.msra.mxu0 %v765
        %1245 = vmatmul.bf16.gmra.mxu0 %v936
        %v1246 = vpop.f32.mrf.mxu0
        %v1247 = vadd.f32 0.0, %v1246
        %v1248 = vpop.f32.mrf.mxu0
        %1249 = vdwg.mxu0
        %1250 = vmatpush.bf16.msra.mxu0 0
        %1251 = vmatpush.bf16.msra.mxu0 0
        %1252 = vmatpush.bf16.msra.mxu0 0
        %1253 = vmatpush.bf16.msra.mxu0 0
        %1254 = vmatpush.bf16.msra.mxu0 0
        %1255 = vmatpush.bf16.msra.mxu0 %v830
        %1256 = vmatpush.bf16.msra.mxu0 %v798
        %1257 = vmatpush.bf16.msra.mxu0 %v766
        %1258 = vmatmul.bf16.gmra.mxu0 %v936
        %v1259 = vpop.f32.mrf.mxu0
        %v1260 = vadd.f32 0.0, %v1259
        %v1261 = vpop.f32.mrf.mxu0
        %1262 = vdwg.mxu0
        %1263 = vmatpush.bf16.msra.mxu0 0
        %1264 = vmatpush.bf16.msra.mxu0 0
        %1265 = vmatpush.bf16.msra.mxu0 0
        %1266 = vmatpush.bf16.msra.mxu0 0
        %1267 = vmatpush.bf16.msra.mxu0 0
        %1268 = vmatpush.bf16.msra.mxu0 %v831
        %1269 = vmatpush.bf16.msra.mxu0 %v799
        %1270 = vmatpush.bf16.msra.mxu0 %v767
        %1271 = vmatmul.bf16.gmra.mxu0 %v936
        %v1272 = vpop.f32.mrf.mxu0
        %v1273 = vadd.f32 0.0, %v1272
        %v1274 = vpop.f32.mrf.mxu0
        %1275 = vdwg.mxu0
        %1276 = vmatpush.bf16.msra.mxu0 0
        %1277 = vmatpush.bf16.msra.mxu0 0
        %1278 = vmatpush.bf16.msra.mxu0 0
        %1279 = vmatpush.bf16.msra.mxu0 0
        %1280 = vmatpush.bf16.msra.mxu0 0
        %1281 = vmatpush.bf16.msra.mxu0 %v832
        %1282 = vmatpush.bf16.msra.mxu0 %v800
        %1283 = vmatpush.bf16.msra.mxu0 %v768
        %1284 = vmatmul.bf16.gmra.mxu0 %v936
        %v1285 = vpop.f32.mrf.mxu0
        %v1286 = vadd.f32 0.0, %v1285
        %v1287 = vpop.f32.mrf.mxu0
        %1288 = vdwg.mxu0
        %1289 = vmatpush.bf16.msra.mxu0 0
        %1290 = vmatpush.bf16.msra.mxu0 0
        %1291 = vmatpush.bf16.msra.mxu0 0
        %1292 = vmatpush.bf16.msra.mxu0 0
        %1293 = vmatpush.bf16.msra.mxu0 0
        %1294 = vmatpush.bf16.msra.mxu0 %v833
        %1295 = vmatpush.bf16.msra.mxu0 %v801
        %1296 = vmatpush.bf16.msra.mxu0 %v769
        %1297 = vmatmul.bf16.gmra.mxu0 %v936
        %v1298 = vpop.f32.mrf.mxu0
        %v1299 = vadd.f32 0.0, %v1298
        %v1300 = vpop.f32.mrf.mxu0
        %1301 = vdwg.mxu0
        %1302 = vmatpush.bf16.msra.mxu0 0
        %1303 = vmatpush.bf16.msra.mxu0 0
        %1304 = vmatpush.bf16.msra.mxu0 0
        %1305 = vmatpush.bf16.msra.mxu0 0
        %1306 = vmatpush.bf16.msra.mxu0 0
        %1307 = vmatpush.bf16.msra.mxu0 %v834
        %1308 = vmatpush.bf16.msra.mxu0 %v802
        %1309 = vmatpush.bf16.msra.mxu0 %v770
        %1310 = vmatmul.bf16.gmra.mxu0 %v936
        %v1311 = vpop.f32.mrf.mxu0
        %v1312 = vadd.f32 0.0, %v1311
        %v1313 = vpop.f32.mrf.mxu0
        %1314 = vdwg.mxu0
        %1315 = vmatpush.bf16.msra.mxu0 0
        %1316 = vmatpush.bf16.msra.mxu0 0
        %1317 = vmatpush.bf16.msra.mxu0 0
        %1318 = vmatpush.bf16.msra.mxu0 0
        %1319 = vmatpush.bf16.msra.mxu0 0
        %1320 = vmatpush.bf16.msra.mxu0 %v835
        %1321 = vmatpush.bf16.msra.mxu0 %v803
        %1322 = vmatpush.bf16.msra.mxu0 %v771
        %1323 = vmatmul.bf16.gmra.mxu0 %v936
        %v1324 = vpop.f32.mrf.mxu0
        %v1325 = vadd.f32 0.0, %v1324
        %v1326 = vpop.f32.mrf.mxu0
        %1327 = vdwg.mxu0
        %1328 = vmatpush.bf16.msra.mxu0 0
        %1329 = vmatpush.bf16.msra.mxu0 0
        %1330 = vmatpush.bf16.msra.mxu0 0
        %1331 = vmatpush.bf16.msra.mxu0 0
        %1332 = vmatpush.bf16.msra.mxu0 0
        %1333 = vmatpush.bf16.msra.mxu0 %v836
        %1334 = vmatpush.bf16.msra.mxu0 %v804
        %1335 = vmatpush.bf16.msra.mxu0 %v772
        %1336 = vmatmul.bf16.gmra.mxu0 %v936
        %v1337 = vpop.f32.mrf.mxu0
        %v1338 = vadd.f32 0.0, %v1337
        %v1339 = vpop.f32.mrf.mxu0
        %1340 = vdwg.mxu0
        %1341 = vmatpush.bf16.msra.mxu0 0
        %1342 = vmatpush.bf16.msra.mxu0 0
        %1343 = vmatpush.bf16.msra.mxu0 0
        %1344 = vmatpush.bf16.msra.mxu0 0
        %1345 = vmatpush.bf16.msra.mxu0 0
        %1346 = vmatpush.bf16.msra.mxu0 %v837
        %1347 = vmatpush.bf16.msra.mxu0 %v805
        %1348 = vmatpush.bf16.msra.mxu0 %v773
        %1349 = vmatmul.bf16.gmra.mxu0 %v936
        %v1350 = vpop.f32.mrf.mxu0
        %v1351 = vadd.f32 0.0, %v1350
        %v1352 = vpop.f32.mrf.mxu0
        %1353 = vdwg.mxu0
        %vm1354 = vcmp.ge.f32.partialorder %v948, 0.0
        %vm1355 = vcmp.ge.f32.partialorder %v961, 0.0
        %vm1356 = vcmp.ge.f32.partialorder %v974, 0.0
        %vm1357 = vcmp.ge.f32.partialorder %v987, 0.0
        %vm1358 = vcmp.ge.f32.partialorder %v1000, 0.0
        %vm1359 = vcmp.ge.f32.partialorder %v1013, 0.0
        %vm1360 = vcmp.ge.f32.partialorder %v1026, 0.0
        %vm1361 = vcmp.ge.f32.partialorder %v1039, 0.0
        %vm1362 = vcmp.ge.f32.partialorder %v1052, 0.0
        %vm1363 = vcmp.ge.f32.partialorder %v1065, 0.0
        %vm1364 = vcmp.ge.f32.partialorder %v1078, 0.0
        %vm1365 = vcmp.ge.f32.partialorder %v1091, 0.0
        %vm1366 = vcmp.ge.f32.partialorder %v1104, 0.0
        %vm1367 = vcmp.ge.f32.partialorder %v1117, 0.0
        %vm1368 = vcmp.ge.f32.partialorder %v1130, 0.0
        %vm1369 = vcmp.ge.f32.partialorder %v1143, 0.0
        %vm1370 = vcmp.ge.f32.partialorder %v1156, 0.0
        %vm1371 = vcmp.ge.f32.partialorder %v1169, 0.0
        %vm1372 = vcmp.ge.f32.partialorder %v1182, 0.0
        %vm1373 = vcmp.ge.f32.partialorder %v1195, 0.0
        %vm1374 = vcmp.ge.f32.partialorder %v1208, 0.0
        %vm1375 = vcmp.ge.f32.partialorder %v1221, 0.0
        %vm1376 = vcmp.ge.f32.partialorder %v1234, 0.0
        %vm1377 = vcmp.ge.f32.partialorder %v1247, 0.0
        %vm1378 = vcmp.ge.f32.partialorder %v1260, 0.0
        %vm1379 = vcmp.ge.f32.partialorder %v1273, 0.0
        %vm1380 = vcmp.ge.f32.partialorder %v1286, 0.0
        %vm1381 = vcmp.ge.f32.partialorder %v1299, 0.0
        %vm1382 = vcmp.ge.f32.partialorder %v1312, 0.0
        %vm1383 = vcmp.ge.f32.partialorder %v1325, 0.0
        %vm1384 = vcmp.ge.f32.partialorder %v1338, 0.0
        %vm1385 = vcmp.ge.f32.partialorder %v1351, 0.0
        %v1386 = vmul.f32 %v948, 0.2
        %v1387 = vmul.f32 %v961, 0.2
        %v1388 = vmul.f32 %v974, 0.2
        %v1389 = vmul.f32 %v987, 0.2
        %v1390 = vmul.f32 %v1000, 0.2
        %v1391 = vmul.f32 %v1013, 0.2
        %v1392 = vmul.f32 %v1026, 0.2
        %v1393 = vmul.f32 %v1039, 0.2
        %v1394 = vmul.f32 %v1052, 0.2
        %v1395 = vmul.f32 %v1065, 0.2
        %v1396 = vmul.f32 %v1078, 0.2
        %v1397 = vmul.f32 %v1091, 0.2
        %v1398 = vmul.f32 %v1104, 0.2
        %v1399 = vmul.f32 %v1117, 0.2
        %v1400 = vmul.f32 %v1130, 0.2
        %v1401 = vmul.f32 %v1143, 0.2
        %v1402 = vmul.f32 %v1156, 0.2
        %v1403 = vmul.f32 %v1169, 0.2
        %v1404 = vmul.f32 %v1182, 0.2
        %v1405 = vmul.f32 %v1195, 0.2
        %v1406 = vmul.f32 %v1208, 0.2
        %v1407 = vmul.f32 %v1221, 0.2
        %v1408 = vmul.f32 %v1234, 0.2
        %v1409 = vmul.f32 %v1247, 0.2
        %v1410 = vmul.f32 %v1260, 0.2
        %v1411 = vmul.f32 %v1273, 0.2
        %v1412 = vmul.f32 %v1286, 0.2
        %v1413 = vmul.f32 %v1299, 0.2
        %v1414 = vmul.f32 %v1312, 0.2
        %v1415 = vmul.f32 %v1325, 0.2
        %v1416 = vmul.f32 %v1338, 0.2
        %v1417 = vmul.f32 %v1351, 0.2
        %v1418 = vsel %vm1354, %v948, %v1386
        %v1419 = vsel %vm1355, %v961, %v1387
        %v1420 = vsel %vm1356, %v974, %v1388
        %v1421 = vsel %vm1357, %v987, %v1389
        %v1422 = vsel %vm1358, %v1000, %v1390
        %v1423 = vsel %vm1359, %v1013, %v1391
        %v1424 = vsel %vm1360, %v1026, %v1392
        %v1425 = vsel %vm1361, %v1039, %v1393
        %v1426 = vsel %vm1362, %v1052, %v1394
        %v1427 = vsel %vm1363, %v1065, %v1395
        %v1428 = vsel %vm1364, %v1078, %v1396
        %v1429 = vsel %vm1365, %v1091, %v1397
        %v1430 = vsel %vm1366, %v1104, %v1398
        %v1431 = vsel %vm1367, %v1117, %v1399
        %v1432 = vsel %vm1368, %v1130, %v1400
        %v1433 = vsel %vm1369, %v1143, %v1401
        %v1434 = vsel %vm1370, %v1156, %v1402
        %v1435 = vsel %vm1371, %v1169, %v1403
        %v1436 = vsel %vm1372, %v1182, %v1404
        %v1437 = vsel %vm1373, %v1195, %v1405
        %v1438 = vsel %vm1374, %v1208, %v1406
        %v1439 = vsel %vm1375, %v1221, %v1407
        %v1440 = vsel %vm1376, %v1234, %v1408
        %v1441 = vsel %vm1377, %v1247, %v1409
        %v1442 = vsel %vm1378, %v1260, %v1410
        %v1443 = vsel %vm1379, %v1273, %v1411
        %v1444 = vsel %vm1380, %v1286, %v1412
        %v1445 = vsel %vm1381, %v1299, %v1413
        %v1446 = vsel %vm1382, %v1312, %v1414
        %v1447 = vsel %vm1383, %v1325, %v1415
        %v1448 = vsel %vm1384, %v1338, %v1416
        %v1449 = vsel %vm1385, %v1351, %v1417
        %v1450 = vpack.c.bf16 %v1419, %v1418
        %v1451 = vpack.c.bf16 %v1421, %v1420
        %v1452 = vpack.c.bf16 %v1423, %v1422
        %v1453 = vpack.c.bf16 %v1425, %v1424
        %v1454 = vpack.c.bf16 %v1427, %v1426
        %v1455 = vpack.c.bf16 %v1429, %v1428
        %v1456 = vpack.c.bf16 %v1431, %v1430
        %v1457 = vpack.c.bf16 %v1433, %v1432
        %v1458 = vpack.c.bf16 %v1435, %v1434
        %v1459 = vpack.c.bf16 %v1437, %v1436
        %v1460 = vpack.c.bf16 %v1439, %v1438
        %v1461 = vpack.c.bf16 %v1441, %v1440
        %v1462 = vpack.c.bf16 %v1443, %v1442
        %v1463 = vpack.c.bf16 %v1445, %v1444
        %v1464 = vpack.c.bf16 %v1447, %v1446
        %v1465 = vpack.c.bf16 %v1449, %v1448
        %v1482 = vrot.slane %v1450, 2
        %v1483 = vrot.slane %v1451, 4
        %v1484 = vrot.slane %v1451, 6
        %v1485 = vrot.slane %v1452, 2
        %v1486 = vrot.slane %v1453, 4
        %v1487 = vrot.slane %v1453, 6
        %v1488 = vrot.slane %v1454, 2
        %v1489 = vrot.slane %v1455, 4
        %v1490 = vrot.slane %v1455, 6
        %v1491 = vrot.slane %v1456, 2
        %v1492 = vrot.slane %v1457, 4
        %v1493 = vrot.slane %v1457, 6
        %v1494 = vrot.slane %v1458, 2
        %v1495 = vrot.slane %v1459, 4
        %v1496 = vrot.slane %v1459, 6
        %v1497 = vrot.slane %v1460, 2
        %v1498 = vrot.slane %v1461, 4
        %v1499 = vrot.slane %v1461, 6
        %v1500 = vrot.slane %v1462, 2
        %v1501 = vrot.slane %v1463, 4
        %v1502 = vrot.slane %v1463, 6
        %v1503 = vrot.slane %v1464, 2
        %v1504 = vrot.slane %v1465, 4
        %v1505 = vrot.slane %v1465, 6
        %vm1506 = vcmask 1041408
        %v1509 = vsel %vm1506, %v1450, %v1482
        %vm1510 = vcmask 1045508
        %v1513 = vsel %vm1510, %v1483, %v1484
        %vm1514 = vcmask 1043456
        %v1515 = vsel %vm1514, %v1509, %v1513
        %v1518 = vsel %vm1506, %v1452, %v1485
        %v1521 = vsel %vm1510, %v1486, %v1487
        %v1522 = vsel %vm1514, %v1518, %v1521
        %v1525 = vsel %vm1506, %v1454, %v1488
        %v1528 = vsel %vm1510, %v1489, %v1490
        %v1529 = vsel %vm1514, %v1525, %v1528
        %v1532 = vsel %vm1506, %v1456, %v1491
        %v1535 = vsel %vm1510, %v1492, %v1493
        %v1536 = vsel %vm1514, %v1532, %v1535
        %v1539 = vsel %vm1506, %v1458, %v1494
        %v1542 = vsel %vm1510, %v1495, %v1496
        %v1543 = vsel %vm1514, %v1539, %v1542
        %v1546 = vsel %vm1506, %v1460, %v1497
        %v1549 = vsel %vm1510, %v1498, %v1499
        %v1550 = vsel %vm1514, %v1546, %v1549
        %v1553 = vsel %vm1506, %v1462, %v1500
        %v1556 = vsel %vm1510, %v1501, %v1502
        %v1557 = vsel %vm1514, %v1553, %v1556
        %v1560 = vsel %vm1506, %v1464, %v1503
        %v1563 = vsel %vm1510, %v1504, %v1505
        %v1564 = vsel %vm1514, %v1560, %v1563
        %1573 = vst [vmem:[%s354] sm:$0xff] %v1515
        %1574 = vst [vmem:[%s354 + $0x8] sm:$0xff] %v1522
        %1575 = vst [vmem:[%s354 + $0x10] sm:$0xff] %v1529
        %1576 = vst [vmem:[%s354 + $0x18] sm:$0xff] %v1536
        %1577 = vst [vmem:[%s354 + $0x20] sm:$0xff] %v1543
        %1578 = vst [vmem:[%s354 + $0x28] sm:$0xff] %v1550
        %1579 = vst [vmem:[%s354 + $0x30] sm:$0xff] %v1557
        %1580 = vst [vmem:[%s354 + $0x38] sm:$0xff] %v1564
        %s1581 = smul.u32 32, %s13
        %p1582 = scmp.lt.s32.totalorder %s1581, 255
        %s1583 = scalar_select %p1582, %s1581, 255
        %s1584 = smul.addr %s1583, 2
        %s1585 = scalar_lea.vmem %s2, %s1584
        // Predicated region
        $region52: #{discriminator_forward.3} parent=46 // pred_check
          %p1586 = pneg %p78
        $region53: #{discriminator_forward.3} parent=46 // pred_check_branch
          %1588 = sbr.rel (%p1586) target = $region55
        $region54: #{discriminator_forward.3} parent=46 // pred_region
          %s1589 = smul.u32 32, %s13
        $region55: #{discriminator_forward.3} parent=46 // pred_fallthru
          _
      $region47: #{discriminator_forward.3} parent=5 // pred_fallthru
        _
      %p1590 = scmp.le.s32.totalorder 2, %s8
      // Predicated region
      $region56: #{discriminator_forward.3} parent=5 // pred_check
        %p1591 = pneg %p1590
      $region57: #{discriminator_forward.3} parent=5 // pred_check_branch
        %1593 = sbr.rel (%p1591) target = $region59
      $region58: #{discriminator_forward.3} parent=5 // pred_region
        %s1594 = ssub.s32 %s8, 2
        // Predicated region
        $region60: #{discriminator_forward.3} parent=58 // pred_check
          %p1595 = pneg %p84
        $region61: #{discriminator_forward.3} parent=58 // pred_check_branch
          %1597 = sbr.rel (%p1595) target = $region63
        $region62: #{discriminator_forward.3} parent=58 // pred_region
          %s1598 = smul.u32 32, %s14
          %p1599 = scmp.lt.s32.totalorder %s1598, 255
          %s1600 = scalar_select %p1599, %s1598, 255
          %s1601 = smul.addr %s1600, 2
          %s1602 = scalar_lea.vmem %s2, %s1601
        $region63: #{discriminator_forward.3} parent=58 // pred_fallthru
          _
      $region59: #{discriminator_forward.3} parent=5 // pred_fallthru
        _
    $region6: #{discriminator_forward.3} parent=1 // loop_footer
      %s12 = sadd.s32 1, %s8
    $region7: #{discriminator_forward.3} parent=1 // loop_footer_branch
      %7 = sbr.rel target = $region3
    $region8: #{discriminator_forward.3} parent=1 // loop_exit
      _

// kernel: discriminator_forward.4
$region0: #{discriminator_forward.4}
  #allocation0 [shape = 'u32[]', space=smem, size = 0x4, offset = 0x4, fixed_abs, tag = 'smem constant byte address 0x4 - core index']
  #allocation1 [shape = 'u32[72,128]{1,0:T(1,128)}', space=vmem, size = 0x9000, scoped, tag = 'internal scratch']
  %s0 = inlined_call_operand.vmem [shape: bf16[64,8192], index: 0, kind: input, shape index: {}]
  %s1 = inlined_call_operand.vmem [shape: bf16[8,64], index: 1, kind: input, shape index: {}]
  %s2 = inlined_call_operand.vmem [shape: bf16[8,8192], index: 2, kind: output, shape index: {0}]
  %s3 = inlined_call_operand.vmem [shape: f32[64,8], index: 3, kind: output, shape index: {1}]
  %4 = xla_tuple %s2, %s3
  %s5 = sld [smem:[#allocation0]]
  $region72: #{discriminator_forward.4} parent=0
    _
  %s7 = ssub.s32 1, %s5
  %s8 = scalar_select 0, %s7, %s5
  $region1: #{discriminator_forward.4} parent=0
    #allocation2 [shape = 'u8[262144]{0}', space=vmem, size = 0x40000, scoped, tag = 'input window, operand 0']
    loop: start=0, step=1, limit=10
    $region2: #{discriminator_forward.4} parent=1 // loop_pre_header
      _
    $region3: #{discriminator_forward.4} parent=1 // loop_header
      %s10 = sphi 0, %s14
      %p11 = scmp.ge.s32.totalorder %s10, 10
      %s20 = sphi 0, %s22
      %s23 = sphi 0, %s20
      %s24 = sphi 0, %s23
      %s40 = sphi 0, %s24
      %s44 = sphi 0, %s44
      %s46 = sphi 0, %s44
      %s47 = sphi 0, %s46
      %s61 = sphi 0, %s47
      %s67 = sphi 0, %s69
      %s70 = sphi 0, %s67
      %s71 = sphi 0, %s70
      %s87 = sphi 0, %s71
      %s93 = sphi 0, %s95
      %s96 = sphi 0, %s93
      %s97 = sphi 0, %s96
      %s113 = sphi 0, %s97
    $region4: #{discriminator_forward.4} parent=1 // loop_header_branch
      %13 = sbr.rel (%p11) target = $region8
    $region5: #{discriminator_forward.4} parent=1 // loop_body
      %s15 = ssub.s32 %s10, 1
      %s16 = ssub.s32 %s10, 2
      %s17 = sadd.s32 %s10, 1
      %s18 = ssub.s32 %s10, %s17
      %p19 = scmp.eq.s32.totalorder %s18, 0
      %s21 = sadd.s32 %s20, 1
      %s22 = scalar_select %p19, %s20, %s21
      %p25 = pneg %p19
      %p26 = scmp.eq.s32.totalorder %s10, 7
      %p27 = por %p25, %p26
      %p28 = scmp.ne.s32.totalorder %s20, %s23
      %p29 = scmp.eq.s32.totalorder %s10, 0
      %p30 = por %p28, %p29
      %p31 = scmp.ne.s32.totalorder %s20, %s23
      %p32 = scmp.eq.s32.totalorder %s15, 7
      %p33 = por %p31, %p32
      %p34 = scmp.ne.s32.totalorder %s23, %s24
      %p35 = scmp.eq.s32.totalorder %s15, 0
      %p36 = por %p34, %p35
      %p37 = scmp.ne.s32.totalorder %s23, %s24
      %p38 = scmp.eq.s32.totalorder %s16, 7
      %p39 = por %p37, %p38
      %p41 = scmp.ne.s32.totalorder %s24, %s40
      %p42 = scmp.eq.s32.totalorder %s16, 0
      %p43 = por %p41, %p42
      %s45 = sadd.s32 %s44, 1
      %p48 = scmp.eq.s32.totalorder %s10, 7
      %p49 = scmp.ne.s32.totalorder %s44, %s46
      %p50 = scmp.eq.s32.totalorder %s10, 0
      %p51 = por %p49, %p50
      %p52 = scmp.ne.s32.totalorder %s44, %s46
      %p53 = scmp.eq.s32.totalorder %s15, 7
      %p54 = por %p52, %p53
      %p55 = scmp.ne.s32.totalorder %s46, %s47
      %p56 = scmp.eq.s32.totalorder %s15, 0
      %p57 = por %p55, %p56
      %p58 = scmp.ne.s32.totalorder %s46, %s47
      %p59 = scmp.eq.s32.totalorder %s16, 7
      %p60 = por %p58, %p59
      %p62 = scmp.ne.s32.totalorder %s47, %s61
      %p63 = scmp.eq.s32.totalorder %s16, 0
      %p64 = por %p62, %p63
      %s65 = ssub.s32 %s10, %s17
      %p66 = scmp.eq.s32.totalorder %s65, 0
      %s68 = sadd.s32 %s67, 1
      %s69 = scalar_select %p66, %s67, %s68
      %p72 = pneg %p66
      %p73 = scmp.eq.s32.totalorder %s10, 7
      %p74 = por %p72, %p73
      %p75 = scmp.ne.s32.totalorder %s67, %s70
      %p76 = scmp.eq.s32.totalorder %s10, 0
      %p77 = por %p75, %p76
      %p78 = scmp.ne.s32.totalorder %s67, %s70
      %p79 = scmp.eq.s32.totalorder %s15, 7
      %p80 = por %p78, %p79
      %p81 = scmp.ne.s32.totalorder %s70, %s71
      %p82 = scmp.eq.s32.totalorder %s15, 0
      %p83 = por %p81, %p82
      %p84 = scmp.ne.s32.totalorder %s70, %s71
      %p85 = scmp.eq.s32.totalorder %s16, 7
      %p86 = por %p84, %p85
      %p88 = scmp.ne.s32.totalorder %s71, %s87
      %p89 = scmp.eq.s32.totalorder %s16, 0
      %p90 = por %p88, %p89
      %s91 = ssub.s32 %s10, %s17
      %p92 = scmp.eq.s32.totalorder %s91, 0
      %s94 = sadd.s32 %s93, 1
      %s95 = scalar_select %p92, %s93, %s94
      %p98 = pneg %p92
      %p99 = scmp.eq.s32.totalorder %s10, 7
      %p100 = por %p98, %p99
      %p101 = scmp.ne.s32.totalorder %s93, %s96
      %p102 = scmp.eq.s32.totalorder %s10, 0
      %p103 = por %p101, %p102
      %p104 = scmp.ne.s32.totalorder %s93, %s96
      %p105 = scmp.eq.s32.totalorder %s15, 7
      %p106 = por %p104, %p105
      %p107 = scmp.ne.s32.totalorder %s96, %s97
      %p108 = scmp.eq.s32.totalorder %s15, 0
      %p109 = por %p107, %p108
      %p110 = scmp.ne.s32.totalorder %s96, %s97
      %p111 = scmp.eq.s32.totalorder %s16, 7
      %p112 = por %p110, %p111
      %p114 = scmp.ne.s32.totalorder %s97, %s113
      %p115 = scmp.eq.s32.totalorder %s16, 0
      %p116 = por %p114, %p115
      %p117 = scmp.le.s32.totalorder 1, %s10
      %p118 = scmp.lt.s32.totalorder %s10, 9
      %p119 = pnand %p117, %p118
      %p120 = pneg %p119
      // Predicated region
      $region9: #{discriminator_forward.4} parent=5 // pred_check
        _
      $region10: #{discriminator_forward.4} parent=5 // pred_check_branch
        %122 = sbr.rel (%p119) target = $region12
      $region11: #{discriminator_forward.4} parent=5 // pred_region
        %s123 = ssub.s32 %s10, 1
        // Predicated region
        $region13: #{discriminator_forward.4} parent=11 // pred_check
          %p124 = pneg %p57
        $region14: #{discriminator_forward.4} parent=11 // pred_check_branch
          %126 = sbr.rel (%p124) target = $region16
        $region15: #{discriminator_forward.4} parent=11 // pred_region
          _
        $region16: #{discriminator_forward.4} parent=11 // pred_fallthru
          _
      $region12: #{discriminator_forward.4} parent=5 // pred_fallthru
        _
      %p127 = scmp.lt.s32.totalorder %s10, 8
      // Predicated region
      $region17: #{discriminator_forward.4} parent=5 // pred_check
        %p128 = pneg %p127
      $region18: #{discriminator_forward.4} parent=5 // pred_check_branch
        %130 = sbr.rel (%p128) target = $region20
      $region19: #{discriminator_forward.4} parent=5 // pred_region
        // Predicated region
        $region21: #{discriminator_forward.4} parent=19 // pred_check
          %p131 = pneg %p30
        $region22: #{discriminator_forward.4} parent=19 // pred_check_branch
          %133 = sbr.rel (%p131) target = $region24
        $region23: #{discriminator_forward.4} parent=19 // pred_region
          %s134 = sand.u32 %s20, 1
          %s135 = sand.u32 %s20, 1
          %s136 = smul.addr %s135, 256
          %s137 = scalar_lea.vmem [#allocation2], %s136
          %s138 = smul.u32 8, %s10
          %s139 = smul.addr %s138, 4
          %s140 = scalar_lea.vmem %s0, %s139
          // Predicated region
          $region25: #{discriminator_forward.4} parent=23 // pred_check
            _
          $region26: #{discriminator_forward.4} parent=23 // pred_check_branch
            %142 = sbr.rel (0) target = $region28
          $region27: #{discriminator_forward.4} parent=23 // pred_region
            // Predicated region
            $region29: #{discriminator_forward.4} parent=27 // pred_check
              _
            $region30: #{discriminator_forward.4} parent=27 // pred_check_branch
              %144 = sbr.rel (0) target = $region32
            $region31: #{discriminator_forward.4} parent=27 // pred_region
              loop: start=0, step=1, limit=1
              $region33: #{discriminator_forward.4} parent=31 // loop_pre_header
                _
              $region34: #{discriminator_forward.4} parent=31 // loop_header
                %s146 = sphi 0, %s150
                %p147 = scmp.ge.s32.totalorder %s146, 1
                %s151 = sphi %s140, %s140
                %s152 = sphi %s137, %s137
              $region35: #{discriminator_forward.4} parent=31 // loop_header_branch
                %149 = sbr.rel (%p147) target = $region39
              $region36: #{discriminator_forward.4} parent=31 // loop_body
                %v153 = vld [vmem:[%s151] sm:$0xff]
                %154 = vst [vmem:[%s152] sm:$0xff] %v153
                %v155 = vld [vmem:[%s151 + $0x8] sm:$0xff]
                %156 = vst [vmem:[%s152 + $0x8] sm:$0xff] %v155
                %v157 = vld [vmem:[%s151 + $0x10] sm:$0xff]
                %158 = vst [vmem:[%s152 + $0x10] sm:$0xff] %v157
                %v159 = vld [vmem:[%s151 + $0x18] sm:$0xff]
                %160 = vst [vmem:[%s152 + $0x18] sm:$0xff] %v159
                %v161 = vld [vmem:[%s151 + $0x100] sm:$0xff]
                %162 = vst [vmem:[%s152 + $0x20] sm:$0xff] %v161
                %v163 = vld [vmem:[%s151 + $0x108] sm:$0xff]
                %164 = vst [vmem:[%s152 + $0x28] sm:$0xff] %v163
                %v165 = vld [vmem:[%s151 + $0x110] sm:$0xff]
                %166 = vst [vmem:[%s152 + $0x30] sm:$0xff] %v165
                %v167 = vld [vmem:[%s151 + $0x118] sm:$0xff]
                %168 = vst [vmem:[%s152 + $0x38] sm:$0xff] %v167
                %v169 = vld [vmem:[%s151 + $0x200] sm:$0xff]
                %170 = vst [vmem:[%s152 + $0x40] sm:$0xff] %v169
                %v171 = vld [vmem:[%s151 + $0x208] sm:$0xff]
                %172 = vst [vmem:[%s152 + $0x48] sm:$0xff] %v171
                %v173 = vld [vmem:[%s151 + $0x210] sm:$0xff]
                %174 = vst [vmem:[%s152 + $0x50] sm:$0xff] %v173
                %v175 = vld [vmem:[%s151 + $0x218] sm:$0xff]
                %176 = vst [vmem:[%s152 + $0x58] sm:$0xff] %v175
                %v177 = vld [vmem:[%s151 + $0x300] sm:$0xff]
                %178 = vst [vmem:[%s152 + $0x60] sm:$0xff] %v177
                %v179 = vld [vmem:[%s151 + $0x308] sm:$0xff]
                %180 = vst [vmem:[%s152 + $0x68] sm:$0xff] %v179
                %v181 = vld [vmem:[%s151 + $0x310] sm:$0xff]
                %182 = vst [vmem:[%s152 + $0x70] sm:$0xff] %v181
                %v183 = vld [vmem:[%s151 + $0x318] sm:$0xff]
                %184 = vst [vmem:[%s152 + $0x78] sm:$0xff] %v183
                %v185 = vld [vmem:[%s151 + $0x400] sm:$0xff]
                %186 = vst [vmem:[%s152 + $0x80] sm:$0xff] %v185
                %v187 = vld [vmem:[%s151 + $0x408] sm:$0xff]
                %188 = vst [vmem:[%s152 + $0x88] sm:$0xff] %v187
                %v189 = vld [vmem:[%s151 + $0x410] sm:$0xff]
                %190 = vst [vmem:[%s152 + $0x90] sm:$0xff] %v189
                %v191 = vld [vmem:[%s151 + $0x418] sm:$0xff]
                %192 = vst [vmem:[%s152 + $0x98] sm:$0xff] %v191
                %v193 = vld [vmem:[%s151 + $0x500] sm:$0xff]
                %194 = vst [vmem:[%s152 + $0xa0] sm:$0xff] %v193
                %v195 = vld [vmem:[%s151 + $0x508] sm:$0xff]
                %196 = vst [vmem:[%s152 + $0xa8] sm:$0xff] %v195
                %v197 = vld [vmem:[%s151 + $0x510] sm:$0xff]
                %198 = vst [vmem:[%s152 + $0xb0] sm:$0xff] %v197
                %v199 = vld [vmem:[%s151 + $0x518] sm:$0xff]
                %200 = vst [vmem:[%s152 + $0xb8] sm:$0xff] %v199
                %v201 = vld [vmem:[%s151 + $0x600] sm:$0xff]
                %202 = vst [vmem:[%s152 + $0xc0] sm:$0xff] %v201
                %v203 = vld [vmem:[%s151 + $0x608] sm:$0xff]
                %204 = vst [vmem:[%s152 + $0xc8] sm:$0xff] %v203
                %v205 = vld [vmem:[%s151 + $0x610] sm:$0xff]
                %206 = vst [vmem:[%s152 + $0xd0] sm:$0xff] %v205
                %v207 = vld [vmem:[%s151 + $0x618] sm:$0xff]
                %208 = vst [vmem:[%s152 + $0xd8] sm:$0xff] %v207
                %v209 = vld [vmem:[%s151 + $0x700] sm:$0xff]
                %210 = vst [vmem:[%s152 + $0xe0] sm:$0xff] %v209
                %v211 = vld [vmem:[%s151 + $0x708] sm:$0xff]
                %212 = vst [vmem:[%s152 + $0xe8] sm:$0xff] %v211
                %v213 = vld [vmem:[%s151 + $0x710] sm:$0xff]
                %214 = vst [vmem:[%s152 + $0xf0] sm:$0xff] %v213
                %v215 = vld [vmem:[%s151 + $0x718] sm:$0xff]
                %216 = vst [vmem:[%s152 + $0xf8] sm:$0xff] %v215
              $region37: #{discriminator_forward.4} parent=31 // loop_footer
                %s150 = sadd.s32 1, %s146
              $region38: #{discriminator_forward.4} parent=31 // loop_footer_branch
                %145 = sbr.rel target = $region34
              $region39: #{discriminator_forward.4} parent=31 // loop_exit
                _
            $region32: #{discriminator_forward.4} parent=27 // pred_fallthru
              _
            // Predicated region
            $region40: #{discriminator_forward.4} parent=27 // pred_check
              _
            $region41: #{discriminator_forward.4} parent=27 // pred_check_branch
              %218 = sbr.rel target = $region43
            $region42: #{discriminator_forward.4} parent=27 // pred_region
              _
            $region43: #{discriminator_forward.4} parent=27 // pred_fallthru
              _
          $region28: #{discriminator_forward.4} parent=23 // pred_fallthru
            _
          %219 = vnop
        $region24: #{discriminator_forward.4} parent=19 // pred_fallthru
          _
      $region20: #{discriminator_forward.4} parent=5 // pred_fallthru
        _
      %p220 = scmp.le.s32.totalorder 1, %s10
      %p221 = scmp.lt.s32.totalorder %s10, 9
      %p222 = pnand %p220, %p221
      %p223 = pneg %p222
      // Predicated region
      $region44: #{discriminator_forward.4} parent=5 // pred_check
        _
      $region45: #{discriminator_forward.4} parent=5 // pred_check_branch
        %225 = sbr.rel (%p222) target = $region47
      $region46: #{discriminator_forward.4} parent=5 // pred_region
        %s226 = ssub.s32 %s10, 1
        %s227 = sand.u32 %s23, 1
        %s228 = sand.u32 %s23, 1
        %s229 = smul.addr %s228, 256
        %s230 = scalar_lea.vmem [#allocation2], %s229
        // Predicated region
        $region48: #{discriminator_forward.4} parent=46 // pred_check
          %p231 = pneg %p36
        $region49: #{discriminator_forward.4} parent=46 // pred_check_branch
          %233 = sbr.rel (%p231) target = $region51
        $region50: #{discriminator_forward.4} parent=46 // pred_region
          _
        $region51: #{discriminator_forward.4} parent=46 // pred_fallthru
          _
        %s234 = sand.u32 %s23, 1
        %s235 = sand.u32 %s23, 1
        %s236 = smul.addr %s235, 256
        %s237 = scalar_lea.vmem [#allocation2], %s236
        %p238 = pneg %p36
        %p239 = pneg %p33
        %p240 = pneg %p57
        %p241 = pneg %p54
        %p242 = pneg %p83
        %p243 = pneg %p80
        %s244 = smul.u32 8, %s15
        %p245 = scmp.lt.s32.totalorder %s244, 63
        %s246 = scalar_select %p245, %s244, 63
        %s247 = smul.addr %s246, 4
        %s248 = scalar_lea.vmem %s2, %s247
        %p249 = pneg %p109
        %p250 = pneg %p106
        %p251 = scmp.lt.s32.totalorder %s15, 7
        %s252 = scalar_select %p251, %s15, 7
        %s253 = smul.addr %s252, 8
        %s254 = scalar_lea.vmem %s3, %s253
        %s255 = smul.u32 8, %s15
        %s256 = smul.u32 8, %s15
        %p257 = scmp.lt.s32.totalorder %s256, 63
        %s258 = scalar_select %p257, %s256, 63
        %s259 = smul.addr %s258, 4
        %s260 = scalar_lea.vmem %s2, %s259
        %s261 = smul.u32 8, %s15
        %p262 = scmp.lt.s32.totalorder %s15, 7
        %s263 = scalar_select %p262, %s15, 7
        %s264 = smul.addr %s263, 8
        %s265 = scalar_lea.vmem %s3, %s264
        %v267 = vld [vmem:[%s230] sm:$0xff]
        %v268 = vld [vmem:[%s230 + $0x8] sm:$0xff]
        %v269 = vld [vmem:[%s230 + $0x10] sm:$0xff]
        %v270 = vld [vmem:[%s230 + $0x18] sm:$0xff]
        %v271 = vld [vmem:[%s230 + $0x20] sm:$0xff]
        %v272 = vld [vmem:[%s230 + $0x28] sm:$0xff]
        %v273 = vld [vmem:[%s230 + $0x30] sm:$0xff]
        %v274 = vld [vmem:[%s230 + $0x38] sm:$0xff]
        %v275 = vld [vmem:[%s230 + $0x40] sm:$0xff]
        %v276 = vld [vmem:[%s230 + $0x48] sm:$0xff]
        %v277 = vld [vmem:[%s230 + $0x50] sm:$0xff]
        %v278 = vld [vmem:[%s230 + $0x58] sm:$0xff]
        %v279 = vld [vmem:[%s230 + $0x60] sm:$0xff]
        %v280 = vld [vmem:[%s230 + $0x68] sm:$0xff]
        %v281 = vld [vmem:[%s230 + $0x70] sm:$0xff]
        %v282 = vld [vmem:[%s230 + $0x78] sm:$0xff]
        %v283 = vld [vmem:[%s230 + $0x80] sm:$0xff]
        %v284 = vld [vmem:[%s230 + $0x88] sm:$0xff]
        %v285 = vld [vmem:[%s230 + $0x90] sm:$0xff]
        %v286 = vld [vmem:[%s230 + $0x98] sm:$0xff]
        %v287 = vld [vmem:[%s230 + $0xa0] sm:$0xff]
        %v288 = vld [vmem:[%s230 + $0xa8] sm:$0xff]
        %v289 = vld [vmem:[%s230 + $0xb0] sm:$0xff]
        %v290 = vld [vmem:[%s230 + $0xb8] sm:$0xff]
        %v291 = vld [vmem:[%s230 + $0xc0] sm:$0xff]
        %v292 = vld [vmem:[%s230 + $0xc8] sm:$0xff]
        %v293 = vld [vmem:[%s230 + $0xd0] sm:$0xff]
        %v294 = vld [vmem:[%s230 + $0xd8] sm:$0xff]
        %v295 = vld [vmem:[%s230 + $0xe0] sm:$0xff]
        %v296 = vld [vmem:[%s230 + $0xe8] sm:$0xff]
        %v297 = vld [vmem:[%s230 + $0xf0] sm:$0xff]
        %v298 = vld [vmem:[%s230 + $0xf8] sm:$0xff]
        %v299 = vld [vmem:[%s1] sm:$0xf]
        %v332 = vunpack.c.l.b16 %v267
        %v333 = vunpack.c.h.b16 %v267
        %v334 = vunpack.c.l.b16 %v268
        %v335 = vunpack.c.h.b16 %v268
        %v336 = vunpack.c.l.b16 %v269
        %v337 = vunpack.c.h.b16 %v269
        %v338 = vunpack.c.l.b16 %v270
        %v339 = vunpack.c.h.b16 %v270
        %v340 = vunpack.c.l.b16 %v271
        %v341 = vunpack.c.h.b16 %v271
        %v342 = vunpack.c.l.b16 %v272
        %v343 = vunpack.c.h.b16 %v272
        %v344 = vunpack.c.l.b16 %v273
        %v345 = vunpack.c.h.b16 %v273
        %v346 = vunpack.c.l.b16 %v274
        %v347 = vunpack.c.h.b16 %v274
        %v348 = vunpack.c.l.b16 %v275
        %v349 = vunpack.c.h.b16 %v275
        %v350 = vunpack.c.l.b16 %v276
        %v351 = vunpack.c.h.b16 %v276
        %v352 = vunpack.c.l.b16 %v277
        %v353 = vunpack.c.h.b16 %v277
        %v354 = vunpack.c.l.b16 %v278
        %v355 = vunpack.c.h.b16 %v278
        %v356 = vunpack.c.l.b16 %v279
        %v357 = vunpack.c.h.b16 %v279
        %v358 = vunpack.c.l.b16 %v280
        %v359 = vunpack.c.h.b16 %v280
        %v360 = vunpack.c.l.b16 %v281
        %v361 = vunpack.c.h.b16 %v281
        %v362 = vunpack.c.l.b16 %v282
        %v363 = vunpack.c.h.b16 %v282
        %v364 = vunpack.c.l.b16 %v283
        %v365 = vunpack.c.h.b16 %v283
        %v366 = vunpack.c.l.b16 %v284
        %v367 = vunpack.c.h.b16 %v284
        %v368 = vunpack.c.l.b16 %v285
        %v369 = vunpack.c.h.b16 %v285
        %v370 = vunpack.c.l.b16 %v286
        %v371 = vunpack.c.h.b16 %v286
        %v372 = vunpack.c.l.b16 %v287
        %v373 = vunpack.c.h.b16 %v287
        %v374 = vunpack.c.l.b16 %v288
        %v375 = vunpack.c.h.b16 %v288
        %v376 = vunpack.c.l.b16 %v289
        %v377 = vunpack.c.h.b16 %v289
        %v378 = vunpack.c.l.b16 %v290
        %v379 = vunpack.c.h.b16 %v290
        %v380 = vunpack.c.l.b16 %v291
        %v381 = vunpack.c.h.b16 %v291
        %v382 = vunpack.c.l.b16 %v292
        %v383 = vunpack.c.h.b16 %v292
        %v384 = vunpack.c.l.b16 %v293
        %v385 = vunpack.c.h.b16 %v293
        %v386 = vunpack.c.l.b16 %v294
        %v387 = vunpack.c.h.b16 %v294
        %v388 = vunpack.c.l.b16 %v295
        %v389 = vunpack.c.h.b16 %v295
        %v390 = vunpack.c.l.b16 %v296
        %v391 = vunpack.c.h.b16 %v296
        %v392 = vunpack.c.l.b16 %v297
        %v393 = vunpack.c.h.b16 %v297
        %v394 = vunpack.c.l.b16 %v298
        %v395 = vunpack.c.h.b16 %v298
        %v396 = vpack.c.b16 %v340, %v332
        %v397 = vpack.c.b16 %v341, %v333
        %v398 = vpack.c.b16 %v342, %v334
        %v399 = vpack.c.b16 %v343, %v335
        %v400 = vpack.c.b16 %v344, %v336
        %v401 = vpack.c.b16 %v345, %v337
        %v402 = vpack.c.b16 %v346, %v338
        %v403 = vpack.c.b16 %v347, %v339
        %v404 = vpack.c.b16 %v356, %v348
        %v405 = vpack.c.b16 %v357, %v349
        %v406 = vpack.c.b16 %v358, %v350
        %v407 = vpack.c.b16 %v359, %v351
        %v408 = vpack.c.b16 %v360, %v352
        %v409 = vpack.c.b16 %v361, %v353
        %v410 = vpack.c.b16 %v362, %v354
        %v411 = vpack.c.b16 %v363, %v355
        %v412 = vpack.c.b16 %v372, %v364
        %v413 = vpack.c.b16 %v373, %v365
        %v414 = vpack.c.b16 %v374, %v366
        %v415 = vpack.c.b16 %v375, %v367
        %v416 = vpack.c.b16 %v376, %v368
        %v417 = vpack.c.b16 %v377, %v369
        %v418 = vpack.c.b16 %v378, %v370
        %v419 = vpack.c.b16 %v379, %v371
        %v420 = vpack.c.b16 %v388, %v380
        %v421 = vpack.c.b16 %v389, %v381
        %v422 = vpack.c.b16 %v390, %v382
        %v423 = vpack.c.b16 %v391, %v383
        %v424 = vpack.c.b16 %v392, %v384
        %v425 = vpack.c.b16 %v393, %v385
        %v426 = vpack.c.b16 %v394, %v386
        %v427 = vpack.c.b16 %v395, %v387
        %vm460 = vcmask 523264
        %v462 = vsel %vm460, %v299, 0
        %464 = vmatpush.bf16.msra.mxu0 0
        %465 = vmatpush.bf16.msra.mxu0 0
        %466 = vmatpush.bf16.msra.mxu0 0
        %467 = vmatpush.bf16.msra.mxu0 0
        %468 = vmatpush.bf16.msra.mxu0 %v420
        %469 = vmatpush.bf16.msra.mxu0 %v412
        %470 = vmatpush.bf16.msra.mxu0 %v404
        %471 = vmatpush.bf16.msra.mxu0 %v396
        %472 = vmatmul.bf16.gmra.mxu0 %v462
        %v473 = vpop.f32.mrf.mxu0
        %v474 = vadd.f32 0.0, %v473
        %v475 = vpop.f32.mrf.mxu0
        %476 = vdwg.mxu0
        %477 = vmatpush.bf16.msra.mxu0 0
        %478 = vmatpush.bf16.msra.mxu0 0
        %479 = vmatpush.bf16.msra.mxu0 0
        %480 = vmatpush.bf16.msra.mxu0 0
        %481 = vmatpush.bf16.msra.mxu0 %v421
        %482 = vmatpush.bf16.msra.mxu0 %v413
        %483 = vmatpush.bf16.msra.mxu0 %v405
        %484 = vmatpush.bf16.msra.mxu0 %v397
        %485 = vmatmul.bf16.gmra.mxu0 %v462
        %v486 = vpop.f32.mrf.mxu0
        %v487 = vadd.f32 0.0, %v486
        %v488 = vpop.f32.mrf.mxu0
        %489 = vdwg.mxu0
        %490 = vmatpush.bf16.msra.mxu0 0
        %491 = vmatpush.bf16.msra.mxu0 0
        %492 = vmatpush.bf16.msra.mxu0 0
        %493 = vmatpush.bf16.msra.mxu0 0
        %494 = vmatpush.bf16.msra.mxu0 %v422
        %495 = vmatpush.bf16.msra.mxu0 %v414
        %496 = vmatpush.bf16.msra.mxu0 %v406
        %497 = vmatpush.bf16.msra.mxu0 %v398
        %498 = vmatmul.bf16.gmra.mxu0 %v462
        %v499 = vpop.f32.mrf.mxu0
        %v500 = vadd.f32 0.0, %v499
        %v501 = vpop.f32.mrf.mxu0
        %502 = vdwg.mxu0
        %503 = vmatpush.bf16.msra.mxu0 0
        %504 = vmatpush.bf16.msra.mxu0 0
        %505 = vmatpush.bf16.msra.mxu0 0
        %506 = vmatpush.bf16.msra.mxu0 0
        %507 = vmatpush.bf16.msra.mxu0 %v423
        %508 = vmatpush.bf16.msra.mxu0 %v415
        %509 = vmatpush.bf16.msra.mxu0 %v407
        %510 = vmatpush.bf16.msra.mxu0 %v399
        %511 = vmatmul.bf16.gmra.mxu0 %v462
        %v512 = vpop.f32.mrf.mxu0
        %v513 = vadd.f32 0.0, %v512
        %v514 = vpop.f32.mrf.mxu0
        %515 = vdwg.mxu0
        %516 = vmatpush.bf16.msra.mxu0 0
        %517 = vmatpush.bf16.msra.mxu0 0
        %518 = vmatpush.bf16.msra.mxu0 0
        %519 = vmatpush.bf16.msra.mxu0 0
        %520 = vmatpush.bf16.msra.mxu0 %v424
        %521 = vmatpush.bf16.msra.mxu0 %v416
        %522 = vmatpush.bf16.msra.mxu0 %v408
        %523 = vmatpush.bf16.msra.mxu0 %v400
        %524 = vmatmul.bf16.gmra.mxu0 %v462
        %v525 = vpop.f32.mrf.mxu0
        %v526 = vadd.f32 0.0, %v525
        %v527 = vpop.f32.mrf.mxu0
        %528 = vdwg.mxu0
        %529 = vmatpush.bf16.msra.mxu0 0
        %530 = vmatpush.bf16.msra.mxu0 0
        %531 = vmatpush.bf16.msra.mxu0 0
        %532 = vmatpush.bf16.msra.mxu0 0
        %533 = vmatpush.bf16.msra.mxu0 %v425
        %534 = vmatpush.bf16.msra.mxu0 %v417
        %535 = vmatpush.bf16.msra.mxu0 %v409
        %536 = vmatpush.bf16.msra.mxu0 %v401
        %537 = vmatmul.bf16.gmra.mxu0 %v462
        %v538 = vpop.f32.mrf.mxu0
        %v539 = vadd.f32 0.0, %v538
        %v540 = vpop.f32.mrf.mxu0
        %541 = vdwg.mxu0
        %542 = vmatpush.bf16.msra.mxu0 0
        %543 = vmatpush.bf16.msra.mxu0 0
        %544 = vmatpush.bf16.msra.mxu0 0
        %545 = vmatpush.bf16.msra.mxu0 0
        %546 = vmatpush.bf16.msra.mxu0 %v426
        %547 = vmatpush.bf16.msra.mxu0 %v418
        %548 = vmatpush.bf16.msra.mxu0 %v410
        %549 = vmatpush.bf16.msra.mxu0 %v402
        %550 = vmatmul.bf16.gmra.mxu0 %v462
        %v551 = vpop.f32.mrf.mxu0
        %v552 = vadd.f32 0.0, %v551
        %v553 = vpop.f32.mrf.mxu0
        %554 = vdwg.mxu0
        %555 = vmatpush.bf16.msra.mxu0 0
        %556 = vmatpush.bf16.msra.mxu0 0
        %557 = vmatpush.bf16.msra.mxu0 0
        %558 = vmatpush.bf16.msra.mxu0 0
        %559 = vmatpush.bf16.msra.mxu0 %v427
        %560 = vmatpush.bf16.msra.mxu0 %v419
        %561 = vmatpush.bf16.msra.mxu0 %v411
        %562 = vmatpush.bf16.msra.mxu0 %v403
        %563 = vmatmul.bf16.gmra.mxu0 %v462
        %v564 = vpop.f32.mrf.mxu0
        %v565 = vadd.f32 0.0, %v564
        %v566 = vpop.f32.mrf.mxu0
        %567 = vdwg.mxu0
        %v568 = vpack.c.bf16 %v487, %v474
        %v569 = vpack.c.bf16 %v513, %v500
        %v570 = vpack.c.bf16 %v539, %v526
        %v571 = vpack.c.bf16 %v565, %v552
        %572 = vst [vmem:[%s260] sm:$0xff] %v568
        %573 = vst [vmem:[%s260 + $0x8] sm:$0xff] %v569
        %574 = vst [vmem:[%s260 + $0x10] sm:$0xff] %v570
        %575 = vst [vmem:[%s260 + $0x18] sm:$0xff] %v571
        %v576 = vadd.f32 %v474, %v487
        %v577 = vadd.f32 %v576, %v500
        %v578 = vadd.f32 %v577, %v513
        %v579 = vadd.f32 %v578, %v526
        %v580 = vadd.f32 %v579, %v539
        %v581 = vadd.f32 %v580, %v552
        %v582 = vadd.f32 %v581, %v565
        %583 = vadd.xlane.f32.xlu0 %v582
        %v584 = vpop.xlane.xlu0 %583
        %v585 = vmul.f32 %v474, %v474
        %v586 = vmul.f32 %v487, %v487
        %v587 = vmul.f32 %v500, %v500
        %v588 = vmul.f32 %v513, %v513
        %v589 = vmul.f32 %v526, %v526
        %v590 = vmul.f32 %v539, %v539
        %v591 = vmul.f32 %v552, %v552
        %v592 = vmul.f32 %v565, %v565
        %v593 = vadd.f32 %v585, %v586
        %v594 = vadd.f32 %v593, %v587
        %v595 = vadd.f32 %v594, %v588
        %v596 = vadd.f32 %v595, %v589
        %v597 = vadd.f32 %v596, %v590
        %v598 = vadd.f32 %v597, %v591
        %v599 = vadd.f32 %v598, %v592
        %600 = vadd.xlane.f32.xlu0 %v599
        %v601 = vpop.xlane.xlu0 %600
        %v602 = vlaneseq
        %v603 = vshrl.u32 %v602, 7
        %vm604 = vcmp.eq.s32.totalorder %v603, 0
        %vm605 = vcmp.eq.s32.totalorder %v603, 1
        %v607 = vlaneseq
        %v608 = vand.u32 %v607, 127
        %v609 = vperm.slane %v601, %v608
        %vm610 = vcmask 1042434
        %v611 = vsel %vm610, %v609, %v609
        %vm612 = vcmask 1043459
        %v613 = vsel %vm612, %v609, %v611
        %vm614 = vcmask 1044484
        %v615 = vsel %vm614, %v609, %v613
        %vm616 = vcmask 1045509
        %v617 = vsel %vm616, %v609, %v615
        %vm618 = vcmask 1046534
        %v619 = vsel %vm618, %v609, %v617
        %vm620 = vcmask 1047559
        %v621 = vsel %vm620, %v609, %v619
        %v623 = vsel %vm605, %v621, 0.0
        %v625 = vperm.slane %v584, %v608
        %v626 = vsel %vm610, %v625, %v625
        %v627 = vsel %vm612, %v625, %v626
        %v628 = vsel %vm614, %v625, %v627
        %v629 = vsel %vm616, %v625, %v628
        %v630 = vsel %vm618, %v625, %v629
        %v631 = vsel %vm620, %v625, %v630
        %v633 = vsel %vm604, %v631, %v623
        %vm634 = vcmask 64512
        %635 = vst.msk [vmem:[%s265] sm:$0xff] %vm634, %v633
        %s636 = smul.u32 8, %s15
        %p637 = scmp.lt.s32.totalorder %s636, 63
        %s638 = scalar_select %p637, %s636, 63
        %s639 = smul.addr %s638, 4
        %s640 = scalar_lea.vmem %s2, %s639
        %p641 = scmp.lt.s32.totalorder %s15, 7
        %s642 = scalar_select %p641, %s15, 7
        %s643 = smul.addr %s642, 8
        %s644 = scalar_lea.vmem %s3, %s643
        // Predicated region
        $region52: #{discriminator_forward.4} parent=46 // pred_check
          %p645 = pneg %p80
        $region53: #{discriminator_forward.4} parent=46 // pred_check_branch
          %647 = sbr.rel (%p645) target = $region55
        $region54: #{discriminator_forward.4} parent=46 // pred_region
          %s648 = smul.u32 8, %s15
        $region55: #{discriminator_forward.4} parent=46 // pred_fallthru
          _
        // Predicated region
        $region56: #{discriminator_forward.4} parent=46 // pred_check
          %p649 = pneg %p106
        $region57: #{discriminator_forward.4} parent=46 // pred_check_branch
          %651 = sbr.rel (%p649) target = $region59
        $region58: #{discriminator_forward.4} parent=46 // pred_region
          _
        $region59: #{discriminator_forward.4} parent=46 // pred_fallthru
          _
      $region47: #{discriminator_forward.4} parent=5 // pred_fallthru
        _
      %p652 = scmp.le.s32.totalorder 2, %s10
      // Predicated region
      $region60: #{discriminator_forward.4} parent=5 // pred_check
        %p653 = pneg %p652
      $region61: #{discriminator_forward.4} parent=5 // pred_check_branch
        %655 = sbr.rel (%p653) target = $region63
      $region62: #{discriminator_forward.4} parent=5 // pred_region
        %s656 = ssub.s32 %s10, 2
        // Predicated region
        $region64: #{discriminator_forward.4} parent=62 // pred_check
          %p657 = pneg %p86
        $region65: #{discriminator_forward.4} parent=62 // pred_check_branch
          %659 = sbr.rel (%p657) target = $region67
        $region66: #{discriminator_forward.4} parent=62 // pred_region
          %s660 = smul.u32 8, %s16
          %p661 = scmp.lt.s32.totalorder %s660, 63
          %s662 = scalar_select %p661, %s660, 63
          %s663 = smul.addr %s662, 4
          %s664 = scalar_lea.vmem %s2, %s663
        $region67: #{discriminator_forward.4} parent=62 // pred_fallthru
          _
        // Predicated region
        $region68: #{discriminator_forward.4} parent=62 // pred_check
          %p665 = pneg %p112
        $region69: #{discriminator_forward.4} parent=62 // pred_check_branch
          %667 = sbr.rel (%p665) target = $region71
        $region70: #{discriminator_forward.4} parent=62 // pred_region
          %p668 = scmp.lt.s32.totalorder %s16, 7
          %s669 = scalar_select %p668, %s16, 7
          %s670 = smul.addr %s669, 8
          %s671 = scalar_lea.vmem %s3, %s670
        $region71: #{discriminator_forward.4} parent=62 // pred_fallthru
          _
      $region63: #{discriminator_forward.4} parent=5 // pred_fallthru
        _
    $region6: #{discriminator_forward.4} parent=1 // loop_footer
      %s14 = sadd.s32 1, %s10
    $region7: #{discriminator_forward.4} parent=1 // loop_footer_branch
      %9 = sbr.rel target = $region3
    $region8: #{discriminator_forward.4} parent=1 // loop_exit
      _

// kernel: tile.13
$region0: #{tile.13}
  #allocation0 [shape = 's32[1]{0}', space=sflag, size = 0x4, scoped, tag = 'scoped memory for tile.13']
  %s0 = inlined_call_operand.vmem [shape: f32[8], index: 0, kind: input, shape index: {}]
  %s1 = inlined_call_operand.vmem [shape: f32[16,8], index: 1, kind: output, shape index: {}]
  // Predicated region
  $region2: #{tile.13} parent=0 // pred_check
    _
  $region3: #{tile.13} parent=0 // pred_check_branch
    %3 = sbr.rel (0) target = $region5
  $region4: #{tile.13} parent=0 // pred_region
    _
  $region5: #{tile.13} parent=0 // pred_fallthru
    _
  %v4 = vld [vmem:[%s0] ss:$0 sm:$0xff]
  %5 = vst [vmem:[%s1] sm:$0xff] %v4
  %s6 = scalar_lea.vmem %s1, 8
  %7 = vst [vmem:[%s6] sm:$0xff] %v4

// kernel: tile.0
$region0: #{tile.0}
  %s0 = inlined_call_operand.vmem [shape: f32[16,8], index: 0, kind: input, shape index: {}]
  %s1 = inlined_call_operand.vmem [shape: f32[128,1], index: 1, kind: output, shape index: {}]
  %v2 = vld [vmem:[%s0] sm:$0xff]
  %vm3 = vcmask 7168
  %4 = vst.msk [vmem:[%s1] ss:$8 sm:$0xf] %vm3, %v2
  %5 = vst.msk [vmem:[%s1] ss:$8 sm:$0xf0] %vm3, %v2
  %s6 = scalar_lea.vmem %s0, 8
  %v7 = vld [vmem:[%s6] sm:$0xff]
  %vm8 = vcmask 7168
  %s9 = scalar_lea.vmem %s1, 64
  %10 = vst.msk [vmem:[%s9] ss:$8 sm:$0xf] %vm8, %v7
  %s11 = scalar_lea.vmem %s1, 64
  %12 = vst.msk [vmem:[%s11] ss:$8 sm:$0xf0] %vm8, %v7
  %v13 = vld [vmem:[%s0] sm:$0xff]
  %14 = vrot.lane.b32.xlu0 %v13, 127
  %v15 = vpop.permute.xlu0 %14
  %vm16 = vcmask 7168
  %s17 = scalar_lea.vmem %s1, 1
  %18 = vst.msk [vmem:[%s17] ss:$8 sm:$0xf] %vm16, %v15
  %s19 = scalar_lea.vmem %s1, 1
  %20 = vst.msk [vmem:[%s19] ss:$8 sm:$0xf0] %vm16, %v15
  %s21 = scalar_lea.vmem %s0, 8
  %v22 = vld [vmem:[%s21] sm:$0xff]
  %23 = vrot.lane.b32.xlu0 %v22, 127
  %v24 = vpop.permute.xlu0 %23
  %vm25 = vcmask 7168
  %s26 = scalar_lea.vmem %s1, 65
  %27 = vst.msk [vmem:[%s26] ss:$8 sm:$0xf] %vm25, %v24
  %s28 = scalar_lea.vmem %s1, 65
  %29 = vst.msk [vmem:[%s28] ss:$8 sm:$0xf0] %vm25, %v24
  %v30 = vld [vmem:[%s0] sm:$0xff]
  %31 = vrot.lane.b32.xlu0 %v30, 126
  %v32 = vpop.permute.xlu0 %31
  %vm33 = vcmask 7168
  %s34 = scalar_lea.vmem %s1, 2
  %35 = vst.msk [vmem:[%s34] ss:$8 sm:$0xf] %vm33, %v32
  %s36 = scalar_lea.vmem %s1, 2
  %37 = vst.msk [vmem:[%s36] ss:$8 sm:$0xf0] %vm33, %v32
  %s38 = scalar_lea.vmem %s0, 8
  %v39 = vld [vmem:[%s38] sm:$0xff]
  %40 = vrot.lane.b32.xlu0 %v39, 126
  %v41 = vpop.permute.xlu0 %40
  %vm42 = vcmask 7168
  %s43 = scalar_lea.vmem %s1, 66
  %44 = vst.msk [vmem:[%s43] ss:$8 sm:$0xf] %vm42, %v41
  %s45 = scalar_lea.vmem %s1, 66
  %46 = vst.msk [vmem:[%s45] ss:$8 sm:$0xf0] %vm42, %v41
  %v47 = vld [vmem:[%s0] sm:$0xff]
  %48 = vrot.lane.b32.xlu0 %v47, 125
  %v49 = vpop.permute.xlu0 %48
  %vm50 = vcmask 7168
  %s51 = scalar_lea.vmem %s1, 3
  %52 = vst.msk [vmem:[%s51] ss:$8 sm:$0xf] %vm50, %v49
  %s53 = scalar_lea.vmem %s1, 3
  %54 = vst.msk [vmem:[%s53] ss:$8 sm:$0xf0] %vm50, %v49
  %s55 = scalar_lea.vmem %s0, 8
  %v56 = vld [vmem:[%s55] sm:$0xff]
  %57 = vrot.lane.b32.xlu0 %v56, 125
  %v58 = vpop.permute.xlu0 %57
  %vm59 = vcmask 7168
  %s60 = scalar_lea.vmem %s1, 67
  %61 = vst.msk [vmem:[%s60] ss:$8 sm:$0xf] %vm59, %v58
  %s62 = scalar_lea.vmem %s1, 67
  %63 = vst.msk [vmem:[%s62] ss:$8 sm:$0xf0] %vm59, %v58
  %v64 = vld [vmem:[%s0] sm:$0xff]
  %65 = vrot.lane.b32.xlu0 %v64, 124
  %v66 = vpop.permute.xlu0 %65
  %vm67 = vcmask 7168
  %s68 = scalar_lea.vmem %s1, 4
  %69 = vst.msk [vmem:[%s68] ss:$8 sm:$0xf] %vm67, %v66
  %s70 = scalar_lea.vmem %s1, 4
  %71 = vst.msk [vmem:[%s70] ss:$8 sm:$0xf0] %vm67, %v66
  %s72 = scalar_lea.vmem %s0, 8
  %v73 = vld [vmem:[%s72] sm:$0xff]
  %74 = vrot.lane.b32.xlu0 %v73, 124
  %v75 = vpop.permute.xlu0 %74
  %vm76 = vcmask 7168
  %s77 = scalar_lea.vmem %s1, 68
  %78 = vst.msk [vmem:[%s77] ss:$8 sm:$0xf] %vm76, %v75
  %s79 = scalar_lea.vmem %s1, 68
  %80 = vst.msk [vmem:[%s79] ss:$8 sm:$0xf0] %vm76, %v75
  %v81 = vld [vmem:[%s0] sm:$0xff]
  %82 = vrot.lane.b32.xlu0 %v81, 123
  %v83 = vpop.permute.xlu0 %82
  %vm84 = vcmask 7168
  %s85 = scalar_lea.vmem %s1, 5
  %86 = vst.msk [vmem:[%s85] ss:$8 sm:$0xf] %vm84, %v83
  %s87 = scalar_lea.vmem %s1, 5
  %88 = vst.msk [vmem:[%s87] ss:$8 sm:$0xf0] %vm84, %v83
  %s89 = scalar_lea.vmem %s0, 8
  %v90 = vld [vmem:[%s89] sm:$0xff]
  %91 = vrot.lane.b32.xlu0 %v90, 123
  %v92 = vpop.permute.xlu0 %91
  %vm93 = vcmask 7168
  %s94 = scalar_lea.vmem %s1, 69
  %95 = vst.msk [vmem:[%s94] ss:$8 sm:$0xf] %vm93, %v92
  %s96 = scalar_lea.vmem %s1, 69
  %97 = vst.msk [vmem:[%s96] ss:$8 sm:$0xf0] %vm93, %v92
  %v98 = vld [vmem:[%s0] sm:$0xff]
  %99 = vrot.lane.b32.xlu0 %v98, 122
  %v100 = vpop.permute.xlu0 %99
  %vm101 = vcmask 7168
  %s102 = scalar_lea.vmem %s1, 6
  %103 = vst.msk [vmem:[%s102] ss:$8 sm:$0xf] %vm101, %v100
  %s104 = scalar_lea.vmem %s1, 6
  %105 = vst.msk [vmem:[%s104] ss:$8 sm:$0xf0] %vm101, %v100
  %s106 = scalar_lea.vmem %s0, 8
  %v107 = vld [vmem:[%s106] sm:$0xff]
  %108 = vrot.lane.b32.xlu0 %v107, 122
  %v109 = vpop.permute.xlu0 %108
  %vm110 = vcmask 7168
  %s111 = scalar_lea.vmem %s1, 70
  %112 = vst.msk [vmem:[%s111] ss:$8 sm:$0xf] %vm110, %v109
  %s113 = scalar_lea.vmem %s1, 70
  %114 = vst.msk [vmem:[%s113] ss:$8 sm:$0xf0] %vm110, %v109
  %v115 = vld [vmem:[%s0] sm:$0xff]
  %116 = vrot.lane.b32.xlu0 %v115, 121
  %v117 = vpop.permute.xlu0 %116
  %vm118 = vcmask 7168
  %s119 = scalar_lea.vmem %s1, 7
  %120 = vst.msk [vmem:[%s119] ss:$8 sm:$0xf] %vm118, %v117
  %s121 = scalar_lea.vmem %s1, 7
  %122 = vst.msk [vmem:[%s121] ss:$8 sm:$0xf0] %vm118, %v117
  %s123 = scalar_lea.vmem %s0, 8
  %v124 = vld [vmem:[%s123] sm:$0xff]
  %125 = vrot.lane.b32.xlu0 %v124, 121
  %v126 = vpop.permute.xlu0 %125
  %vm127 = vcmask 7168
  %s128 = scalar_lea.vmem %s1, 71
  %129 = vst.msk [vmem:[%s128] ss:$8 sm:$0xf] %vm127, %v126
  %s130 = scalar_lea.vmem %s1, 71
  %131 = vst.msk [vmem:[%s130] ss:$8 sm:$0xf0] %vm127, %v126

// kernel: discriminator_forward.5
$region0: #{discriminator_forward.5}
  #allocation0 [shape = 'u32[]', space=smem, size = 0x4, offset = 0x4, fixed_abs, tag = 'smem constant byte address 0x4 - core index']
  #allocation1 [shape = 'u32[72,128]{1,0:T(1,128)}', space=vmem, size = 0x9000, scoped, tag = 'internal scratch']
  %s0 = inlined_call_operand.vmem [shape: f32[128,1], index: 0, kind: input, shape index: {}]
  %s1 = inlined_call_operand.vmem [shape: f32[128,1], index: 1, kind: input, shape index: {}]
  %s2 = inlined_call_operand.vmem [shape: bf16[128,2048], index: 2, kind: input, shape index: {}]
  %s3 = inlined_call_operand.vmem [shape: bf16[16,128], index: 3, kind: input, shape index: {}]
  %s4 = inlined_call_operand.vmem [shape: bf16[16,2048], index: 4, kind: output, shape index: {0}]
  %s5 = inlined_call_operand.vmem [shape: f32[64,16], index: 5, kind: output, shape index: {1}]
  %6 = xla_tuple %s4, %s5
  %s7 = sld [smem:[#allocation0]]
  $region129: #{discriminator_forward.5} parent=0
    _
  %s9 = ssub.s32 1, %s7
  %s10 = scalar_select 0, %s9, %s7
  $region1: #{discriminator_forward.5} parent=0
    #allocation2 [shape = 'u8[131072]{0}', space=vmem, size = 0x20000, scoped, tag = 'input window, operand 2']
    #allocation3 [shape = 'u8[16384]{0}', space=vmem, size = 0x4000, scoped, tag = 'output window, operand 0']
    loop: start=0, step=1, limit=10
    $region2: #{discriminator_forward.5} parent=1 // loop_pre_header
      _
    $region3: #{discriminator_forward.5} parent=1 // loop_header
      %s12 = sphi 0, %s16
      %p13 = scmp.ge.s32.totalorder %s12, 10
      %s20 = sphi 0, %s20
      %s22 = sphi 0, %s20
      %s23 = sphi 0, %s22
      %s37 = sphi 0, %s23
      %s41 = sphi 0, %s41
      %s43 = sphi 0, %s41
      %s44 = sphi 0, %s43
      %s58 = sphi 0, %s44
      %s64 = sphi 0, %s66
      %s67 = sphi 0, %s64
      %s68 = sphi 0, %s67
      %s84 = sphi 0, %s68
      %s88 = sphi 0, %s88
      %s90 = sphi 0, %s88
      %s91 = sphi 0, %s90
      %s105 = sphi 0, %s91
      %s111 = sphi 0, %s113
      %s114 = sphi 0, %s111
      %s115 = sphi 0, %s114
      %s131 = sphi 0, %s115
      %s137 = sphi 0, %s139
      %s140 = sphi 0, %s137
      %s141 = sphi 0, %s140
      %s157 = sphi 0, %s141
    $region4: #{discriminator_forward.5} parent=1 // loop_header_branch
      %15 = sbr.rel (%p13) target = $region8
    $region5: #{discriminator_forward.5} parent=1 // loop_body
      %s17 = ssub.s32 %s12, 1
      %s18 = ssub.s32 %s12, 2
      %s19 = sadd.s32 %s12, 1
      %s21 = sadd.s32 %s20, 1
      %p24 = scmp.eq.s32.totalorder %s12, 7
      %p25 = scmp.ne.s32.totalorder %s20, %s22
      %p26 = scmp.eq.s32.totalorder %s12, 0
      %p27 = por %p25, %p26
      %p28 = scmp.ne.s32.totalorder %s20, %s22
      %p29 = scmp.eq.s32.totalorder %s17, 7
      %p30 = por %p28, %p29
      %p31 = scmp.ne.s32.totalorder %s22, %s23
      %p32 = scmp.eq.s32.totalorder %s17, 0
      %p33 = por %p31, %p32
      %p34 = scmp.ne.s32.totalorder %s22, %s23
      %p35 = scmp.eq.s32.totalorder %s18, 7
      %p36 = por %p34, %p35
      %p38 = scmp.ne.s32.totalorder %s23, %s37
      %p39 = scmp.eq.s32.totalorder %s18, 0
      %p40 = por %p38, %p39
      %s42 = sadd.s32 %s41, 1
      %p45 = scmp.eq.s32.totalorder %s12, 7
      %p46 = scmp.ne.s32.totalorder %s41, %s43
      %p47 = scmp.eq.s32.totalorder %s12, 0
      %p48 = por %p46, %p47
      %p49 = scmp.ne.s32.totalorder %s41, %s43
      %p50 = scmp.eq.s32.totalorder %s17, 7
      %p51 = por %p49, %p50
      %p52 = scmp.ne.s32.totalorder %s43, %s44
      %p53 = scmp.eq.s32.totalorder %s17, 0
      %p54 = por %p52, %p53
      %p55 = scmp.ne.s32.totalorder %s43, %s44
      %p56 = scmp.eq.s32.totalorder %s18, 7
      %p57 = por %p55, %p56
      %p59 = scmp.ne.s32.totalorder %s44, %s58
      %p60 = scmp.eq.s32.totalorder %s18, 0
      %p61 = por %p59, %p60
      %s62 = ssub.s32 %s12, %s19
      %p63 = scmp.eq.s32.totalorder %s62, 0
      %s65 = sadd.s32 %s64, 1
      %s66 = scalar_select %p63, %s64, %s65
      %p69 = pneg %p63
      %p70 = scmp.eq.s32.totalorder %s12, 7
      %p71 = por %p69, %p70
      %p72 = scmp.ne.s32.totalorder %s64, %s67
      %p73 = scmp.eq.s32.totalorder %s12, 0
      %p74 = por %p72, %p73
      %p75 = scmp.ne.s32.totalorder %s64, %s67
      %p76 = scmp.eq.s32.totalorder %s17, 7
      %p77 = por %p75, %p76
      %p78 = scmp.ne.s32.totalorder %s67, %s68
      %p79 = scmp.eq.s32.totalorder %s17, 0
      %p80 = por %p78, %p79
      %p81 = scmp.ne.s32.totalorder %s67, %s68
      %p82 = scmp.eq.s32.totalorder %s18, 7
      %p83 = por %p81, %p82
      %p85 = scmp.ne.s32.totalorder %s68, %s84
      %p86 = scmp.eq.s32.totalorder %s18, 0
      %p87 = por %p85, %p86
      %s89 = sadd.s32 %s88, 1
      %p92 = scmp.eq.s32.totalorder %s12, 7
      %p93 = scmp.ne.s32.totalorder %s88, %s90
      %p94 = scmp.eq.s32.totalorder %s12, 0
      %p95 = por %p93, %p94
      %p96 = scmp.ne.s32.totalorder %s88, %s90
      %p97 = scmp.eq.s32.totalorder %s17, 7
      %p98 = por %p96, %p97
      %p99 = scmp.ne.s32.totalorder %s90, %s91
      %p100 = scmp.eq.s32.totalorder %s17, 0
      %p101 = por %p99, %p100
      %p102 = scmp.ne.s32.totalorder %s90, %s91
      %p103 = scmp.eq.s32.totalorder %s18, 7
      %p104 = por %p102, %p103
      %p106 = scmp.ne.s32.totalorder %s91, %s105
      %p107 = scmp.eq.s32.totalorder %s18, 0
      %p108 = por %p106, %p107
      %s109 = ssub.s32 %s12, %s19
      %p110 = scmp.eq.s32.totalorder %s109, 0
      %s112 = sadd.s32 %s111, 1
      %s113 = scalar_select %p110, %s111, %s112
      %p116 = pneg %p110
      %p117 = scmp.eq.s32.totalorder %s12, 7
      %p118 = por %p116, %p117
      %p119 = scmp.ne.s32.totalorder %s111, %s114
      %p120 = scmp.eq.s32.totalorder %s12, 0
      %p121 = por %p119, %p120
      %p122 = scmp.ne.s32.totalorder %s111, %s114
      %p123 = scmp.eq.s32.totalorder %s17, 7
      %p124 = por %p122, %p123
      %p125 = scmp.ne.s32.totalorder %s114, %s115
      %p126 = scmp.eq.s32.totalorder %s17, 0
      %p127 = por %p125, %p126
      %p128 = scmp.ne.s32.totalorder %s114, %s115
      %p129 = scmp.eq.s32.totalorder %s18, 7
      %p130 = por %p128, %p129
      %p132 = scmp.ne.s32.totalorder %s115, %s131
      %p133 = scmp.eq.s32.totalorder %s18, 0
      %p134 = por %p132, %p133
      %s135 = ssub.s32 %s12, %s19
      %p136 = scmp.eq.s32.totalorder %s135, 0
      %s138 = sadd.s32 %s137, 1
      %s139 = scalar_select %p136, %s137, %s138
      %p142 = pneg %p136
      %p143 = scmp.eq.s32.totalorder %s12, 7
      %p144 = por %p142, %p143
      %p145 = scmp.ne.s32.totalorder %s137, %s140
      %p146 = scmp.eq.s32.totalorder %s12, 0
      %p147 = por %p145, %p146
      %p148 = scmp.ne.s32.totalorder %s137, %s140
      %p149 = scmp.eq.s32.totalorder %s17, 7
      %p150 = por %p148, %p149
      %p151 = scmp.ne.s32.totalorder %s140, %s141
      %p152 = scmp.eq.s32.totalorder %s17, 0
      %p153 = por %p151, %p152
      %p154 = scmp.ne.s32.totalorder %s140, %s141
      %p155 = scmp.eq.s32.totalorder %s18, 7
      %p156 = por %p154, %p155
      %p158 = scmp.ne.s32.totalorder %s141, %s157
      %p159 = scmp.eq.s32.totalorder %s18, 0
      %p160 = por %p158, %p159
      %p161 = scmp.le.s32.totalorder 1, %s12
      %p162 = scmp.lt.s32.totalorder %s12, 9
      %p163 = pnand %p161, %p162
      %p164 = pneg %p163
      // Predicated region
      $region9: #{discriminator_forward.5} parent=5 // pred_check
        _
      $region10: #{discriminator_forward.5} parent=5 // pred_check_branch
        %166 = sbr.rel (%p163) target = $region12
      $region11: #{discriminator_forward.5} parent=5 // pred_region
        %s167 = ssub.s32 %s12, 1
        // Predicated region
        $region13: #{discriminator_forward.5} parent=11 // pred_check
          %p168 = pneg %p33
        $region14: #{discriminator_forward.5} parent=11 // pred_check_branch
          %170 = sbr.rel (%p168) target = $region16
        $region15: #{discriminator_forward.5} parent=11 // pred_region
          _
        $region16: #{discriminator_forward.5} parent=11 // pred_fallthru
          _
        // Predicated region
        $region17: #{discriminator_forward.5} parent=11 // pred_check
          %p171 = pneg %p54
        $region18: #{discriminator_forward.5} parent=11 // pred_check_branch
          %173 = sbr.rel (%p171) target = $region20
        $region19: #{discriminator_forward.5} parent=11 // pred_region
          _
        $region20: #{discriminator_forward.5} parent=11 // pred_fallthru
          _
        // Predicated region
        $region21: #{discriminator_forward.5} parent=11 // pred_check
          %p174 = pneg %p101
        $region22: #{discriminator_forward.5} parent=11 // pred_check_branch
          %176 = sbr.rel (%p174) target = $region24
        $region23: #{discriminator_forward.5} parent=11 // pred_region
          _
        $region24: #{discriminator_forward.5} parent=11 // pred_fallthru
          _
      $region12: #{discriminator_forward.5} parent=5 // pred_fallthru
        _
      %p177 = scmp.lt.s32.totalorder %s12, 8
      // Predicated region
      $region25: #{discriminator_forward.5} parent=5 // pred_check
        %p178 = pneg %p177
      $region26: #{discriminator_forward.5} parent=5 // pred_check_branch
        %180 = sbr.rel (%p178) target = $region28
      $region27: #{discriminator_forward.5} parent=5 // pred_region
        // Predicated region
        $region29: #{discriminator_forward.5} parent=27 // pred_check
          %p181 = pneg %p74
        $region30: #{discriminator_forward.5} parent=27 // pred_check_branch
          %183 = sbr.rel (%p181) target = $region32
        $region31: #{discriminator_forward.5} parent=27 // pred_region
          %s184 = sand.u32 %s64, 1
          %s185 = sand.u32 %s64, 1
          %s186 = smul.addr %s185, 128
          %s187 = scalar_lea.vmem [#allocation2], %s186
          %s188 = smul.u32 2, %s12
          %s189 = smul.addr %s188, 4
          %s190 = scalar_lea.vmem %s2, %s189
          // Predicated region
          $region33: #{discriminator_forward.5} parent=31 // pred_check
            _
          $region34: #{discriminator_forward.5} parent=31 // pred_check_branch
            %192 = sbr.rel (0) target = $region36
          $region35: #{discriminator_forward.5} parent=31 // pred_region
            // Predicated region
            $region37: #{discriminator_forward.5} parent=35 // pred_check
              _
            $region38: #{discriminator_forward.5} parent=35 // pred_check_branch
              %194 = sbr.rel (0) target = $region40
            $region39: #{discriminator_forward.5} parent=35 // pred_region
              // Predicated region
              $region52: #{discriminator_forward.5} parent=39 // pred_check
                _
              $region53: #{discriminator_forward.5} parent=39 // pred_check_branch
                %240 = sbr.rel (0) target = $region55
              $region54: #{discriminator_forward.5} parent=39 // pred_region
                loop: start=0, step=1, limit=1
                $region56: #{discriminator_forward.5} parent=54 // loop_pre_header
                  _
                $region57: #{discriminator_forward.5} parent=54 // loop_header
                  %s242 = sphi 0, %s246
                  %p243 = scmp.ge.s32.totalorder %s242, 1
                  %s247 = sphi %s190, %s190
                  %s248 = sphi %s187, %s187
                $region58: #{discriminator_forward.5} parent=54 // loop_header_branch
                  %245 = sbr.rel (%p243) target = $region62
                $region59: #{discriminator_forward.5} parent=54 // loop_body
                  %v249 = vld [vmem:[%s247] sm:$0xff]
                  %250 = vst [vmem:[%s248] sm:$0xff] %v249
                  %v251 = vld [vmem:[%s247 + $0x40] sm:$0xff]
                  %252 = vst [vmem:[%s248 + $0x8] sm:$0xff] %v251
                  %v253 = vld [vmem:[%s247 + $0x80] sm:$0xff]
                  %254 = vst [vmem:[%s248 + $0x10] sm:$0xff] %v253
                  %v255 = vld [vmem:[%s247 + $0xc0] sm:$0xff]
                  %256 = vst [vmem:[%s248 + $0x18] sm:$0xff] %v255
                  %v257 = vld [vmem:[%s247 + $0x100] sm:$0xff]
                  %258 = vst [vmem:[%s248 + $0x20] sm:$0xff] %v257
                  %v259 = vld [vmem:[%s247 + $0x140] sm:$0xff]
                  %260 = vst [vmem:[%s248 + $0x28] sm:$0xff] %v259
                  %v261 = vld [vmem:[%s247 + $0x180] sm:$0xff]
                  %262 = vst [vmem:[%s248 + $0x30] sm:$0xff] %v261
                  %v263 = vld [vmem:[%s247 + $0x1c0] sm:$0xff]
                  %264 = vst [vmem:[%s248 + $0x38] sm:$0xff] %v263
                  %v265 = vld [vmem:[%s247 + $0x200] sm:$0xff]
                  %266 = vst [vmem:[%s248 + $0x40] sm:$0xff] %v265
                  %v267 = vld [vmem:[%s247 + $0x240] sm:$0xff]
                  %268 = vst [vmem:[%s248 + $0x48] sm:$0xff] %v267
                  %v269 = vld [vmem:[%s247 + $0x280] sm:$0xff]
                  %270 = vst [vmem:[%s248 + $0x50] sm:$0xff] %v269
                  %v271 = vld [vmem:[%s247 + $0x2c0] sm:$0xff]
                  %272 = vst [vmem:[%s248 + $0x58] sm:$0xff] %v271
                  %v273 = vld [vmem:[%s247 + $0x300] sm:$0xff]
                  %274 = vst [vmem:[%s248 + $0x60] sm:$0xff] %v273
                  %v275 = vld [vmem:[%s247 + $0x340] sm:$0xff]
                  %276 = vst [vmem:[%s248 + $0x68] sm:$0xff] %v275
                  %v277 = vld [vmem:[%s247 + $0x380] sm:$0xff]
                  %278 = vst [vmem:[%s248 + $0x70] sm:$0xff] %v277
                  %v279 = vld [vmem:[%s247 + $0x3c0] sm:$0xff]
                  %280 = vst [vmem:[%s248 + $0x78] sm:$0xff] %v279
                $region60: #{discriminator_forward.5} parent=54 // loop_footer
                  %s246 = sadd.s32 1, %s242
                $region61: #{discriminator_forward.5} parent=54 // loop_footer_branch
                  %241 = sbr.rel target = $region57
                $region62: #{discriminator_forward.5} parent=54 // loop_exit
                  _
              $region55: #{discriminator_forward.5} parent=39 // pred_fallthru
                _
              // Predicated region
              $region63: #{discriminator_forward.5} parent=39 // pred_check
                _
              $region64: #{discriminator_forward.5} parent=39 // pred_check_branch
                %282 = sbr.rel target = $region66
              $region65: #{discriminator_forward.5} parent=39 // pred_region
                _
              $region66: #{discriminator_forward.5} parent=39 // pred_fallthru
                _
            $region40: #{discriminator_forward.5} parent=35 // pred_fallthru
              _
            // Predicated region
            $region41: #{discriminator_forward.5} parent=35 // pred_check
              _
            $region42: #{discriminator_forward.5} parent=35 // pred_check_branch
              %196 = sbr.rel target = $region44
            $region43: #{discriminator_forward.5} parent=35 // pred_region
              %s198 = ssub.s32 256, 1
              loop: start=0, step=1, limit=1
              $region45: #{discriminator_forward.5} parent=43 // loop_pre_header
                _
              $region46: #{discriminator_forward.5} parent=43 // loop_header
                %s200 = sphi 0, %s204
                %p201 = scmp.ge.s32.totalorder %s200, 1
                %s205 = sphi %s190, %s190
                %s206 = sphi %s187, %s187
              $region47: #{discriminator_forward.5} parent=43 // loop_header_branch
                %203 = sbr.rel (%p201) target = $region51
              $region48: #{discriminator_forward.5} parent=43 // loop_body
                %v207 = vld [vmem:[%s205] sm:%s198]
                %208 = vst [vmem:[%s206] sm:%s198] %v207
                %v209 = vld [vmem:[%s205 + $0x40] sm:%s198]
                %210 = vst [vmem:[%s206 + $0x8] sm:%s198] %v209
                %v211 = vld [vmem:[%s205 + $0x80] sm:%s198]
                %212 = vst [vmem:[%s206 + $0x10] sm:%s198] %v211
                %v213 = vld [vmem:[%s205 + $0xc0] sm:%s198]
                %214 = vst [vmem:[%s206 + $0x18] sm:%s198] %v213
                %v215 = vld [vmem:[%s205 + $0x100] sm:%s198]
                %216 = vst [vmem:[%s206 + $0x20] sm:%s198] %v215
                %v217 = vld [vmem:[%s205 + $0x140] sm:%s198]
                %218 = vst [vmem:[%s206 + $0x28] sm:%s198] %v217
                %v219 = vld [vmem:[%s205 + $0x180] sm:%s198]
                %220 = vst [vmem:[%s206 + $0x30] sm:%s198] %v219
                %v221 = vld [vmem:[%s205 + $0x1c0] sm:%s198]
                %222 = vst [vmem:[%s206 + $0x38] sm:%s198] %v221
                %v223 = vld [vmem:[%s205 + $0x200] sm:%s198]
                %224 = vst [vmem:[%s206 + $0x40] sm:%s198] %v223
                %v225 = vld [vmem:[%s205 + $0x240] sm:%s198]
                %226 = vst [vmem:[%s206 + $0x48] sm:%s198] %v225
                %v227 = vld [vmem:[%s205 + $0x280] sm:%s198]
                %228 = vst [vmem:[%s206 + $0x50] sm:%s198] %v227
                %v229 = vld [vmem:[%s205 + $0x2c0] sm:%s198]
                %230 = vst [vmem:[%s206 + $0x58] sm:%s198] %v229
                %v231 = vld [vmem:[%s205 + $0x300] sm:%s198]
                %232 = vst [vmem:[%s206 + $0x60] sm:%s198] %v231
                %v233 = vld [vmem:[%s205 + $0x340] sm:%s198]
                %234 = vst [vmem:[%s206 + $0x68] sm:%s198] %v233
                %v235 = vld [vmem:[%s205 + $0x380] sm:%s198]
                %236 = vst [vmem:[%s206 + $0x70] sm:%s198] %v235
                %v237 = vld [vmem:[%s205 + $0x3c0] sm:%s198]
                %238 = vst [vmem:[%s206 + $0x78] sm:%s198] %v237
              $region49: #{discriminator_forward.5} parent=43 // loop_footer
                %s204 = sadd.s32 1, %s200
              $region50: #{discriminator_forward.5} parent=43 // loop_footer_branch
                %199 = sbr.rel target = $region46
              $region51: #{discriminator_forward.5} parent=43 // loop_exit
                _
            $region44: #{discriminator_forward.5} parent=35 // pred_fallthru
              _
          $region36: #{discriminator_forward.5} parent=31 // pred_fallthru
            _
          %283 = vnop
        $region32: #{discriminator_forward.5} parent=27 // pred_fallthru
          _
      $region28: #{discriminator_forward.5} parent=5 // pred_fallthru
        _
      %p284 = scmp.le.s32.totalorder 1, %s12
      %p285 = scmp.lt.s32.totalorder %s12, 9
      %p286 = pnand %p284, %p285
      %p287 = pneg %p286
      // Predicated region
      $region67: #{discriminator_forward.5} parent=5 // pred_check
        _
      $region68: #{discriminator_forward.5} parent=5 // pred_check_branch
        %289 = sbr.rel (%p286) target = $region70
      $region69: #{discriminator_forward.5} parent=5 // pred_region
        %s290 = ssub.s32 %s12, 1
        %s291 = sand.u32 %s67, 1
        %s292 = sand.u32 %s67, 1
        %s293 = smul.addr %s292, 128
        %s294 = scalar_lea.vmem [#allocation2], %s293
        // Predicated region
        $region71: #{discriminator_forward.5} parent=69 // pred_check
          %p295 = pneg %p80
        $region72: #{discriminator_forward.5} parent=69 // pred_check_branch
          %297 = sbr.rel (%p295) target = $region74
        $region73: #{discriminator_forward.5} parent=69 // pred_region
          _
        $region74: #{discriminator_forward.5} parent=69 // pred_fallthru
          _
        %p298 = pneg %p33
        %p299 = pneg %p30
        %p300 = pneg %p54
        %p301 = pneg %p51
        %s302 = sand.u32 %s67, 1
        %s303 = sand.u32 %s67, 1
        %s304 = smul.addr %s303, 128
        %s305 = scalar_lea.vmem [#allocation2], %s304
        %p306 = pneg %p80
        %p307 = pneg %p77
        %p308 = pneg %p101
        %p309 = pneg %p98
        %p310 = pneg %p127
        %p311 = pneg %p124
        %s312 = sand.u32 %s114, 1
        %s313 = sand.u32 %s114, 1
        %s314 = smul.addr %s313, 16
        %s315 = scalar_lea.vmem [#allocation3], %s314
        %p316 = pneg %p153
        %p317 = pneg %p150
        %p318 = scmp.lt.s32.totalorder %s17, 7
        %s319 = scalar_select %p318, %s17, 7
        %s320 = smul.addr %s319, 8
        %s321 = scalar_lea.vmem %s5, %s320
        %s322 = smul.u32 2, %s17
        %s323 = smul.u32 2, %s17
        %p324 = scmp.lt.s32.totalorder %s17, 7
        %s325 = scalar_select %p324, %s17, 7
        %s326 = smul.addr %s325, 8
        %s327 = scalar_lea.vmem %s5, %s326
        %v328 = vld [vmem:[%s294] sm:$0xff]
        %v329 = vld [vmem:[%s294 + $0x8] sm:$0xff]
        %v330 = vld [vmem:[%s294 + $0x10] sm:$0xff]
        %v331 = vld [vmem:[%s294 + $0x18] sm:$0xff]
        %v332 = vld [vmem:[%s294 + $0x20] sm:$0xff]
        %v333 = vld [vmem:[%s294 + $0x28] sm:$0xff]
        %v334 = vld [vmem:[%s294 + $0x30] sm:$0xff]
        %v335 = vld [vmem:[%s294 + $0x38] sm:$0xff]
        %v336 = vld [vmem:[%s294 + $0x40] sm:$0xff]
        %v337 = vld [vmem:[%s294 + $0x48] sm:$0xff]
        %v338 = vld [vmem:[%s294 + $0x50] sm:$0xff]
        %v339 = vld [vmem:[%s294 + $0x58] sm:$0xff]
        %v340 = vld [vmem:[%s294 + $0x60] sm:$0xff]
        %v341 = vld [vmem:[%s294 + $0x68] sm:$0xff]
        %v342 = vld [vmem:[%s294 + $0x70] sm:$0xff]
        %v343 = vld [vmem:[%s294 + $0x78] sm:$0xff]
        %v344 = vunpack.c.l.bf16 %v328
        %v345 = vunpack.c.h.bf16 %v328
        %v346 = vunpack.c.l.bf16 %v329
        %v347 = vunpack.c.h.bf16 %v329
        %v348 = vunpack.c.l.bf16 %v330
        %v349 = vunpack.c.h.bf16 %v330
        %v350 = vunpack.c.l.bf16 %v331
        %v351 = vunpack.c.h.bf16 %v331
        %v352 = vunpack.c.l.bf16 %v332
        %v353 = vunpack.c.h.bf16 %v332
        %v354 = vunpack.c.l.bf16 %v333
        %v355 = vunpack.c.h.bf16 %v333
        %v356 = vunpack.c.l.bf16 %v334
        %v357 = vunpack.c.h.bf16 %v334
        %v358 = vunpack.c.l.bf16 %v335
        %v359 = vunpack.c.h.bf16 %v335
        %v360 = vunpack.c.l.bf16 %v336
        %v361 = vunpack.c.h.bf16 %v336
        %v362 = vunpack.c.l.bf16 %v337
        %v363 = vunpack.c.h.bf16 %v337
        %v364 = vunpack.c.l.bf16 %v338
        %v365 = vunpack.c.h.bf16 %v338
        %v366 = vunpack.c.l.bf16 %v339
        %v367 = vunpack.c.h.bf16 %v339
        %v368 = vunpack.c.l.bf16 %v340
        %v369 = vunpack.c.h.bf16 %v340
        %v370 = vunpack.c.l.bf16 %v341
        %v371 = vunpack.c.h.bf16 %v341
        %v372 = vunpack.c.l.bf16 %v342
        %v373 = vunpack.c.h.bf16 %v342
        %v374 = vunpack.c.l.bf16 %v343
        %v375 = vunpack.c.h.bf16 %v343
        %v376 = vld [vmem:[%s0] sm:$0xff]
        %v377 = vld [vmem:[%s0 + $0x8] sm:$0xff]
        %v378 = vld [vmem:[%s0 + $0x10] sm:$0xff]
        %v379 = vld [vmem:[%s0 + $0x18] sm:$0xff]
        %v380 = vld [vmem:[%s0 + $0x20] sm:$0xff]
        %v381 = vld [vmem:[%s0 + $0x28] sm:$0xff]
        %v382 = vld [vmem:[%s0 + $0x30] sm:$0xff]
        %v383 = vld [vmem:[%s0 + $0x38] sm:$0xff]
        %v384 = vld [vmem:[%s0 + $0x40] sm:$0xff]
        %v385 = vld [vmem:[%s0 + $0x48] sm:$0xff]
        %v386 = vld [vmem:[%s0 + $0x50] sm:$0xff]
        %v387 = vld [vmem:[%s0 + $0x58] sm:$0xff]
        %v388 = vld [vmem:[%s0 + $0x60] sm:$0xff]
        %v389 = vld [vmem:[%s0 + $0x68] sm:$0xff]
        %v390 = vld [vmem:[%s0 + $0x70] sm:$0xff]
        %v391 = vld [vmem:[%s0 + $0x78] sm:$0xff]
        %393 = vset.pattern.permute.xlu0 0
        %394 = vperm.xlu0 %393, %v376
        %v395 = vpop.permute.xlu0 %394
        %398 = vset.pattern.permute.xlu0 0
        %399 = vperm.xlu0 %398, %v377
        %v400 = vpop.permute.xlu0 %399
        %403 = vset.pattern.permute.xlu0 0
        %404 = vperm.xlu0 %403, %v378
        %v405 = vpop.permute.xlu0 %404
        %408 = vset.pattern.permute.xlu0 0
        %409 = vperm.xlu0 %408, %v379
        %v410 = vpop.permute.xlu0 %409
        %413 = vset.pattern.permute.xlu0 0
        %414 = vperm.xlu0 %413, %v380
        %v415 = vpop.permute.xlu0 %414
        %418 = vset.pattern.permute.xlu0 0
        %419 = vperm.xlu0 %418, %v381
        %v420 = vpop.permute.xlu0 %419
        %423 = vset.pattern.permute.xlu0 0
        %424 = vperm.xlu0 %423, %v382
        %v425 = vpop.permute.xlu0 %424
        %428 = vset.pattern.permute.xlu0 0
        %429 = vperm.xlu0 %428, %v383
        %v430 = vpop.permute.xlu0 %429
        %433 = vset.pattern.permute.xlu0 0
        %434 = vperm.xlu0 %433, %v384
        %v435 = vpop.permute.xlu0 %434
        %438 = vset.pattern.permute.xlu0 0
        %439 = vperm.xlu0 %438, %v385
        %v440 = vpop.permute.xlu0 %439
        %443 = vset.pattern.permute.xlu0 0
        %444 = vperm.xlu0 %443, %v386
        %v445 = vpop.permute.xlu0 %444
        %448 = vset.pattern.permute.xlu0 0
        %449 = vperm.xlu0 %448, %v387
        %v450 = vpop.permute.xlu0 %449
        %453 = vset.pattern.permute.xlu0 0
        %454 = vperm.xlu0 %453, %v388
        %v455 = vpop.permute.xlu0 %454
        %458 = vset.pattern.permute.xlu0 0
        %459 = vperm.xlu0 %458, %v389
        %v460 = vpop.permute.xlu0 %459
        %463 = vset.pattern.permute.xlu0 0
        %464 = vperm.xlu0 %463, %v390
        %v465 = vpop.permute.xlu0 %464
        %468 = vset.pattern.permute.xlu0 0
        %469 = vperm.xlu0 %468, %v391
        %v470 = vpop.permute.xlu0 %469
        %v472 = vmul.f32 %v344, %v395
        %v473 = vmul.f32 %v345, %v395
        %v474 = vmul.f32 %v346, %v400
        %v475 = vmul.f32 %v347, %v400
        %v476 = vmul.f32 %v348, %v405
        %v477 = vmul.f32 %v349, %v405
        %v478 = vmul.f32 %v350, %v410
        %v479 = vmul.f32 %v351, %v410
        %v480 = vmul.f32 %v352, %v415
        %v481 = vmul.f32 %v353, %v415
        %v482 = vmul.f32 %v354, %v420
        %v483 = vmul.f32 %v355, %v420
        %v484 = vmul.f32 %v356, %v425
        %v485 = vmul.f32 %v357, %v425
        %v486 = vmul.f32 %v358, %v430
        %v487 = vmul.f32 %v359, %v430
        %v488 = vmul.f32 %v360, %v435
        %v489 = vmul.f32 %v361, %v435
        %v490 = vmul.f32 %v362, %v440
        %v491 = vmul.f32 %v363, %v440
        %v492 = vmul.f32 %v364, %v445
        %v493 = vmul.f32 %v365, %v445
        %v494 = vmul.f32 %v366, %v450
        %v495 = vmul.f32 %v367, %v450
        %v496 = vmul.f32 %v368, %v455
        %v497 = vmul.f32 %v369, %v455
        %v498 = vmul.f32 %v370, %v460
        %v499 = vmul.f32 %v371, %v460
        %v500 = vmul.f32 %v372, %v465
        %v501 = vmul.f32 %v373, %v465
        %v502 = vmul.f32 %v374, %v470
        %v503 = vmul.f32 %v375, %v470
        %v504 = vld [vmem:[%s1] sm:$0xff]
        %v505 = vld [vmem:[%s1 + $0x8] sm:$0xff]
        %v506 = vld [vmem:[%s1 + $0x10] sm:$0xff]
        %v507 = vld [vmem:[%s1 + $0x18] sm:$0xff]
        %v508 = vld [vmem:[%s1 + $0x20] sm:$0xff]
        %v509 = vld [vmem:[%s1 + $0x28] sm:$0xff]
        %v510 = vld [vmem:[%s1 + $0x30] sm:$0xff]
        %v511 = vld [vmem:[%s1 + $0x38] sm:$0xff]
        %v512 = vld [vmem:[%s1 + $0x40] sm:$0xff]
        %v513 = vld [vmem:[%s1 + $0x48] sm:$0xff]
        %v514 = vld [vmem:[%s1 + $0x50] sm:$0xff]
        %v515 = vld [vmem:[%s1 + $0x58] sm:$0xff]
        %v516 = vld [vmem:[%s1 + $0x60] sm:$0xff]
        %v517 = vld [vmem:[%s1 + $0x68] sm:$0xff]
        %v518 = vld [vmem:[%s1 + $0x70] sm:$0xff]
        %v519 = vld [vmem:[%s1 + $0x78] sm:$0xff]
        %521 = vset.pattern.permute.xlu0 0
        %522 = vperm.xlu0 %521, %v504
        %v523 = vpop.permute.xlu0 %522
        %526 = vset.pattern.permute.xlu0 0
        %527 = vperm.xlu0 %526, %v505
        %v528 = vpop.permute.xlu0 %527
        %531 = vset.pattern.permute.xlu0 0
        %532 = vperm.xlu0 %531, %v506
        %v533 = vpop.permute.xlu0 %532
        %536 = vset.pattern.permute.xlu0 0
        %537 = vperm.xlu0 %536, %v507
        %v538 = vpop.permute.xlu0 %537
        %541 = vset.pattern.permute.xlu0 0
        %542 = vperm.xlu0 %541, %v508
        %v543 = vpop.permute.xlu0 %542
        %546 = vset.pattern.permute.xlu0 0
        %547 = vperm.xlu0 %546, %v509
        %v548 = vpop.permute.xlu0 %547
        %551 = vset.pattern.permute.xlu0 0
        %552 = vperm.xlu0 %551, %v510
        %v553 = vpop.permute.xlu0 %552
        %556 = vset.pattern.permute.xlu0 0
        %557 = vperm.xlu0 %556, %v511
        %v558 = vpop.permute.xlu0 %557
        %561 = vset.pattern.permute.xlu0 0
        %562 = vperm.xlu0 %561, %v512
        %v563 = vpop.permute.xlu0 %562
        %566 = vset.pattern.permute.xlu0 0
        %567 = vperm.xlu0 %566, %v513
        %v568 = vpop.permute.xlu0 %567
        %571 = vset.pattern.permute.xlu0 0
        %572 = vperm.xlu0 %571, %v514
        %v573 = vpop.permute.xlu0 %572
        %576 = vset.pattern.permute.xlu0 0
        %577 = vperm.xlu0 %576, %v515
        %v578 = vpop.permute.xlu0 %577
        %581 = vset.pattern.permute.xlu0 0
        %582 = vperm.xlu0 %581, %v516
        %v583 = vpop.permute.xlu0 %582
        %586 = vset.pattern.permute.xlu0 0
        %587 = vperm.xlu0 %586, %v517
        %v588 = vpop.permute.xlu0 %587
        %591 = vset.pattern.permute.xlu0 0
        %592 = vperm.xlu0 %591, %v518
        %v593 = vpop.permute.xlu0 %592
        %596 = vset.pattern.permute.xlu0 0
        %597 = vperm.xlu0 %596, %v519
        %v598 = vpop.permute.xlu0 %597
        %v600 = vadd.f32 %v472, %v523
        %v601 = vadd.f32 %v473, %v523
        %v602 = vadd.f32 %v474, %v528
        %v603 = vadd.f32 %v475, %v528
        %v604 = vadd.f32 %v476, %v533
        %v605 = vadd.f32 %v477, %v533
        %v606 = vadd.f32 %v478, %v538
        %v607 = vadd.f32 %v479, %v538
        %v608 = vadd.f32 %v480, %v543
        %v609 = vadd.f32 %v481, %v543
        %v610 = vadd.f32 %v482, %v548
        %v611 = vadd.f32 %v483, %v548
        %v612 = vadd.f32 %v484, %v553
        %v613 = vadd.f32 %v485, %v553
        %v614 = vadd.f32 %v486, %v558
        %v615 = vadd.f32 %v487, %v558
        %v616 = vadd.f32 %v488, %v563
        %v617 = vadd.f32 %v489, %v563
        %v618 = vadd.f32 %v490, %v568
        %v619 = vadd.f32 %v491, %v568
        %v620 = vadd.f32 %v492, %v573
        %v621 = vadd.f32 %v493, %v573
        %v622 = vadd.f32 %v494, %v578
        %v623 = vadd.f32 %v495, %v578
        %v624 = vadd.f32 %v496, %v583
        %v625 = vadd.f32 %v497, %v583
        %v626 = vadd.f32 %v498, %v588
        %v627 = vadd.f32 %v499, %v588
        %v628 = vadd.f32 %v500, %v593
        %v629 = vadd.f32 %v501, %v593
        %v630 = vadd.f32 %v502, %v598
        %v631 = vadd.f32 %v503, %v598
        %vm632 = vcmp.ge.f32.partialorder %v600, 0.0
        %vm633 = vcmp.ge.f32.partialorder %v601, 0.0
        %vm634 = vcmp.ge.f32.partialorder %v602, 0.0
        %vm635 = vcmp.ge.f32.partialorder %v603, 0.0
        %vm636 = vcmp.ge.f32.partialorder %v604, 0.0
        %vm637 = vcmp.ge.f32.partialorder %v605, 0.0
        %vm638 = vcmp.ge.f32.partialorder %v606, 0.0
        %vm639 = vcmp.ge.f32.partialorder %v607, 0.0
        %vm640 = vcmp.ge.f32.partialorder %v608, 0.0
        %vm641 = vcmp.ge.f32.partialorder %v609, 0.0
        %vm642 = vcmp.ge.f32.partialorder %v610, 0.0
        %vm643 = vcmp.ge.f32.partialorder %v611, 0.0
        %vm644 = vcmp.ge.f32.partialorder %v612, 0.0
        %vm645 = vcmp.ge.f32.partialorder %v613, 0.0
        %vm646 = vcmp.ge.f32.partialorder %v614, 0.0
        %vm647 = vcmp.ge.f32.partialorder %v615, 0.0
        %vm648 = vcmp.ge.f32.partialorder %v616, 0.0
        %vm649 = vcmp.ge.f32.partialorder %v617, 0.0
        %vm650 = vcmp.ge.f32.partialorder %v618, 0.0
        %vm651 = vcmp.ge.f32.partialorder %v619, 0.0
        %vm652 = vcmp.ge.f32.partialorder %v620, 0.0
        %vm653 = vcmp.ge.f32.partialorder %v621, 0.0
        %vm654 = vcmp.ge.f32.partialorder %v622, 0.0
        %vm655 = vcmp.ge.f32.partialorder %v623, 0.0
        %vm656 = vcmp.ge.f32.partialorder %v624, 0.0
        %vm657 = vcmp.ge.f32.partialorder %v625, 0.0
        %vm658 = vcmp.ge.f32.partialorder %v626, 0.0
        %vm659 = vcmp.ge.f32.partialorder %v627, 0.0
        %vm660 = vcmp.ge.f32.partialorder %v628, 0.0
        %vm661 = vcmp.ge.f32.partialorder %v629, 0.0
        %vm662 = vcmp.ge.f32.partialorder %v630, 0.0
        %vm663 = vcmp.ge.f32.partialorder %v631, 0.0
        %v664 = vmul.f32 %v600, 0.2
        %v665 = vmul.f32 %v601, 0.2
        %v666 = vmul.f32 %v602, 0.2
        %v667 = vmul.f32 %v603, 0.2
        %v668 = vmul.f32 %v604, 0.2
        %v669 = vmul.f32 %v605, 0.2
        %v670 = vmul.f32 %v606, 0.2
        %v671 = vmul.f32 %v607, 0.2
        %v672 = vmul.f32 %v608, 0.2
        %v673 = vmul.f32 %v609, 0.2
        %v674 = vmul.f32 %v610, 0.2
        %v675 = vmul.f32 %v611, 0.2
        %v676 = vmul.f32 %v612, 0.2
        %v677 = vmul.f32 %v613, 0.2
        %v678 = vmul.f32 %v614, 0.2
        %v679 = vmul.f32 %v615, 0.2
        %v680 = vmul.f32 %v616, 0.2
        %v681 = vmul.f32 %v617, 0.2
        %v682 = vmul.f32 %v618, 0.2
        %v683 = vmul.f32 %v619, 0.2
        %v684 = vmul.f32 %v620, 0.2
        %v685 = vmul.f32 %v621, 0.2
        %v686 = vmul.f32 %v622, 0.2
        %v687 = vmul.f32 %v623, 0.2
        %v688 = vmul.f32 %v624, 0.2
        %v689 = vmul.f32 %v625, 0.2
        %v690 = vmul.f32 %v626, 0.2
        %v691 = vmul.f32 %v627, 0.2
        %v692 = vmul.f32 %v628, 0.2
        %v693 = vmul.f32 %v629, 0.2
        %v694 = vmul.f32 %v630, 0.2
        %v695 = vmul.f32 %v631, 0.2
        %v696 = vsel %vm632, %v600, %v664
        %v697 = vsel %vm633, %v601, %v665
        %v698 = vsel %vm634, %v602, %v666
        %v699 = vsel %vm635, %v603, %v667
        %v700 = vsel %vm636, %v604, %v668
        %v701 = vsel %vm637, %v605, %v669
        %v702 = vsel %vm638, %v606, %v670
        %v703 = vsel %vm639, %v607, %v671
        %v704 = vsel %vm640, %v608, %v672
        %v705 = vsel %vm641, %v609, %v673
        %v706 = vsel %vm642, %v610, %v674
        %v707 = vsel %vm643, %v611, %v675
        %v708 = vsel %vm644, %v612, %v676
        %v709 = vsel %vm645, %v613, %v677
        %v710 = vsel %vm646, %v614, %v678
        %v711 = vsel %vm647, %v615, %v679
        %v712 = vsel %vm648, %v616, %v680
        %v713 = vsel %vm649, %v617, %v681
        %v714 = vsel %vm650, %v618, %v682
        %v715 = vsel %vm651, %v619, %v683
        %v716 = vsel %vm652, %v620, %v684
        %v717 = vsel %vm653, %v621, %v685
        %v718 = vsel %vm654, %v622, %v686
        %v719 = vsel %vm655, %v623, %v687
        %v720 = vsel %vm656, %v624, %v688
        %v721 = vsel %vm657, %v625, %v689
        %v722 = vsel %vm658, %v626, %v690
        %v723 = vsel %vm659, %v627, %v691
        %v724 = vsel %vm660, %v628, %v692
        %v725 = vsel %vm661, %v629, %v693
        %v726 = vsel %vm662, %v630, %v694
        %v727 = vsel %vm663, %v631, %v695
        %v728 = vpack.c.bf16 %v698, %v696
        %v729 = vpack.c.bf16 %v699, %v697
        %v730 = vpack.c.bf16 %v702, %v700
        %v731 = vpack.c.bf16 %v703, %v701
        %v732 = vpack.c.bf16 %v706, %v704
        %v733 = vpack.c.bf16 %v707, %v705
        %v734 = vpack.c.bf16 %v710, %v708
        %v735 = vpack.c.bf16 %v711, %v709
        %v736 = vpack.c.bf16 %v714, %v712
        %v737 = vpack.c.bf16 %v715, %v713
        %v738 = vpack.c.bf16 %v718, %v716
        %v739 = vpack.c.bf16 %v719, %v717
        %v740 = vpack.c.bf16 %v722, %v720
        %v741 = vpack.c.bf16 %v723, %v721
        %v742 = vpack.c.bf16 %v726, %v724
        %v743 = vpack.c.bf16 %v727, %v725
        %v744 = vld [vmem:[%s3] sm:$0xf]
        %v745 = vld [vmem:[%s3 + $0x4] sm:$0xf]
        %v748 = vunpack.c.l.b16 %v744
        %v749 = vunpack.c.l.b16 %v745
        %v750 = vpack.c.b16 %v749, %v748
        %752 = vmatpush.bf16.msra.mxu0 %v742
        %753 = vmatpush.bf16.msra.mxu0 %v740
        %754 = vmatpush.bf16.msra.mxu0 %v738
        %755 = vmatpush.bf16.msra.mxu0 %v736
        %756 = vmatpush.bf16.msra.mxu0 %v734
        %757 = vmatpush.bf16.msra.mxu0 %v732
        %758 = vmatpush.bf16.msra.mxu0 %v730
        %759 = vmatpush.bf16.msra.mxu0 %v728
        %760 = vmatmul.bf16.gmra.mxu0 %v750
        %v761 = vpop.f32.mrf.mxu0
        %v762 = vadd.f32 0.0, %v761
        %v763 = vpop.f32.mrf.mxu0
        %v764 = vadd.f32 0.0, %v763
        %765 = vdwg.mxu0
        %766 = vmatpush.bf16.msra.mxu0 %v743
        %767 = vmatpush.bf16.msra.mxu0 %v741
        %768 = vmatpush.bf16.msra.mxu0 %v739
        %769 = vmatpush.bf16.msra.mxu0 %v737
        %770 = vmatpush.bf16.msra.mxu0 %v735
        %771 = vmatpush.bf16.msra.mxu0 %v733
        %772 = vmatpush.bf16.msra.mxu0 %v731
        %773 = vmatpush.bf16.msra.mxu0 %v729
        %774 = vmatmul.bf16.gmra.mxu0 %v750
        %v775 = vpop.f32.mrf.mxu0
        %v776 = vadd.f32 0.0, %v775
        %v777 = vpop.f32.mrf.mxu0
        %v778 = vadd.f32 0.0, %v777
        %779 = vdwg.mxu0
        %v780 = vpack.c.bf16 %v776, %v762
        %v781 = vpack.c.bf16 %v778, %v764
        %782 = vst [vmem:[%s315] sm:$0xff] %v780
        %783 = vst [vmem:[%s315 + $0x8] sm:$0xff] %v781
        %v784 = vadd.f32 %v762, %v776
        %785 = vadd.xlane.f32.xlu0 %v784
        %v786 = vpop.xlane.xlu0 %785
        %v787 = vadd.f32 %v764, %v778
        %788 = vadd.xlane.f32.xlu0 %v787
        %v789 = vpop.xlane.xlu0 %788
        %v790 = vmul.f32 %v762, %v762
        %v791 = vmul.f32 %v776, %v776
        %v792 = vmul.f32 %v764, %v764
        %v793 = vmul.f32 %v778, %v778
        %v794 = vadd.f32 %v790, %v791
        %795 = vadd.xlane.f32.xlu0 %v794
        %v796 = vpop.xlane.xlu0 %795
        %v797 = vadd.f32 %v792, %v793
        %798 = vadd.xlane.f32.xlu0 %v797
        %v799 = vpop.xlane.xlu0 %798
        %v800 = vlaneseq
        %v801 = vshrl.u32 %v800, 7
        %vm802 = vcmp.eq.s32.totalorder %v801, 0
        %vm803 = vcmp.eq.s32.totalorder %v801, 1
        %v806 = vlaneseq
        %v807 = vand.u32 %v806, 127
        %v808 = vperm.slane %v796, %v807
        %v809 = vadd.s32 %v807, 4294967288
        %v810 = vperm.slane %v799, %v809
        %vm811 = vcmask 130112
        %v812 = vsel %vm811, %v810, %v808
        %vm813 = vcmask 1042434
        %v814 = vsel %vm813, %v812, %v812
        %vm815 = vcmask 1043459
        %v816 = vsel %vm815, %v812, %v814
        %vm817 = vcmask 1044484
        %v818 = vsel %vm817, %v812, %v816
        %vm819 = vcmask 1045509
        %v820 = vsel %vm819, %v812, %v818
        %vm821 = vcmask 1046534
        %v822 = vsel %vm821, %v812, %v820
        %vm823 = vcmask 1047559
        %v824 = vsel %vm823, %v812, %v822
        %v826 = vsel %vm803, %v824, 0.0
        %v829 = vperm.slane %v786, %v807
        %v830 = vperm.slane %v789, %v809
        %v831 = vsel %vm811, %v830, %v829
        %v832 = vsel %vm813, %v831, %v831
        %v833 = vsel %vm815, %v831, %v832
        %v834 = vsel %vm817, %v831, %v833
        %v835 = vsel %vm819, %v831, %v834
        %v836 = vsel %vm821, %v831, %v835
        %v837 = vsel %vm823, %v831, %v836
        %v839 = vsel %vm802, %v837, %v826
        %vm840 = vcmask 130048
        %841 = vst.msk [vmem:[%s327] sm:$0xff] %vm840, %v839
        %s842 = sand.u32 %s114, 1
        %s843 = sand.u32 %s114, 1
        %s844 = smul.addr %s843, 16
        %s845 = scalar_lea.vmem [#allocation3], %s844
        %p846 = scmp.lt.s32.totalorder %s17, 7
        %s847 = scalar_select %p846, %s17, 7
        %s848 = smul.addr %s847, 8
        %s849 = scalar_lea.vmem %s5, %s848
        // Predicated region
        $region75: #{discriminator_forward.5} parent=69 // pred_check
          %p850 = pneg %p124
        $region76: #{discriminator_forward.5} parent=69 // pred_check_branch
          %852 = sbr.rel (%p850) target = $region78
        $region77: #{discriminator_forward.5} parent=69 // pred_region
          %s853 = smul.u32 2, %s17
          %s854 = smul.addr %s853, 4
          %s855 = scalar_lea.vmem %s4, %s854
          // Predicated region
          $region79: #{discriminator_forward.5} parent=77 // pred_check
            _
          $region80: #{discriminator_forward.5} parent=77 // pred_check_branch
            %857 = sbr.rel (0) target = $region82
          $region81: #{discriminator_forward.5} parent=77 // pred_region
            // Predicated region
            $region83: #{discriminator_forward.5} parent=81 // pred_check
              _
            $region84: #{discriminator_forward.5} parent=81 // pred_check_branch
              %859 = sbr.rel (0) target = $region86
            $region85: #{discriminator_forward.5} parent=81 // pred_region
              // Predicated region
              $region98: #{discriminator_forward.5} parent=85 // pred_check
                _
              $region99: #{discriminator_forward.5} parent=85 // pred_check_branch
                %877 = sbr.rel (0) target = $region101
              $region100: #{discriminator_forward.5} parent=85 // pred_region
                loop: start=0, step=1, limit=1
                $region102: #{discriminator_forward.5} parent=100 // loop_pre_header
                  _
                $region103: #{discriminator_forward.5} parent=100 // loop_header
                  %s879 = sphi 0, %s883
                  %p880 = scmp.ge.s32.totalorder %s879, 1
                  %s884 = sphi %s845, %s845
                  %s885 = sphi %s855, %s855
                $region104: #{discriminator_forward.5} parent=100 // loop_header_branch
                  %882 = sbr.rel (%p880) target = $region108
                $region105: #{discriminator_forward.5} parent=100 // loop_body
                  %v886 = vld [vmem:[%s884] sm:$0xff]
                  %887 = vst [vmem:[%s885] sm:$0xff] %v886
                  %v888 = vld [vmem:[%s884 + $0x8] sm:$0xff]
                  %889 = vst [vmem:[%s885 + $0x40] sm:$0xff] %v888
                $region106: #{discriminator_forward.5} parent=100 // loop_footer
                  %s883 = sadd.s32 1, %s879
                $region107: #{discriminator_forward.5} parent=100 // loop_footer_branch
                  %878 = sbr.rel target = $region103
                $region108: #{discriminator_forward.5} parent=100 // loop_exit
                  _
              $region101: #{discriminator_forward.5} parent=85 // pred_fallthru
                _
              // Predicated region
              $region109: #{discriminator_forward.5} parent=85 // pred_check
                _
              $region110: #{discriminator_forward.5} parent=85 // pred_check_branch
                %891 = sbr.rel target = $region112
              $region111: #{discriminator_forward.5} parent=85 // pred_region
                _
              $region112: #{discriminator_forward.5} parent=85 // pred_fallthru
                _
            $region86: #{discriminator_forward.5} parent=81 // pred_fallthru
              _
            // Predicated region
            $region87: #{discriminator_forward.5} parent=81 // pred_check
              _
            $region88: #{discriminator_forward.5} parent=81 // pred_check_branch
              %861 = sbr.rel target = $region90
            $region89: #{discriminator_forward.5} parent=81 // pred_region
              %s863 = ssub.s32 256, 1
              loop: start=0, step=1, limit=1
              $region91: #{discriminator_forward.5} parent=89 // loop_pre_header
                _
              $region92: #{discriminator_forward.5} parent=89 // loop_header
                %s865 = sphi 0, %s869
                %p866 = scmp.ge.s32.totalorder %s865, 1
                %s870 = sphi %s845, %s845
                %s871 = sphi %s855, %s855
              $region93: #{discriminator_forward.5} parent=89 // loop_header_branch
                %868 = sbr.rel (%p866) target = $region97
              $region94: #{discriminator_forward.5} parent=89 // loop_body
                %v872 = vld [vmem:[%s870] sm:%s863]
                %873 = vst [vmem:[%s871] sm:%s863] %v872
                %v874 = vld [vmem:[%s870 + $0x8] sm:%s863]
                %875 = vst [vmem:[%s871 + $0x40] sm:%s863] %v874
              $region95: #{discriminator_forward.5} parent=89 // loop_footer
                %s869 = sadd.s32 1, %s865
              $region96: #{discriminator_forward.5} parent=89 // loop_footer_branch
                %864 = sbr.rel target = $region92
              $region97: #{discriminator_forward.5} parent=89 // loop_exit
                _
            $region90: #{discriminator_forward.5} parent=81 // pred_fallthru
              _
          $region82: #{discriminator_forward.5} parent=77 // pred_fallthru
            _
          %892 = vnop
        $region78: #{discriminator_forward.5} parent=69 // pred_fallthru
          _
        // Predicated region
        $region113: #{discriminator_forward.5} parent=69 // pred_check
          %p893 = pneg %p150
        $region114: #{discriminator_forward.5} parent=69 // pred_check_branch
          %895 = sbr.rel (%p893) target = $region116
        $region115: #{discriminator_forward.5} parent=69 // pred_region
          _
        $region116: #{discriminator_forward.5} parent=69 // pred_fallthru
          _
      $region70: #{discriminator_forward.5} parent=5 // pred_fallthru
        _
      %p896 = scmp.le.s32.totalorder 2, %s12
      // Predicated region
      $region117: #{discriminator_forward.5} parent=5 // pred_check
        %p897 = pneg %p896
      $region118: #{discriminator_forward.5} parent=5 // pred_check_branch
        %899 = sbr.rel (%p897) target = $region120
      $region119: #{discriminator_forward.5} parent=5 // pred_region
        %s900 = ssub.s32 %s12, 2
        // Predicated region
        $region121: #{discriminator_forward.5} parent=119 // pred_check
          %p901 = pneg %p130
        $region122: #{discriminator_forward.5} parent=119 // pred_check_branch
          %903 = sbr.rel (%p901) target = $region124
        $region123: #{discriminator_forward.5} parent=119 // pred_region
          %s904 = sand.u32 %s115, 1
          %s905 = sand.u32 %s115, 1
          %s906 = smul.addr %s905, 16
          %s907 = scalar_lea.vmem [#allocation3], %s906
        $region124: #{discriminator_forward.5} parent=119 // pred_fallthru
          _
        // Predicated region
        $region125: #{discriminator_forward.5} parent=119 // pred_check
          %p908 = pneg %p156
        $region126: #{discriminator_forward.5} parent=119 // pred_check_branch
          %910 = sbr.rel (%p908) target = $region128
        $region127: #{discriminator_forward.5} parent=119 // pred_region
          %p911 = scmp.lt.s32.totalorder %s18, 7
          %s912 = scalar_select %p911, %s18, 7
          %s913 = smul.addr %s912, 8
          %s914 = scalar_lea.vmem %s5, %s913
        $region128: #{discriminator_forward.5} parent=119 // pred_fallthru
          _
      $region120: #{discriminator_forward.5} parent=5 // pred_fallthru
        _
    $region6: #{discriminator_forward.5} parent=1 // loop_footer
      %s16 = sadd.s32 1, %s12
    $region7: #{discriminator_forward.5} parent=1 // loop_footer_branch
      %11 = sbr.rel target = $region3
    $region8: #{discriminator_forward.5} parent=1 // loop_exit
      _

</llo_original>
